<compile_context>
chip_gen: v7x
topology: tpu7x:2x2x1
jax: 0.10.0
libtpu: 0.0.40
codegen_flags: <defaults>
</compile_context>

<pallas_src>
import functools
import math

import jax
import jax.numpy as jnp
from jax import lax
from jax.experimental import pallas as pl
from jax.experimental.pallas import tpu as pltpu

# ----------------------------- configuration --------------------------------
B = 4             # batch of graphs (grid axis)
N = 64            # number of nodes per graph
C = 32            # in_channel == out_channel (required by the gating elementwise mul)
TRANS_HEADS = 2   # TransformerConv heads
SEM_HEADS = 2     # SemanticAttention heads
SEM_HIDDEN = 128  # SemanticAttention hidden size
NUM_REL = 2       # num_edge_type (torch forward returns after processing relation 1)
E = 256           # edges per relation (synthetic)

# MXU operand dtype for the score and alpha@V matmuls.  bf16 roughly doubles/triples the
# MXU rate (biggest win on v5e, which has no native f32 MXU path), but the bf16 rounding of
# q/k is amplified by exp() in the softmax, so the strict 1e-4 allclose check against the
# f32 reference would have to be loosened to ~2e-2.  Default keeps full f32 + strict check.
ATTN_MXU_DTYPE = jnp.float32

# TODO(synk): TransformerConv attention dropout (p=0.5) is a train-time op; eval semantics (identity) implemented.


# --------------------------- fused RGTLayer kernel ---------------------------
def rgt_fused_kernel(x_ref, adj_ref, w_all_ref, b_all_ref, wgu_ref,
                     sem_w1_ref, sem_b1_ref, sem_w2bd_ref, out_ref, *,
                     heads, out_c, num_rel, sem_heads, n_nodes):
    f32 = jnp.float32
    x = x_ref[...]                                                   # (N, C)

    # One wide lane-dense matmul: [qkv_r0 | qkv_r1 | skip_r0 | skip_r1 | gate_x], biases folded.
    proj = jnp.dot(x, w_all_ref[...], preferred_element_type=f32) + b_all_ref[...]   # (N, 480)

    qkv_w = 3 * heads * out_c                  # 192 columns per relation
    skip_off = num_rel * qkv_w                 # 384
    gate_off = skip_off + num_rel * out_c      # 448
    gate_x = proj[:, gate_off:gate_off + out_c]                       # x @ Wg_x + bg

    inv_sqrt_d = 1.0 / math.sqrt(out_c)
    inv_heads = 1.0 / heads
    inv_n = 1.0 / n_nodes

    # ------------- scores for every (relation, head), sublane-stacked -------------
    s_blocks, mask_blocks, v_blocks = [], [], []
    for r in range(num_rel):
        adj = adj_ref[r]                                              # (N, N), {0,1}
        base = r * qkv_w
        for h in range(heads):
            qh = proj[:, base + h * out_c:base + (h + 1) * out_c].astype(ATTN_MXU_DTYPE)
            kh = proj[:, base + (heads + h) * out_c:
                         base + (heads + h + 1) * out_c].astype(ATTN_MXU_DTYPE)
            vh = proj[:, base + (2 * heads + h) * out_c:
                         base + (2 * heads + h + 1) * out_c].astype(ATTN_MXU_DTYPE)
            # s[i, j] = q_i . k_j / sqrt(C)   (contract channel axis, no transpose materialized)
            s_blocks.append(lax.dot_general(qh, kh, (((1,), (1,)), ((), ())),
                                            preferred_element_type=f32) * inv_sqrt_d)
            mask_blocks.append(adj)
            v_blocks.append(vh)

    s_all = jnp.concatenate(s_blocks, axis=0)                         # (R*H*N, N)
    mask_all = jnp.concatenate(mask_blocks, axis=0)                   # (R*H*N, N)

    # one segment-softmax pass over every (relation, head) block
    s_m = s_all + (mask_all - 1.0) * 1e30           # 0 on edges, -1e30 off edges
    m = jnp.max(s_m, axis=-1, keepdims=True)
    p = jnp.exp(s_m - m) * mask_all                 # `* mask` keeps empty rows exactly zero
    l = jnp.sum(p, axis=-1, keepdims=True)
    alpha = p * pl.reciprocal(jnp.where(l == 0.0, 1.0, l), approx=False)   # segment softmax

    # ------------- per relation: fused message matmul over heads (K = H*N) -------------
    u_blocks = []
    for r in range(num_rel):
        a_cols = [alpha[(r * heads + h) * n_nodes:(r * heads + h + 1) * n_nodes, :]
                  for h in range(heads)]
        A = jnp.concatenate(a_cols, axis=1).astype(ATTN_MXU_DTYPE)    # (N, H*N) = (64, 128)
        V = jnp.concatenate([v_blocks[r * heads + h] for h in range(heads)], axis=0)  # (H*N, C)
        msg = jnp.dot(A, V, preferred_element_type=f32)               # (N, C), one MXU push
        skip = proj[:, skip_off + r * out_c:skip_off + (r + 1) * out_c]
        # concat=False -> mean over heads, plus root/skip linear
        u_blocks.append(msg * inv_heads + skip)

    # ------------- relation-stacked gate + gating + semantic path -------------
    U = jnp.concatenate(u_blocks, axis=0)                             # (R*N, C) = (128, 32)
    X2 = jnp.concatenate([x] * num_rel, axis=0)                       # (R*N, C)
    GX = jnp.concatenate([gate_x] * num_rel, axis=0)                  # (R*N, C)

    # gate = sigmoid(Linear([u, x])); the x-part and bias were prefused into `proj`
    a_gate = jax.nn.sigmoid(jnp.dot(U, wgu_ref[...], preferred_element_type=f32) + GX)
    Z = jnp.tanh(U) * a_gate + X2 * (1.0 - a_gate)                    # (R*N, C)

    # semantic attention: one 256-wide matmul covers both heads and both relations
    H = jnp.tanh(jnp.dot(Z, sem_w1_ref[...], preferred_element_type=f32)
                 + sem_b1_ref[...])                                   # (R*N, SEM_H*HID)
    # per-node per-head score via block-diagonal w2 on the MXU
    SC = jnp.dot(H, sem_w2bd_ref[...], preferred_element_type=f32)    # (R*N, SEM_H)

    sc = [jnp.sum(SC[r * n_nodes:(r + 1) * n_nodes, :], axis=0, keepdims=True) * inv_n
          for r in range(num_rel)]                                    # (1, SEM_H) per relation
    m2 = functools.reduce(jnp.maximum, sc)
    e = [jnp.exp(s - m2) for s in sc]
    denom = functools.reduce(lambda a, b: a + b, e)
    inv_denom = pl.reciprocal(denom, approx=False)
    inv_sem = 1.0 / sem_heads

    out = None
    for r in range(num_rel):
        coef = jnp.sum(e[r] * inv_denom) * inv_sem                    # scalar: sum_h beta[h][r] / H
        term = coef * Z[r * n_nodes:(r + 1) * n_nodes, :]
        out = term if out is None else out + term
    out_ref[...] = out


def rgt_layer(x, adjs, rel_params, gate_w, gate_b, sem_w1, sem_b1, sem_w2):
    """Packs parameters into wide lane-dense slabs and runs the batched fused kernel."""
    bsz, n, c = x.shape
    num_rel = adjs.shape[1]

    # x-side slab: [qkv_r0 | qkv_r1 | skip_r0 | skip_r1 | gate_x] -> (C, NUM_REL*3*H*C + NUM_REL*C + C)
    w_cols, b_cols = [], []
    for p in rel_params:
        w_cols += [p["wq"], p["wk"], p["wv"]]
        b_cols += [p["bq"], p["bk"], p["bv"]]
    for p in rel_params:
        w_cols.append(p["wskip"])
        b_cols.append(p["bskip"])
    w_cols.append(gate_w[c:, :])       # x-half of the shared gate weight
    b_cols.append(gate_b)
    w_all = jnp.concatenate(w_cols, axis=1)            # (32, 480)
    b_all = jnp.concatenate(b_cols, axis=1)            # (1, 480)
    w_gate_u = gate_w[:c, :]                           # (32, 32) u-half of the gate

    # semantic-attention params packed per-head along the lane axis
    sem_h, _, hid = sem_w1.shape
    w1 = jnp.concatenate([sem_w1[h] for h in range(sem_h)], axis=1)   # (32, 256)
    b1 = jnp.concatenate([sem_b1[h] for h in range(sem_h)], axis=1)   # (1, 256)
    # block-diagonal w2 so the per-node score reduction runs on the MXU: (SEM_H*HID, SEM_H)
    w2_bd = jnp.zeros((sem_h * hid, sem_h), jnp.float32)
    for h in range(sem_h):
        w2_bd = w2_bd.at[h * hid:(h + 1) * hid, h].set(sem_w2[h][0])

    kernel = functools.partial(
        rgt_fused_kernel, heads=TRANS_HEADS, out_c=c, num_rel=num_rel,
        sem_heads=sem_h, n_nodes=n)

    def param_spec(arr):
        # weights: constant block index across the batch grid -> DMA'd once, stays resident
        return pl.BlockSpec(arr.shape, lambda bb: (0,) * arr.ndim)

    return pl.pallas_call(
        kernel,
        out_shape=jax.ShapeDtypeStruct((bsz, n, c), jnp.float32),
        grid=(bsz,),
        in_specs=[
            pl.BlockSpec((None, n, c), lambda bb: (bb, 0, 0)),              # x   (per graph)
            pl.BlockSpec((None, num_rel, n, n), lambda bb: (bb, 0, 0, 0)),  # adj (per graph)
            param_spec(w_all), param_spec(b_all), param_spec(w_gate_u),
            param_spec(w1), param_spec(b1), param_spec(w2_bd),
        ],
        out_specs=pl.BlockSpec((None, n, c), lambda bb: (bb, 0, 0)),
        compiler_params=pltpu.CompilerParams(dimension_semantics=("parallel",)),
    )(x, adjs, w_all, b_all, w_gate_u, w1, b1, w2_bd)


# --------------------------- pure-JAX reference -------------------------------
def _rgt_reference_single(x, adjs, rel_params, gate_w, gate_b, sem_w1, sem_b1, sem_w2):
    outs = []
    for r in range(NUM_REL):
        p = rel_params[r]
        q = x @ p["wq"] + p["bq"]
        k = x @ p["wk"] + p["bk"]
        v = x @ p["wv"] + p["bv"]
        msg = jnp.zeros_like(x)
        for h in range(TRANS_HEADS):
            qh = q[:, h * C:(h + 1) * C]
            kh = k[:, h * C:(h + 1) * C]
            vh = v[:, h * C:(h + 1) * C]
            s = (qh @ kh.T) / math.sqrt(C)
            s_m = jnp.where(adjs[r] > 0, s, -1e30)
            mm = s_m.max(-1, keepdims=True)
            pp = jnp.exp(s_m - mm) * adjs[r]
            ll = pp.sum(-1, keepdims=True)
            alpha = pp / jnp.where(ll == 0.0, 1.0, ll)
            msg = msg + alpha @ vh
        u = msg / TRANS_HEADS + x @ p["wskip"] + p["bskip"]
        a = jax.nn.sigmoid(jnp.concatenate([u, x], axis=1) @ gate_w + gate_b)
        outs.append(jnp.tanh(u) * a + x * (1.0 - a))
    z = jnp.stack(outs, 0)
    acc = jnp.zeros((N, C), jnp.float32)
    for head in range(SEM_HEADS):
        scores = []
        for m in range(NUM_REL):
            hdd = jnp.tanh(z[m] @ sem_w1[head] + sem_b1[head])
            scores.append(jnp.sum(hdd * sem_w2[head]) / N)
        beta = jax.nn.softmax(jnp.stack(scores))
        for m in range(NUM_REL):
            acc = acc + beta[m] * z[m]
    return acc / SEM_HEADS


def rgt_reference(x, adjs, rel_params, gate_w, gate_b, sem_w1, sem_b1, sem_w2):
    return jnp.stack([
        _rgt_reference_single(x[b], adjs[b], rel_params, gate_w, gate_b,
                              sem_w1, sem_b1, sem_w2)
        for b in range(x.shape[0])
    ], 0)


# --------------------------------- main ---------------------------------------
if __name__ == "__main__":
    key = jax.random.PRNGKey(0)
    keys = iter(jax.random.split(key, 64))

    def init(shape, scale):
        return (jax.random.normal(next(keys), shape, jnp.float32) * scale).astype(jnp.float32)

    # node features, batched over B graphs
    x = init((B, N, C), 1.0)

    # synthetic edge_index per graph per relation -> dense adjacency masks (target x source)
    adjs = []
    for _ in range(B):
        rel_adjs = []
        for _ in range(NUM_REL):
            src = jax.random.randint(next(keys), (E,), 0, N)
            tgt = jax.random.randint(next(keys), (E,), 0, N)
            rel_adjs.append(jnp.zeros((N, N), jnp.float32).at[tgt, src].set(1.0))
        adjs.append(jnp.stack(rel_adjs, 0))
    adjs = jnp.stack(adjs, 0)                                         # (B, NUM_REL, N, N)

    # per-relation TransformerConv parameters (weights stored as (in, out) == transposed torch layout)
    rel_params = []
    s_in = 1.0 / math.sqrt(C)
    for _ in range(NUM_REL):
        rel_params.append(dict(
            wq=init((C, TRANS_HEADS * C), s_in), bq=init((1, TRANS_HEADS * C), s_in),
            wk=init((C, TRANS_HEADS * C), s_in), bk=init((1, TRANS_HEADS * C), s_in),
            wv=init((C, TRANS_HEADS * C), s_in), bv=init((1, TRANS_HEADS * C), s_in),
            wskip=init((C, C), s_in), bskip=init((1, C), s_in),
        ))

    # shared gate: Linear(in+out -> in)
    gate_w = init((2 * C, C), 1.0 / math.sqrt(2 * C))
    gate_b = init((1, C), 1.0 / math.sqrt(2 * C))

    # semantic attention: per head Linear(C->128) + Tanh + Linear(128->1, no bias)
    sem_w1 = init((SEM_HEADS, C, SEM_HIDDEN), s_in)
    sem_b1 = init((SEM_HEADS, 1, SEM_HIDDEN), s_in)
    sem_w2 = init((SEM_HEADS, 1, SEM_HIDDEN), 1.0 / math.sqrt(SEM_HIDDEN))

    rgt = jax.jit(rgt_layer)
    out = rgt(x, adjs, rel_params, gate_w, gate_b, sem_w1, sem_b1, sem_w2)
    out = jax.block_until_ready(out)

    ref = rgt_reference(x, adjs, rel_params, gate_w, gate_b, sem_w1, sem_b1, sem_w2)
    assert out.shape == (B, N, C)
    assert jnp.allclose(out, ref, rtol=1e-4, atol=1e-4), float(jnp.max(jnp.abs(out - ref)))

    print("KERNEL_OK")
</pallas_src>

<mosaic_0001>
module attributes {stable_mosaic.version = 11 : i64} {
  func.func @rgt_fused_kernel(%arg0: i32, %arg1: memref<1x64x32xf32, #tpu.memory_space<vmem>>, %arg2: memref<1x2x64x64xf32, #tpu.memory_space<vmem>>, %arg3: memref<32x480xf32, #tpu.memory_space<vmem>>, %arg4: memref<1x480xf32, #tpu.memory_space<vmem>>, %arg5: memref<32x32xf32, #tpu.memory_space<vmem>>, %arg6: memref<32x256xf32, #tpu.memory_space<vmem>>, %arg7: memref<1x256xf32, #tpu.memory_space<vmem>>, %arg8: memref<256x2xf32, #tpu.memory_space<vmem>>, %arg9: memref<1x64x32xf32, #tpu.memory_space<vmem>>) attributes {dimension_semantics = [#tpu.dimension_semantics<parallel>], iteration_bounds = array<i64: 4>, scalar_prefetch = 0 : i64, scratch_operands = 0 : i64, tpu.core_type = #tpu.core_type<tc>, window_params = [{transform_indices = @transform_0, window_bounds = array<i64: 1, 64, 32>}, {transform_indices = @transform_1, window_bounds = array<i64: 1, 2, 64, 64>}, {pipeline_mode = #tpu.pipeline_mode<synchronous>, transform_indices = @transform_2, window_bounds = array<i64: 32, 480>}, {pipeline_mode = #tpu.pipeline_mode<synchronous>, transform_indices = @transform_3, window_bounds = array<i64: 1, 480>}, {pipeline_mode = #tpu.pipeline_mode<synchronous>, transform_indices = @transform_4, window_bounds = array<i64: 32, 32>}, {pipeline_mode = #tpu.pipeline_mode<synchronous>, transform_indices = @transform_5, window_bounds = array<i64: 32, 256>}, {pipeline_mode = #tpu.pipeline_mode<synchronous>, transform_indices = @transform_6, window_bounds = array<i64: 1, 256>}, {pipeline_mode = #tpu.pipeline_mode<synchronous>, transform_indices = @transform_7, window_bounds = array<i64: 256, 2>}, {transform_indices = @transform_8, window_bounds = array<i64: 1, 64, 32>}]} {
    %c0 = arith.constant 0 : index
    %c0_0 = arith.constant 0 : index
    %c0_1 = arith.constant 0 : index
    %0 = vector.load %arg1[%c0, %c0_0, %c0_1] : memref<1x64x32xf32, #tpu.memory_space<vmem>>, vector<1x64x32xf32>
    %1 = vector.shape_cast %0 : vector<1x64x32xf32> to vector<64x32xf32>
    %c0_2 = arith.constant 0 : index
    %c0_3 = arith.constant 0 : index
    %2 = vector.load %arg3[%c0_2, %c0_3] : memref<32x480xf32, #tpu.memory_space<vmem>>, vector<32x480xf32>
    %cst = arith.constant dense<0.000000e+00> : vector<64x480xf32>
    %3 = tpu.matmul %1, %2, %cst {dimension_numbers = #tpu.dot_dimension_numbers<[1], [0], [0], [1], [0, 0, 1, 1], [], []>} : vector<64x32xf32>, vector<32x480xf32>, vector<64x480xf32> -> vector<64x480xf32>
    %c0_4 = arith.constant 0 : index
    %c0_5 = arith.constant 0 : index
    %4 = vector.load %arg4[%c0_4, %c0_5] : memref<1x480xf32, #tpu.memory_space<vmem>>, vector<1x480xf32>
    %5 = vector.broadcast %4 : vector<1x480xf32> to vector<64x480xf32>
    %6 = arith.addf %3, %5 : vector<64x480xf32>
    %7 = vector.extract_strided_slice %6 {offsets = [0, 448], sizes = [64, 32], strides = [1, 1]} : vector<64x480xf32> to vector<64x32xf32>
    %c0_6 = arith.constant 0 : index
    %c0_7 = arith.constant 0 : index
    %c0_8 = arith.constant 0 : index
    %c0_9 = arith.constant 0 : index
    %8 = vector.load %arg2[%c0_6, %c0_7, %c0_8, %c0_9] : memref<1x2x64x64xf32, #tpu.memory_space<vmem>>, vector<1x1x64x64xf32>
    %9 = vector.shape_cast %8 : vector<1x1x64x64xf32> to vector<64x64xf32>
    %10 = vector.extract_strided_slice %6 {offsets = [0, 0], sizes = [64, 32], strides = [1, 1]} : vector<64x480xf32> to vector<64x32xf32>
    %11 = vector.extract_strided_slice %6 {offsets = [0, 64], sizes = [64, 32], strides = [1, 1]} : vector<64x480xf32> to vector<64x32xf32>
    %12 = vector.extract_strided_slice %6 {offsets = [0, 128], sizes = [64, 32], strides = [1, 1]} : vector<64x480xf32> to vector<64x32xf32>
    %cst_10 = arith.constant dense<0.000000e+00> : vector<64x64xf32>
    %13 = tpu.matmul %10, %11, %cst_10 {dimension_numbers = #tpu.dot_dimension_numbers<[1], [1], [0], [0], [0, 0, 1, 0], [], []>} : vector<64x32xf32>, vector<64x32xf32>, vector<64x64xf32> -> vector<64x64xf32>
    %cst_11 = arith.constant 0.176776692 : f32
    %14 = vector.broadcast %cst_11 : f32 to vector<64x64xf32>
    %15 = arith.mulf %13, %14 : vector<64x64xf32>
    %16 = vector.extract_strided_slice %6 {offsets = [0, 32], sizes = [64, 32], strides = [1, 1]} : vector<64x480xf32> to vector<64x32xf32>
    %17 = vector.extract_strided_slice %6 {offsets = [0, 96], sizes = [64, 32], strides = [1, 1]} : vector<64x480xf32> to vector<64x32xf32>
    %18 = vector.extract_strided_slice %6 {offsets = [0, 160], sizes = [64, 32], strides = [1, 1]} : vector<64x480xf32> to vector<64x32xf32>
    %cst_12 = arith.constant dense<0.000000e+00> : vector<64x64xf32>
    %19 = tpu.matmul %16, %17, %cst_12 {dimension_numbers = #tpu.dot_dimension_numbers<[1], [1], [0], [0], [0, 0, 1, 0], [], []>} : vector<64x32xf32>, vector<64x32xf32>, vector<64x64xf32> -> vector<64x64xf32>
    %cst_13 = arith.constant 0.176776692 : f32
    %20 = vector.broadcast %cst_13 : f32 to vector<64x64xf32>
    %21 = arith.mulf %19, %20 : vector<64x64xf32>
    %c0_14 = arith.constant 0 : index
    %c1 = arith.constant 1 : index
    %c0_15 = arith.constant 0 : index
    %c0_16 = arith.constant 0 : index
    %22 = vector.load %arg2[%c0_14, %c1, %c0_15, %c0_16] : memref<1x2x64x64xf32, #tpu.memory_space<vmem>>, vector<1x1x64x64xf32>
    %23 = vector.shape_cast %22 : vector<1x1x64x64xf32> to vector<64x64xf32>
    %24 = vector.extract_strided_slice %6 {offsets = [0, 192], sizes = [64, 32], strides = [1, 1]} : vector<64x480xf32> to vector<64x32xf32>
    %25 = vector.extract_strided_slice %6 {offsets = [0, 256], sizes = [64, 32], strides = [1, 1]} : vector<64x480xf32> to vector<64x32xf32>
    %26 = vector.extract_strided_slice %6 {offsets = [0, 320], sizes = [64, 32], strides = [1, 1]} : vector<64x480xf32> to vector<64x32xf32>
    %cst_17 = arith.constant dense<0.000000e+00> : vector<64x64xf32>
    %27 = tpu.matmul %24, %25, %cst_17 {dimension_numbers = #tpu.dot_dimension_numbers<[1], [1], [0], [0], [0, 0, 1, 0], [], []>} : vector<64x32xf32>, vector<64x32xf32>, vector<64x64xf32> -> vector<64x64xf32>
    %cst_18 = arith.constant 0.176776692 : f32
    %28 = vector.broadcast %cst_18 : f32 to vector<64x64xf32>
    %29 = arith.mulf %27, %28 : vector<64x64xf32>
    %30 = vector.extract_strided_slice %6 {offsets = [0, 224], sizes = [64, 32], strides = [1, 1]} : vector<64x480xf32> to vector<64x32xf32>
    %31 = vector.extract_strided_slice %6 {offsets = [0, 288], sizes = [64, 32], strides = [1, 1]} : vector<64x480xf32> to vector<64x32xf32>
    %32 = vector.extract_strided_slice %6 {offsets = [0, 352], sizes = [64, 32], strides = [1, 1]} : vector<64x480xf32> to vector<64x32xf32>
    %cst_19 = arith.constant dense<0.000000e+00> : vector<64x64xf32>
    %33 = tpu.matmul %30, %31, %cst_19 {dimension_numbers = #tpu.dot_dimension_numbers<[1], [1], [0], [0], [0, 0, 1, 0], [], []>} : vector<64x32xf32>, vector<64x32xf32>, vector<64x64xf32> -> vector<64x64xf32>
    %cst_20 = arith.constant 0.176776692 : f32
    %34 = vector.broadcast %cst_20 : f32 to vector<64x64xf32>
    %35 = arith.mulf %33, %34 : vector<64x64xf32>
    %36 = tpu.concatenate %15, %21, %29, %35 in 0 : vector<64x64xf32>, vector<64x64xf32>, vector<64x64xf32>, vector<64x64xf32> -> vector<256x64xf32>
    %37 = tpu.concatenate %9, %9, %23, %23 in 0 : vector<64x64xf32>, vector<64x64xf32>, vector<64x64xf32>, vector<64x64xf32> -> vector<256x64xf32>
    %cst_21 = arith.constant 1.000000e+00 : f32
    %38 = vector.broadcast %cst_21 : f32 to vector<256x64xf32>
    %39 = arith.subf %37, %38 : vector<256x64xf32>
    %cst_22 = arith.constant 1.000000e+30 : f32
    %40 = vector.broadcast %cst_22 : f32 to vector<256x64xf32>
    %41 = arith.mulf %39, %40 : vector<256x64xf32>
    %42 = arith.addf %36, %41 : vector<256x64xf32>
    %cst_23 = arith.constant dense<0xFF800000> : vector<256xf32>
    %43 = vector.multi_reduction <maximumf>, %42, %cst_23 [1] : vector<256x64xf32> to vector<256xf32>
    %44 = vector.shape_cast %43 : vector<256xf32> to vector<256x1xf32>
    %45 = vector.broadcast %44 : vector<256x1xf32> to vector<256x64xf32>
    %46 = arith.subf %42, %45 : vector<256x64xf32>
    %47 = math.exp %46 : vector<256x64xf32>
    %48 = arith.mulf %47, %37 : vector<256x64xf32>
    %cst_24 = arith.constant dense<0.000000e+00> : vector<256xf32>
    %49 = vector.multi_reduction <add>, %48, %cst_24 [1] : vector<256x64xf32> to vector<256xf32>
    %50 = vector.shape_cast %49 : vector<256xf32> to vector<256x1xf32>
    %cst_25 = arith.constant 0.000000e+00 : f32
    %51 = vector.broadcast %cst_25 : f32 to vector<256x1xf32>
    %52 = arith.cmpf oeq, %50, %51 : vector<256x1xf32>
    %cst_26 = arith.constant 1.000000e+00 : f32
    %53 = vector.broadcast %cst_26 : f32 to vector<256x1xf32>
    %54 = arith.select %52, %53, %50 : vector<256x1xi1>, vector<256x1xf32>
    %55 = tpu.reciprocal %54 : vector<256x1xf32> -> vector<256x1xf32>
    %56 = vector.broadcast %55 : vector<256x1xf32> to vector<256x64xf32>
    %57 = arith.mulf %48, %56 : vector<256x64xf32>
    %58 = vector.extract_strided_slice %57 {offsets = [0, 0], sizes = [64, 64], strides = [1, 1]} : vector<256x64xf32> to vector<64x64xf32>
    %59 = vector.extract_strided_slice %57 {offsets = [64, 0], sizes = [64, 64], strides = [1, 1]} : vector<256x64xf32> to vector<64x64xf32>
    %60 = tpu.concatenate %58, %59 in 1 : vector<64x64xf32>, vector<64x64xf32> -> vector<64x128xf32>
    %61 = tpu.concatenate %12, %18 in 0 : vector<64x32xf32>, vector<64x32xf32> -> vector<128x32xf32>
    %cst_27 = arith.constant dense<0.000000e+00> : vector<64x32xf32>
    %62 = tpu.matmul %60, %61, %cst_27 {dimension_numbers = #tpu.dot_dimension_numbers<[1], [0], [0], [1], [0, 0, 1, 1], [], []>} : vector<64x128xf32>, vector<128x32xf32>, vector<64x32xf32> -> vector<64x32xf32>
    %63 = vector.extract_strided_slice %6 {offsets = [0, 384], sizes = [64, 32], strides = [1, 1]} : vector<64x480xf32> to vector<64x32xf32>
    %cst_28 = arith.constant 5.000000e-01 : f32
    %64 = vector.broadcast %cst_28 : f32 to vector<64x32xf32>
    %65 = arith.mulf %62, %64 : vector<64x32xf32>
    %66 = arith.addf %65, %63 : vector<64x32xf32>
    %67 = vector.extract_strided_slice %57 {offsets = [128, 0], sizes = [64, 64], strides = [1, 1]} : vector<256x64xf32> to vector<64x64xf32>
    %68 = vector.extract_strided_slice %57 {offsets = [192, 0], sizes = [64, 64], strides = [1, 1]} : vector<256x64xf32> to vector<64x64xf32>
    %69 = tpu.concatenate %67, %68 in 1 : vector<64x64xf32>, vector<64x64xf32> -> vector<64x128xf32>
    %70 = tpu.concatenate %26, %32 in 0 : vector<64x32xf32>, vector<64x32xf32> -> vector<128x32xf32>
    %cst_29 = arith.constant dense<0.000000e+00> : vector<64x32xf32>
    %71 = tpu.matmul %69, %70, %cst_29 {dimension_numbers = #tpu.dot_dimension_numbers<[1], [0], [0], [1], [0, 0, 1, 1], [], []>} : vector<64x128xf32>, vector<128x32xf32>, vector<64x32xf32> -> vector<64x32xf32>
    %72 = vector.extract_strided_slice %6 {offsets = [0, 416], sizes = [64, 32], strides = [1, 1]} : vector<64x480xf32> to vector<64x32xf32>
    %cst_30 = arith.constant 5.000000e-01 : f32
    %73 = vector.broadcast %cst_30 : f32 to vector<64x32xf32>
    %74 = arith.mulf %71, %73 : vector<64x32xf32>
    %75 = arith.addf %74, %72 : vector<64x32xf32>
    %76 = tpu.concatenate %66, %75 in 0 : vector<64x32xf32>, vector<64x32xf32> -> vector<128x32xf32>
    %77 = tpu.concatenate %1, %1 in 0 : vector<64x32xf32>, vector<64x32xf32> -> vector<128x32xf32>
    %78 = tpu.concatenate %7, %7 in 0 : vector<64x32xf32>, vector<64x32xf32> -> vector<128x32xf32>
    %c0_31 = arith.constant 0 : index
    %c0_32 = arith.constant 0 : index
    %79 = vector.load %arg5[%c0_31, %c0_32] : memref<32x32xf32, #tpu.memory_space<vmem>>, vector<32x32xf32>
    %cst_33 = arith.constant dense<0.000000e+00> : vector<128x32xf32>
    %80 = tpu.matmul %76, %79, %cst_33 {dimension_numbers = #tpu.dot_dimension_numbers<[1], [0], [0], [1], [0, 0, 1, 1], [], []>} : vector<128x32xf32>, vector<32x32xf32>, vector<128x32xf32> -> vector<128x32xf32>
    %81 = arith.addf %80, %78 : vector<128x32xf32>
    %82 = arith.negf %81 : vector<128x32xf32>
    %83 = math.exp %82 : vector<128x32xf32>
    %cst_34 = arith.constant 1.000000e+00 : f32
    %84 = vector.broadcast %cst_34 : f32 to vector<128x32xf32>
    %85 = arith.addf %84, %83 : vector<128x32xf32>
    %86 = arith.divf %84, %85 : vector<128x32xf32>
    %87 = math.tanh %76 : vector<128x32xf32>
    %88 = arith.mulf %87, %86 : vector<128x32xf32>
    %cst_35 = arith.constant 1.000000e+00 : f32
    %89 = vector.broadcast %cst_35 : f32 to vector<128x32xf32>
    %90 = arith.subf %89, %86 : vector<128x32xf32>
    %91 = arith.mulf %77, %90 : vector<128x32xf32>
    %92 = arith.addf %88, %91 : vector<128x32xf32>
    %c0_36 = arith.constant 0 : index
    %c0_37 = arith.constant 0 : index
    %93 = vector.load %arg6[%c0_36, %c0_37] : memref<32x256xf32, #tpu.memory_space<vmem>>, vector<32x256xf32>
    %cst_38 = arith.constant dense<0.000000e+00> : vector<128x256xf32>
    %94 = tpu.matmul %92, %93, %cst_38 {dimension_numbers = #tpu.dot_dimension_numbers<[1], [0], [0], [1], [0, 0, 1, 1], [], []>} : vector<128x32xf32>, vector<32x256xf32>, vector<128x256xf32> -> vector<128x256xf32>
    %c0_39 = arith.constant 0 : index
    %c0_40 = arith.constant 0 : index
    %95 = vector.load %arg7[%c0_39, %c0_40] : memref<1x256xf32, #tpu.memory_space<vmem>>, vector<1x256xf32>
    %96 = vector.broadcast %95 : vector<1x256xf32> to vector<128x256xf32>
    %97 = arith.addf %94, %96 : vector<128x256xf32>
    %98 = math.tanh %97 : vector<128x256xf32>
    %c0_41 = arith.constant 0 : index
    %c0_42 = arith.constant 0 : index
    %99 = vector.load %arg8[%c0_41, %c0_42] : memref<256x2xf32, #tpu.memory_space<vmem>>, vector<256x2xf32>
    %cst_43 = arith.constant dense<0.000000e+00> : vector<128x2xf32>
    %100 = tpu.matmul %98, %99, %cst_43 {dimension_numbers = #tpu.dot_dimension_numbers<[1], [0], [0], [1], [0, 0, 1, 1], [], []>} : vector<128x256xf32>, vector<256x2xf32>, vector<128x2xf32> -> vector<128x2xf32>
    %101 = vector.extract_strided_slice %100 {offsets = [0, 0], sizes = [64, 2], strides = [1, 1]} : vector<128x2xf32> to vector<64x2xf32>
    %cst_44 = arith.constant dense<0.000000e+00> : vector<2xf32>
    %102 = vector.multi_reduction <add>, %101, %cst_44 [0] : vector<64x2xf32> to vector<2xf32>
    %103 = vector.shape_cast %102 : vector<2xf32> to vector<1x2xf32>
    %cst_45 = arith.constant 1.562500e-02 : f32
    %104 = vector.broadcast %cst_45 : f32 to vector<1x2xf32>
    %105 = arith.mulf %103, %104 : vector<1x2xf32>
    %106 = vector.extract_strided_slice %100 {offsets = [64, 0], sizes = [64, 2], strides = [1, 1]} : vector<128x2xf32> to vector<64x2xf32>
    %cst_46 = arith.constant dense<0.000000e+00> : vector<2xf32>
    %107 = vector.multi_reduction <add>, %106, %cst_46 [0] : vector<64x2xf32> to vector<2xf32>
    %108 = vector.shape_cast %107 : vector<2xf32> to vector<1x2xf32>
    %cst_47 = arith.constant 1.562500e-02 : f32
    %109 = vector.broadcast %cst_47 : f32 to vector<1x2xf32>
    %110 = arith.mulf %108, %109 : vector<1x2xf32>
    %111 = arith.maximumf %105, %110 : vector<1x2xf32>
    %112 = arith.subf %105, %111 : vector<1x2xf32>
    %113 = math.exp %112 : vector<1x2xf32>
    %114 = arith.subf %110, %111 : vector<1x2xf32>
    %115 = math.exp %114 : vector<1x2xf32>
    %116 = arith.addf %113, %115 : vector<1x2xf32>
    %117 = tpu.reciprocal %116 : vector<1x2xf32> -> vector<1x2xf32>
    %118 = arith.mulf %113, %117 : vector<1x2xf32>
    %119 = vector.shape_cast %118 : vector<1x2xf32> to vector<1x1x2xf32>
    %cst_48 = arith.constant dense<0.000000e+00> : vector<1xf32>
    %120 = vector.multi_reduction <add>, %119, %cst_48 [1, 2] : vector<1x1x2xf32> to vector<1xf32>
    %121 = vector.shape_cast %120 : vector<1xf32> to vector<1x1x1xf32>
    %122 = vector.extract %121[0, 0, 0] : f32 from vector<1x1x1xf32>
    %cst_49 = arith.constant 5.000000e-01 : f32
    %123 = arith.mulf %122, %cst_49 : f32
    %124 = vector.extract_strided_slice %92 {offsets = [0, 0], sizes = [64, 32], strides = [1, 1]} : vector<128x32xf32> to vector<64x32xf32>
    %125 = vector.broadcast %123 : f32 to vector<64x32xf32>
    %126 = arith.mulf %125, %124 : vector<64x32xf32>
    %127 = arith.mulf %115, %117 : vector<1x2xf32>
    %128 = vector.shape_cast %127 : vector<1x2xf32> to vector<1x1x2xf32>
    %cst_50 = arith.constant dense<0.000000e+00> : vector<1xf32>
    %129 = vector.multi_reduction <add>, %128, %cst_50 [1, 2] : vector<1x1x2xf32> to vector<1xf32>
    %130 = vector.shape_cast %129 : vector<1xf32> to vector<1x1x1xf32>
    %131 = vector.extract %130[0, 0, 0] : f32 from vector<1x1x1xf32>
    %cst_51 = arith.constant 5.000000e-01 : f32
    %132 = arith.mulf %131, %cst_51 : f32
    %133 = vector.extract_strided_slice %92 {offsets = [64, 0], sizes = [64, 32], strides = [1, 1]} : vector<128x32xf32> to vector<64x32xf32>
    %134 = vector.broadcast %132 : f32 to vector<64x32xf32>
    %135 = arith.mulf %134, %133 : vector<64x32xf32>
    %136 = arith.addf %126, %135 : vector<64x32xf32>
    %c0_52 = arith.constant 0 : index
    %c0_53 = arith.constant 0 : index
    %c0_54 = arith.constant 0 : index
    %137 = vector.load %arg9[%c0_52, %c0_53, %c0_54] : memref<1x64x32xf32, #tpu.memory_space<vmem>>, vector<1x64x32xf32>
    %138 = vector.shape_cast %137 : vector<1x64x32xf32> to vector<64x32xf32>
    %139 = vector.shape_cast %136 : vector<64x32xf32> to vector<1x64x32xf32>
    tpu.vector_store %arg9[%c0_52, %c0_53, %c0_54], %139 {strides = array<i32>} : memref<1x64x32xf32, #tpu.memory_space<vmem>>, vector<1x64x32xf32>,
    return
  }
  func.func @transform_0(%arg0: i32) -> (i32, i32, i32) {
    %c0_i32 = arith.constant 0 : i32
    %c0_i32_0 = arith.constant 0 : i32
    %c0_i32_1 = arith.constant 0 : i32
    return %arg0, %c0_i32, %c0_i32_0 : i32, i32, i32
  }
  func.func @transform_1(%arg0: i32) -> (i32, i32, i32, i32) {
    %c0_i32 = arith.constant 0 : i32
    %c0_i32_0 = arith.constant 0 : i32
    %c0_i32_1 = arith.constant 0 : i32
    %c0_i32_2 = arith.constant 0 : i32
    return %arg0, %c0_i32, %c0_i32_0, %c0_i32_1 : i32, i32, i32, i32
  }
  func.func @transform_2(%arg0: i32) -> (i32, i32) {
    %c0_i32 = arith.constant 0 : i32
    %c0_i32_0 = arith.constant 0 : i32
    %c0_i32_1 = arith.constant 0 : i32
    return %c0_i32, %c0_i32_0 : i32, i32
  }
  func.func @transform_3(%arg0: i32) -> (i32, i32) {
    %c0_i32 = arith.constant 0 : i32
    %c0_i32_0 = arith.constant 0 : i32
    %c0_i32_1 = arith.constant 0 : i32
    return %c0_i32, %c0_i32_0 : i32, i32
  }
  func.func @transform_4(%arg0: i32) -> (i32, i32) {
    %c0_i32 = arith.constant 0 : i32
    %c0_i32_0 = arith.constant 0 : i32
    %c0_i32_1 = arith.constant 0 : i32
    return %c0_i32, %c0_i32_0 : i32, i32
  }
  func.func @transform_5(%arg0: i32) -> (i32, i32) {
    %c0_i32 = arith.constant 0 : i32
    %c0_i32_0 = arith.constant 0 : i32
    %c0_i32_1 = arith.constant 0 : i32
    return %c0_i32, %c0_i32_0 : i32, i32
  }
  func.func @transform_6(%arg0: i32) -> (i32, i32) {
    %c0_i32 = arith.constant 0 : i32
    %c0_i32_0 = arith.constant 0 : i32
    %c0_i32_1 = arith.constant 0 : i32
    return %c0_i32, %c0_i32_0 : i32, i32
  }
  func.func @transform_7(%arg0: i32) -> (i32, i32) {
    %c0_i32 = arith.constant 0 : i32
    %c0_i32_0 = arith.constant 0 : i32
    %c0_i32_1 = arith.constant 0 : i32
    return %c0_i32, %c0_i32_0 : i32, i32
  }
  func.func @transform_8(%arg0: i32) -> (i32, i32, i32) {
    %c0_i32 = arith.constant 0 : i32
    %c0_i32_0 = arith.constant 0 : i32
    %c0_i32_1 = arith.constant 0 : i32
    return %arg0, %c0_i32, %c0_i32_0 : i32, i32, i32
  }
}

</mosaic_0001>

<llo_original>
// kernel: rgt_layer.1
$region0: #{rgt_layer.1}
  #allocation0 [shape = 'u32[]', space=smem, size = 0x4, offset = 0x4, fixed_abs, tag = 'smem constant byte address 0x4 - core index']
  #allocation1 [shape = 'u32[144,128]{1,0:T(1,128)}', space=vmem, size = 0x12000, scoped, tag = 'internal scratch']
  %s0 = inlined_call_operand.vmem [shape: f32[4,64,32], index: 0, kind: input, shape index: {}]
  %s1 = inlined_call_operand.vmem [shape: f32[4,2,64,64], index: 1, kind: input, shape index: {}]
  %s2 = inlined_call_operand.vmem [shape: f32[32,480], index: 2, kind: input, shape index: {}]
  %s3 = inlined_call_operand.vmem [shape: f32[1,480], index: 3, kind: input, shape index: {}]
  %s4 = inlined_call_operand.vmem [shape: f32[32,32], index: 4, kind: input, shape index: {}]
  %s5 = inlined_call_operand.vmem [shape: f32[32,256], index: 5, kind: input, shape index: {}]
  %s6 = inlined_call_operand.vmem [shape: f32[1,256], index: 6, kind: input, shape index: {}]
  %s7 = inlined_call_operand.vmem [shape: f32[256,2], index: 7, kind: input, shape index: {}]
  %s8 = inlined_call_operand.vmem [shape: f32[4,64,32], index: 8, kind: output, shape index: {}]
  %s9 = sld [smem:[#allocation0]]
  $region65: #{rgt_layer.1} parent=0
    _
  %s11 = ssub.s32 1, %s9
  %s12 = scalar_select 0, %s11, %s9
  loop: start=0, step=1, limit=6
  $region2: #{rgt_layer.1} parent=0 // loop_pre_header
    _
  $region3: #{rgt_layer.1} parent=0 // loop_header
    %s14 = sphi 0, %s18
    %p15 = scmp.ge.s32.totalorder %s14, 6
    %s24 = sphi 0, %s26
    %s27 = sphi 0, %s24
    %s28 = sphi 0, %s27
    %s44 = sphi 0, %s28
    %s50 = sphi 0, %s52
    %s53 = sphi 0, %s50
    %s54 = sphi 0, %s53
    %s70 = sphi 0, %s54
    %s74 = sphi 0, %s74
    %s76 = sphi 0, %s74
    %s77 = sphi 0, %s76
    %s91 = sphi 0, %s77
    %s95 = sphi 0, %s95
    %s97 = sphi 0, %s95
    %s98 = sphi 0, %s97
    %s112 = sphi 0, %s98
    %s116 = sphi 0, %s116
    %s118 = sphi 0, %s116
    %s119 = sphi 0, %s118
    %s133 = sphi 0, %s119
    %s137 = sphi 0, %s137
    %s139 = sphi 0, %s137
    %s140 = sphi 0, %s139
    %s154 = sphi 0, %s140
    %s158 = sphi 0, %s158
    %s160 = sphi 0, %s158
    %s161 = sphi 0, %s160
    %s175 = sphi 0, %s161
    %s179 = sphi 0, %s179
    %s181 = sphi 0, %s179
    %s182 = sphi 0, %s181
    %s196 = sphi 0, %s182
    %s202 = sphi 0, %s204
    %s205 = sphi 0, %s202
    %s206 = sphi 0, %s205
    %s222 = sphi 0, %s206
  $region4: #{rgt_layer.1} parent=0 // loop_header_branch
    %17 = sbr.rel (%p15) target = $region8
  $region5: #{rgt_layer.1} parent=0 // loop_body
    %s19 = ssub.s32 %s14, 1
    %s20 = ssub.s32 %s14, 2
    %s21 = sadd.s32 %s14, 1
    %s22 = ssub.s32 %s14, %s21
    %p23 = scmp.eq.s32.totalorder %s22, 0
    %s25 = sadd.s32 %s24, 1
    %s26 = scalar_select %p23, %s24, %s25
    %p29 = pneg %p23
    %p30 = scmp.eq.s32.totalorder %s14, 3
    %p31 = por %p29, %p30
    %p32 = scmp.ne.s32.totalorder %s24, %s27
    %p33 = scmp.eq.s32.totalorder %s14, 0
    %p34 = por %p32, %p33
    %p35 = scmp.ne.s32.totalorder %s24, %s27
    %p36 = scmp.eq.s32.totalorder %s19, 3
    %p37 = por %p35, %p36
    %p38 = scmp.ne.s32.totalorder %s27, %s28
    %p39 = scmp.eq.s32.totalorder %s19, 0
    %p40 = por %p38, %p39
    %p41 = scmp.ne.s32.totalorder %s27, %s28
    %p42 = scmp.eq.s32.totalorder %s20, 3
    %p43 = por %p41, %p42
    %p45 = scmp.ne.s32.totalorder %s28, %s44
    %p46 = scmp.eq.s32.totalorder %s20, 0
    %p47 = por %p45, %p46
    %s48 = ssub.s32 %s14, %s21
    %p49 = scmp.eq.s32.totalorder %s48, 0
    %s51 = sadd.s32 %s50, 1
    %s52 = scalar_select %p49, %s50, %s51
    %p55 = pneg %p49
    %p56 = scmp.eq.s32.totalorder %s14, 3
    %p57 = por %p55, %p56
    %p58 = scmp.ne.s32.totalorder %s50, %s53
    %p59 = scmp.eq.s32.totalorder %s14, 0
    %p60 = por %p58, %p59
    %p61 = scmp.ne.s32.totalorder %s50, %s53
    %p62 = scmp.eq.s32.totalorder %s19, 3
    %p63 = por %p61, %p62
    %p64 = scmp.ne.s32.totalorder %s53, %s54
    %p65 = scmp.eq.s32.totalorder %s19, 0
    %p66 = por %p64, %p65
    %p67 = scmp.ne.s32.totalorder %s53, %s54
    %p68 = scmp.eq.s32.totalorder %s20, 3
    %p69 = por %p67, %p68
    %p71 = scmp.ne.s32.totalorder %s54, %s70
    %p72 = scmp.eq.s32.totalorder %s20, 0
    %p73 = por %p71, %p72
    %s75 = sadd.s32 %s74, 1
    %p78 = scmp.eq.s32.totalorder %s14, 3
    %p79 = scmp.ne.s32.totalorder %s74, %s76
    %p80 = scmp.eq.s32.totalorder %s14, 0
    %p81 = por %p79, %p80
    %p82 = scmp.ne.s32.totalorder %s74, %s76
    %p83 = scmp.eq.s32.totalorder %s19, 3
    %p84 = por %p82, %p83
    %p85 = scmp.ne.s32.totalorder %s76, %s77
    %p86 = scmp.eq.s32.totalorder %s19, 0
    %p87 = por %p85, %p86
    %p88 = scmp.ne.s32.totalorder %s76, %s77
    %p89 = scmp.eq.s32.totalorder %s20, 3
    %p90 = por %p88, %p89
    %p92 = scmp.ne.s32.totalorder %s77, %s91
    %p93 = scmp.eq.s32.totalorder %s20, 0
    %p94 = por %p92, %p93
    %s96 = sadd.s32 %s95, 1
    %p99 = scmp.eq.s32.totalorder %s14, 3
    %p100 = scmp.ne.s32.totalorder %s95, %s97
    %p101 = scmp.eq.s32.totalorder %s14, 0
    %p102 = por %p100, %p101
    %p103 = scmp.ne.s32.totalorder %s95, %s97
    %p104 = scmp.eq.s32.totalorder %s19, 3
    %p105 = por %p103, %p104
    %p106 = scmp.ne.s32.totalorder %s97, %s98
    %p107 = scmp.eq.s32.totalorder %s19, 0
    %p108 = por %p106, %p107
    %p109 = scmp.ne.s32.totalorder %s97, %s98
    %p110 = scmp.eq.s32.totalorder %s20, 3
    %p111 = por %p109, %p110
    %p113 = scmp.ne.s32.totalorder %s98, %s112
    %p114 = scmp.eq.s32.totalorder %s20, 0
    %p115 = por %p113, %p114
    %s117 = sadd.s32 %s116, 1
    %p120 = scmp.eq.s32.totalorder %s14, 3
    %p121 = scmp.ne.s32.totalorder %s116, %s118
    %p122 = scmp.eq.s32.totalorder %s14, 0
    %p123 = por %p121, %p122
    %p124 = scmp.ne.s32.totalorder %s116, %s118
    %p125 = scmp.eq.s32.totalorder %s19, 3
    %p126 = por %p124, %p125
    %p127 = scmp.ne.s32.totalorder %s118, %s119
    %p128 = scmp.eq.s32.totalorder %s19, 0
    %p129 = por %p127, %p128
    %p130 = scmp.ne.s32.totalorder %s118, %s119
    %p131 = scmp.eq.s32.totalorder %s20, 3
    %p132 = por %p130, %p131
    %p134 = scmp.ne.s32.totalorder %s119, %s133
    %p135 = scmp.eq.s32.totalorder %s20, 0
    %p136 = por %p134, %p135
    %s138 = sadd.s32 %s137, 1
    %p141 = scmp.eq.s32.totalorder %s14, 3
    %p142 = scmp.ne.s32.totalorder %s137, %s139
    %p143 = scmp.eq.s32.totalorder %s14, 0
    %p144 = por %p142, %p143
    %p145 = scmp.ne.s32.totalorder %s137, %s139
    %p146 = scmp.eq.s32.totalorder %s19, 3
    %p147 = por %p145, %p146
    %p148 = scmp.ne.s32.totalorder %s139, %s140
    %p149 = scmp.eq.s32.totalorder %s19, 0
    %p150 = por %p148, %p149
    %p151 = scmp.ne.s32.totalorder %s139, %s140
    %p152 = scmp.eq.s32.totalorder %s20, 3
    %p153 = por %p151, %p152
    %p155 = scmp.ne.s32.totalorder %s140, %s154
    %p156 = scmp.eq.s32.totalorder %s20, 0
    %p157 = por %p155, %p156
    %s159 = sadd.s32 %s158, 1
    %p162 = scmp.eq.s32.totalorder %s14, 3
    %p163 = scmp.ne.s32.totalorder %s158, %s160
    %p164 = scmp.eq.s32.totalorder %s14, 0
    %p165 = por %p163, %p164
    %p166 = scmp.ne.s32.totalorder %s158, %s160
    %p167 = scmp.eq.s32.totalorder %s19, 3
    %p168 = por %p166, %p167
    %p169 = scmp.ne.s32.totalorder %s160, %s161
    %p170 = scmp.eq.s32.totalorder %s19, 0
    %p171 = por %p169, %p170
    %p172 = scmp.ne.s32.totalorder %s160, %s161
    %p173 = scmp.eq.s32.totalorder %s20, 3
    %p174 = por %p172, %p173
    %p176 = scmp.ne.s32.totalorder %s161, %s175
    %p177 = scmp.eq.s32.totalorder %s20, 0
    %p178 = por %p176, %p177
    %s180 = sadd.s32 %s179, 1
    %p183 = scmp.eq.s32.totalorder %s14, 3
    %p184 = scmp.ne.s32.totalorder %s179, %s181
    %p185 = scmp.eq.s32.totalorder %s14, 0
    %p186 = por %p184, %p185
    %p187 = scmp.ne.s32.totalorder %s179, %s181
    %p188 = scmp.eq.s32.totalorder %s19, 3
    %p189 = por %p187, %p188
    %p190 = scmp.ne.s32.totalorder %s181, %s182
    %p191 = scmp.eq.s32.totalorder %s19, 0
    %p192 = por %p190, %p191
    %p193 = scmp.ne.s32.totalorder %s181, %s182
    %p194 = scmp.eq.s32.totalorder %s20, 3
    %p195 = por %p193, %p194
    %p197 = scmp.ne.s32.totalorder %s182, %s196
    %p198 = scmp.eq.s32.totalorder %s20, 0
    %p199 = por %p197, %p198
    %s200 = ssub.s32 %s14, %s21
    %p201 = scmp.eq.s32.totalorder %s200, 0
    %s203 = sadd.s32 %s202, 1
    %s204 = scalar_select %p201, %s202, %s203
    %p207 = pneg %p201
    %p208 = scmp.eq.s32.totalorder %s14, 3
    %p209 = por %p207, %p208
    %p210 = scmp.ne.s32.totalorder %s202, %s205
    %p211 = scmp.eq.s32.totalorder %s14, 0
    %p212 = por %p210, %p211
    %p213 = scmp.ne.s32.totalorder %s202, %s205
    %p214 = scmp.eq.s32.totalorder %s19, 3
    %p215 = por %p213, %p214
    %p216 = scmp.ne.s32.totalorder %s205, %s206
    %p217 = scmp.eq.s32.totalorder %s19, 0
    %p218 = por %p216, %p217
    %p219 = scmp.ne.s32.totalorder %s205, %s206
    %p220 = scmp.eq.s32.totalorder %s20, 3
    %p221 = por %p219, %p220
    %p223 = scmp.ne.s32.totalorder %s206, %s222
    %p224 = scmp.eq.s32.totalorder %s20, 0
    %p225 = por %p223, %p224
    %p226 = scmp.le.s32.totalorder 1, %s14
    %p227 = scmp.lt.s32.totalorder %s14, 5
    %p228 = pnand %p226, %p227
    %p229 = pneg %p228
    // Predicated region
    $region9: #{rgt_layer.1} parent=5 // pred_check
      _
    $region10: #{rgt_layer.1} parent=5 // pred_check_branch
      %231 = sbr.rel (%p228) target = $region12
    $region11: #{rgt_layer.1} parent=5 // pred_region
      %s232 = ssub.s32 %s14, 1
      // Predicated region
      $region13: #{rgt_layer.1} parent=11 // pred_check
        %p233 = pneg %p87
      $region14: #{rgt_layer.1} parent=11 // pred_check_branch
        %235 = sbr.rel (%p233) target = $region16
      $region15: #{rgt_layer.1} parent=11 // pred_region
        _
      $region16: #{rgt_layer.1} parent=11 // pred_fallthru
        _
      // Predicated region
      $region17: #{rgt_layer.1} parent=11 // pred_check
        %p236 = pneg %p108
      $region18: #{rgt_layer.1} parent=11 // pred_check_branch
        %238 = sbr.rel (%p236) target = $region20
      $region19: #{rgt_layer.1} parent=11 // pred_region
        _
      $region20: #{rgt_layer.1} parent=11 // pred_fallthru
        _
      // Predicated region
      $region21: #{rgt_layer.1} parent=11 // pred_check
        %p239 = pneg %p129
      $region22: #{rgt_layer.1} parent=11 // pred_check_branch
        %241 = sbr.rel (%p239) target = $region24
      $region23: #{rgt_layer.1} parent=11 // pred_region
        _
      $region24: #{rgt_layer.1} parent=11 // pred_fallthru
        _
      // Predicated region
      $region25: #{rgt_layer.1} parent=11 // pred_check
        %p242 = pneg %p150
      $region26: #{rgt_layer.1} parent=11 // pred_check_branch
        %244 = sbr.rel (%p242) target = $region28
      $region27: #{rgt_layer.1} parent=11 // pred_region
        _
      $region28: #{rgt_layer.1} parent=11 // pred_fallthru
        _
      // Predicated region
      $region29: #{rgt_layer.1} parent=11 // pred_check
        %p245 = pneg %p171
      $region30: #{rgt_layer.1} parent=11 // pred_check_branch
        %247 = sbr.rel (%p245) target = $region32
      $region31: #{rgt_layer.1} parent=11 // pred_region
        _
      $region32: #{rgt_layer.1} parent=11 // pred_fallthru
        _
      // Predicated region
      $region33: #{rgt_layer.1} parent=11 // pred_check
        %p248 = pneg %p192
      $region34: #{rgt_layer.1} parent=11 // pred_check_branch
        %250 = sbr.rel (%p248) target = $region36
      $region35: #{rgt_layer.1} parent=11 // pred_region
        _
      $region36: #{rgt_layer.1} parent=11 // pred_fallthru
        _
    $region12: #{rgt_layer.1} parent=5 // pred_fallthru
      _
    %p251 = scmp.lt.s32.totalorder %s14, 4
    // Predicated region
    $region37: #{rgt_layer.1} parent=5 // pred_check
      %p252 = pneg %p251
    $region38: #{rgt_layer.1} parent=5 // pred_check_branch
      %254 = sbr.rel (%p252) target = $region40
    $region39: #{rgt_layer.1} parent=5 // pred_region
      // Predicated region
      $region41: #{rgt_layer.1} parent=39 // pred_check
        %p255 = pneg %p34
      $region42: #{rgt_layer.1} parent=39 // pred_check_branch
        %257 = sbr.rel (%p255) target = $region44
      $region43: #{rgt_layer.1} parent=39 // pred_region
        %p258 = scmp.lt.s32.totalorder %s14, 3
        %s259 = scalar_select %p258, %s14, 3
        %s260 = smul.addr %s259, 8
        %s261 = smul.addr %s260, 8
        %s262 = scalar_lea.vmem %s0, %s261
      $region44: #{rgt_layer.1} parent=39 // pred_fallthru
        _
      // Predicated region
      $region45: #{rgt_layer.1} parent=39 // pred_check
        %p263 = pneg %p60
      $region46: #{rgt_layer.1} parent=39 // pred_check_branch
        %265 = sbr.rel (%p263) target = $region48
      $region47: #{rgt_layer.1} parent=39 // pred_region
        %p266 = scmp.lt.s32.totalorder %s14, 3
        %s267 = scalar_select %p266, %s14, 3
        %s268 = smul.addr %s267, 16
        %s269 = smul.addr %s268, 8
        %s270 = scalar_lea.vmem %s1, %s269
      $region48: #{rgt_layer.1} parent=39 // pred_fallthru
        _
    $region40: #{rgt_layer.1} parent=5 // pred_fallthru
      _
    %p271 = scmp.le.s32.totalorder 1, %s14
    %p272 = scmp.lt.s32.totalorder %s14, 5
    %p273 = pnand %p271, %p272
    %p274 = pneg %p273
    // Predicated region
    $region49: #{rgt_layer.1} parent=5 // pred_check
      _
    $region50: #{rgt_layer.1} parent=5 // pred_check_branch
      %276 = sbr.rel (%p273) target = $region52
    $region51: #{rgt_layer.1} parent=5 // pred_region
      %s277 = ssub.s32 %s14, 1
      %p278 = scmp.lt.s32.totalorder %s19, 3
      %s279 = scalar_select %p278, %s19, 3
      %s280 = smul.addr %s279, 8
      %s281 = smul.addr %s280, 8
      %s282 = scalar_lea.vmem %s0, %s281
      %p283 = pneg %p40
      %p284 = pneg %p37
      %p285 = scmp.lt.s32.totalorder %s19, 3
      %s286 = scalar_select %p285, %s19, 3
      %s287 = smul.addr %s286, 16
      %s288 = smul.addr %s287, 8
      %s289 = scalar_lea.vmem %s1, %s288
      %p290 = pneg %p66
      %p291 = pneg %p63
      %p292 = pneg %p87
      %p293 = pneg %p84
      %p294 = pneg %p108
      %p295 = pneg %p105
      %p296 = pneg %p129
      %p297 = pneg %p126
      %p298 = pneg %p150
      %p299 = pneg %p147
      %p300 = pneg %p171
      %p301 = pneg %p168
      %p302 = pneg %p192
      %p303 = pneg %p189
      %p304 = pneg %p218
      %p305 = pneg %p215
      %p306 = scmp.lt.s32.totalorder %s19, 3
      %s307 = scalar_select %p306, %s19, 3
      %s308 = smul.addr %s307, 8
      %s309 = smul.addr %s308, 8
      %s310 = scalar_lea.vmem %s8, %s309
      %p311 = scmp.lt.s32.totalorder %s19, 3
      %s312 = scalar_select %p311, %s19, 3
      %s313 = smul.addr %s312, 8
      %s314 = smul.addr %s313, 8
      %s315 = scalar_lea.vmem %s0, %s314
      %p316 = scmp.lt.s32.totalorder %s19, 3
      %s317 = scalar_select %p316, %s19, 3
      %s318 = smul.addr %s317, 16
      %s319 = smul.addr %s318, 8
      %s320 = scalar_lea.vmem %s1, %s319
      %p321 = scmp.lt.s32.totalorder %s19, 3
      %s322 = scalar_select %p321, %s19, 3
      %s323 = smul.addr %s322, 8
      %s324 = smul.addr %s323, 8
      %s325 = scalar_lea.vmem %s8, %s324
      %v326 = vld [vmem:[%s315] sm:$0xff]
      %v327 = vld [vmem:[%s315 + $0x8] sm:$0xff]
      %v328 = vld [vmem:[%s315 + $0x10] sm:$0xff]
      %v329 = vld [vmem:[%s315 + $0x18] sm:$0xff]
      %v330 = vld [vmem:[%s315 + $0x20] sm:$0xff]
      %v331 = vld [vmem:[%s315 + $0x28] sm:$0xff]
      %v332 = vld [vmem:[%s315 + $0x30] sm:$0xff]
      %v333 = vld [vmem:[%s315 + $0x38] sm:$0xff]
      %v334 = vld [vmem:[%s2] sm:$0xff]
      %v335 = vld [vmem:[%s2 + $0x8] sm:$0xff]
      %v336 = vld [vmem:[%s2 + $0x10] sm:$0xff]
      %v337 = vld [vmem:[%s2 + $0x18] sm:$0xff]
      %v338 = vld [vmem:[%s2 + $0x20] sm:$0xff]
      %v339 = vld [vmem:[%s2 + $0x28] sm:$0xff]
      %v340 = vld [vmem:[%s2 + $0x30] sm:$0xff]
      %v341 = vld [vmem:[%s2 + $0x38] sm:$0xff]
      %v342 = vld [vmem:[%s2 + $0x40] sm:$0xff]
      %v343 = vld [vmem:[%s2 + $0x48] sm:$0xff]
      %v344 = vld [vmem:[%s2 + $0x50] sm:$0xff]
      %v345 = vld [vmem:[%s2 + $0x58] sm:$0xff]
      %v346 = vld [vmem:[%s2 + $0x60] sm:$0xff]
      %v347 = vld [vmem:[%s2 + $0x68] sm:$0xff]
      %v348 = vld [vmem:[%s2 + $0x70] sm:$0xff]
      %v349 = vld [vmem:[%s2 + $0x78] sm:$0xff]
      %v350 = vld [vmem:[%s3] sm:$0xf]
      %v352 = vlaneseq
      %v353 = vshrl.u32 %v352, 7
      %v354 = vsub.s32 0, %v353
      %v355 = vrot.slane %v350, %v354
      %v356 = vlaneseq
      %v357 = vshrl.u32 %v356, 7
      %v358 = vsub.s32 1, %v357
      %v359 = vrot.slane %v350, %v358
      %v360 = vlaneseq
      %v361 = vshrl.u32 %v360, 7
      %v362 = vsub.s32 2, %v361
      %v363 = vrot.slane %v350, %v362
      %v364 = vlaneseq
      %v365 = vshrl.u32 %v364, 7
      %v366 = vsub.s32 3, %v365
      %v367 = vrot.slane %v350, %v366
      %vm372 = vcmask 261120
      %v374 = vsel %vm372, %v326, 0
      %v377 = vsel %vm372, %v327, 0
      %v380 = vsel %vm372, %v328, 0
      %v383 = vsel %vm372, %v329, 0
      %v386 = vsel %vm372, %v330, 0
      %v389 = vsel %vm372, %v331, 0
      %v392 = vsel %vm372, %v332, 0
      %v395 = vsel %vm372, %v333, 0
      %397 = vmatprep.subr.mxu0 %v335
      %398 = vmatpush1.msra.mxu0 %v334
      %399 = vmatprep.subr.mxu0 %v339
      %400 = vmatpush1.msra.mxu0 %v338
      %401 = vmatprep.subr.mxu0 %v343
      %402 = vmatpush1.msra.mxu0 %v342
      %403 = vmatprep.subr.mxu0 %v347
      %404 = vmatpush1.msra.mxu0 %v346
      %405 = vmatprep.subr.mxu0 0.0
      %406 = vmatpush1.msra.mxu0 0.0
      %407 = vmatprep.subr.mxu0 0.0
      %408 = vmatpush1.msra.mxu0 0.0
      %409 = vmatprep.subr.mxu0 0.0
      %410 = vmatpush1.msra.mxu0 0.0
      %411 = vmatprep.subr.mxu0 0.0
      %412 = vmatpush1.msra.mxu0 0.0
      %413 = vmatprep.subr.mxu0 0.0
      %414 = vmatpush1.msra.mxu0 0.0
      %415 = vmatprep.subr.mxu0 0.0
      %416 = vmatpush1.msra.mxu0 0.0
      %417 = vmatprep.subr.mxu0 0.0
      %418 = vmatpush1.msra.mxu0 0.0
      %419 = vmatprep.subr.mxu0 0.0
      %420 = vmatpush1.msra.mxu0 0.0
      %421 = vmatprep.subr.mxu0 0.0
      %422 = vmatpush1.msra.mxu0 0.0
      %423 = vmatprep.subr.mxu0 0.0
      %424 = vmatpush1.msra.mxu0 0.0
      %425 = vmatprep.subr.mxu0 0.0
      %426 = vmatpush1.msra.mxu0 0.0
      %427 = vmatprep.subr.mxu0 0.0
      %428 = vmatpush1.msra.mxu0 0.0
      %429 = vmatprep.subr.mxu0 0.0
      %430 = vmatpush1.msra.mxu0 0.0
      %431 = vmatprep.subr.mxu0 0.0
      %432 = vmatpush1.msra.mxu0 0.0
      %433 = vmatprep.subr.mxu0 0.0
      %434 = vmatpush1.msra.mxu0 0.0
      %435 = vmatprep.subr.mxu0 0.0
      %436 = vmatpush1.msra.mxu0 0.0
      %437 = vmatprep.subr.mxu0 0.0
      %438 = vmatpush1.msra.mxu0 0.0
      %439 = vmatprep.subr.mxu0 0.0
      %440 = vmatpush1.msra.mxu0 0.0
      %441 = vmatprep.subr.mxu0 0.0
      %442 = vmatpush1.msra.mxu0 0.0
      %443 = vmatprep.subr.mxu0 0.0
      %444 = vmatpush1.msra.mxu0 0.0
      %445 = vmatprep.subr.mxu0 0.0
      %446 = vmatpush1.msra.mxu0 0.0
      %447 = vmatprep.subr.mxu0 0.0
      %448 = vmatpush1.msra.mxu0 0.0
      %449 = vmatprep.subr.mxu0 0.0
      %450 = vmatpush1.msra.mxu0 0.0
      %451 = vmatprep.subr.mxu0 0.0
      %452 = vmatpush1.msra.mxu0 0.0
      %453 = vmatprep.subr.mxu0 0.0
      %454 = vmatpush1.msra.mxu0 0.0
      %455 = vmatprep.subr.mxu0 0.0
      %456 = vmatpush1.msra.mxu0 0.0
      %457 = vmatprep.subr.mxu0 0.0
      %458 = vmatpush1.msra.mxu0 0.0
      %459 = vmatprep.subr.mxu0 0.0
      %460 = vmatpush1.msra.mxu0 0.0
      %461 = vmatprep.mubr.f32.mxu0 0.0
      %462 = vmatmul.mubr.f32.gmra.mrb[0].mxu0 %v374
      %v463 = vpop.f32.mrb[0].mxu0
      %v464 = vadd.f32 %v355, %v463
      %v465 = vpop.f32.mrb[0].mxu0
      %v466 = vadd.f32 %v359, %v465
      %467 = vmatprep.mubr.f32.mxu0 0.0
      %468 = vmatmul.mubr.f32.gmra.mrb[0].mxu0 %v377
      %v469 = vpop.f32.mrb[0].mxu0
      %v470 = vadd.f32 %v355, %v469
      %v471 = vpop.f32.mrb[0].mxu0
      %v472 = vadd.f32 %v359, %v471
      %473 = vmatprep.mubr.f32.mxu0 0.0
      %474 = vmatmul.mubr.f32.gmra.mrb[0].mxu0 %v380
      %v475 = vpop.f32.mrb[0].mxu0
      %v476 = vadd.f32 %v355, %v475
      %v477 = vpop.f32.mrb[0].mxu0
      %v478 = vadd.f32 %v359, %v477
      %479 = vmatprep.mubr.f32.mxu0 0.0
      %480 = vmatmul.mubr.f32.gmra.mrb[0].mxu0 %v383
      %v481 = vpop.f32.mrb[0].mxu0
      %v482 = vadd.f32 %v355, %v481
      %v483 = vpop.f32.mrb[0].mxu0
      %v484 = vadd.f32 %v359, %v483
      %485 = vmatprep.mubr.f32.mxu0 0.0
      %486 = vmatmul.mubr.f32.gmra.mrb[0].mxu0 %v386
      %v487 = vpop.f32.mrb[0].mxu0
      %v488 = vadd.f32 %v355, %v487
      %v489 = vpop.f32.mrb[0].mxu0
      %v490 = vadd.f32 %v359, %v489
      %491 = vmatprep.mubr.f32.mxu0 0.0
      %492 = vmatmul.mubr.f32.gmra.mrb[0].mxu0 %v389
      %v493 = vpop.f32.mrb[0].mxu0
      %v494 = vadd.f32 %v355, %v493
      %v495 = vpop.f32.mrb[0].mxu0
      %v496 = vadd.f32 %v359, %v495
      %497 = vmatprep.mubr.f32.mxu0 0.0
      %498 = vmatmul.mubr.f32.gmra.mrb[0].mxu0 %v392
      %v499 = vpop.f32.mrb[0].mxu0
      %v500 = vadd.f32 %v355, %v499
      %v501 = vpop.f32.mrb[0].mxu0
      %v502 = vadd.f32 %v359, %v501
      %503 = vmatprep.mubr.f32.mxu0 0.0
      %504 = vmatmul.mubr.f32.gmra.mrb[0].mxu0 %v395
      %v505 = vpop.f32.mrb[0].mxu0
      %v506 = vadd.f32 %v355, %v505
      %v507 = vpop.f32.mrb[0].mxu0
      %v508 = vadd.f32 %v359, %v507
      %509 = vdwg.mxu0
      %510 = vmatprep.subr.mxu0 %v337
      %511 = vmatpush1.msra.mxu0 %v336
      %512 = vmatprep.subr.mxu0 %v341
      %513 = vmatpush1.msra.mxu0 %v340
      %514 = vmatprep.subr.mxu0 %v345
      %515 = vmatpush1.msra.mxu0 %v344
      %516 = vmatprep.subr.mxu0 %v349
      %517 = vmatpush1.msra.mxu0 %v348
      %518 = vmatprep.subr.mxu0 0.0
      %519 = vmatpush1.msra.mxu0 0.0
      %520 = vmatprep.subr.mxu0 0.0
      %521 = vmatpush1.msra.mxu0 0.0
      %522 = vmatprep.subr.mxu0 0.0
      %523 = vmatpush1.msra.mxu0 0.0
      %524 = vmatprep.subr.mxu0 0.0
      %525 = vmatpush1.msra.mxu0 0.0
      %526 = vmatprep.subr.mxu0 0.0
      %527 = vmatpush1.msra.mxu0 0.0
      %528 = vmatprep.subr.mxu0 0.0
      %529 = vmatpush1.msra.mxu0 0.0
      %530 = vmatprep.subr.mxu0 0.0
      %531 = vmatpush1.msra.mxu0 0.0
      %532 = vmatprep.subr.mxu0 0.0
      %533 = vmatpush1.msra.mxu0 0.0
      %534 = vmatprep.subr.mxu0 0.0
      %535 = vmatpush1.msra.mxu0 0.0
      %536 = vmatprep.subr.mxu0 0.0
      %537 = vmatpush1.msra.mxu0 0.0
      %538 = vmatprep.subr.mxu0 0.0
      %539 = vmatpush1.msra.mxu0 0.0
      %540 = vmatprep.subr.mxu0 0.0
      %541 = vmatpush1.msra.mxu0 0.0
      %542 = vmatprep.subr.mxu0 0.0
      %543 = vmatpush1.msra.mxu0 0.0
      %544 = vmatprep.subr.mxu0 0.0
      %545 = vmatpush1.msra.mxu0 0.0
      %546 = vmatprep.subr.mxu0 0.0
      %547 = vmatpush1.msra.mxu0 0.0
      %548 = vmatprep.subr.mxu0 0.0
      %549 = vmatpush1.msra.mxu0 0.0
      %550 = vmatprep.subr.mxu0 0.0
      %551 = vmatpush1.msra.mxu0 0.0
      %552 = vmatprep.subr.mxu0 0.0
      %553 = vmatpush1.msra.mxu0 0.0
      %554 = vmatprep.subr.mxu0 0.0
      %555 = vmatpush1.msra.mxu0 0.0
      %556 = vmatprep.subr.mxu0 0.0
      %557 = vmatpush1.msra.mxu0 0.0
      %558 = vmatprep.subr.mxu0 0.0
      %559 = vmatpush1.msra.mxu0 0.0
      %560 = vmatprep.subr.mxu0 0.0
      %561 = vmatpush1.msra.mxu0 0.0
      %562 = vmatprep.subr.mxu0 0.0
      %563 = vmatpush1.msra.mxu0 0.0
      %564 = vmatprep.subr.mxu0 0.0
      %565 = vmatpush1.msra.mxu0 0.0
      %566 = vmatprep.subr.mxu0 0.0
      %567 = vmatpush1.msra.mxu0 0.0
      %568 = vmatprep.subr.mxu0 0.0
      %569 = vmatpush1.msra.mxu0 0.0
      %570 = vmatprep.subr.mxu0 0.0
      %571 = vmatpush1.msra.mxu0 0.0
      %572 = vmatprep.subr.mxu0 0.0
      %573 = vmatpush1.msra.mxu0 0.0
      %574 = vmatprep.mubr.f32.mxu0 0.0
      %575 = vmatmul.mubr.f32.gmra.mrb[0].mxu0 %v374
      %v576 = vpop.f32.mrb[0].mxu0
      %v577 = vadd.f32 %v363, %v576
      %v578 = vpop.f32.mrb[0].mxu0
      %v579 = vadd.f32 %v367, %v578
      %580 = vmatprep.mubr.f32.mxu0 0.0
      %581 = vmatmul.mubr.f32.gmra.mrb[0].mxu0 %v377
      %v582 = vpop.f32.mrb[0].mxu0
      %v583 = vadd.f32 %v363, %v582
      %v584 = vpop.f32.mrb[0].mxu0
      %v585 = vadd.f32 %v367, %v584
      %586 = vmatprep.mubr.f32.mxu0 0.0
      %587 = vmatmul.mubr.f32.gmra.mrb[0].mxu0 %v380
      %v588 = vpop.f32.mrb[0].mxu0
      %v589 = vadd.f32 %v363, %v588
      %v590 = vpop.f32.mrb[0].mxu0
      %v591 = vadd.f32 %v367, %v590
      %592 = vmatprep.mubr.f32.mxu0 0.0
      %593 = vmatmul.mubr.f32.gmra.mrb[0].mxu0 %v383
      %v594 = vpop.f32.mrb[0].mxu0
      %v595 = vadd.f32 %v363, %v594
      %v596 = vpop.f32.mrb[0].mxu0
      %v597 = vadd.f32 %v367, %v596
      %598 = vmatprep.mubr.f32.mxu0 0.0
      %599 = vmatmul.mubr.f32.gmra.mrb[0].mxu0 %v386
      %v600 = vpop.f32.mrb[0].mxu0
      %v601 = vadd.f32 %v363, %v600
      %v602 = vpop.f32.mrb[0].mxu0
      %v603 = vadd.f32 %v367, %v602
      %604 = vmatprep.mubr.f32.mxu0 0.0
      %605 = vmatmul.mubr.f32.gmra.mrb[0].mxu0 %v389
      %v606 = vpop.f32.mrb[0].mxu0
      %v607 = vadd.f32 %v363, %v606
      %v608 = vpop.f32.mrb[0].mxu0
      %v609 = vadd.f32 %v367, %v608
      %610 = vmatprep.mubr.f32.mxu0 0.0
      %611 = vmatmul.mubr.f32.gmra.mrb[0].mxu0 %v392
      %v612 = vpop.f32.mrb[0].mxu0
      %v613 = vadd.f32 %v363, %v612
      %v614 = vpop.f32.mrb[0].mxu0
      %v615 = vadd.f32 %v367, %v614
      %616 = vmatprep.mubr.f32.mxu0 0.0
      %617 = vmatmul.mubr.f32.gmra.mrb[0].mxu0 %v395
      %v618 = vpop.f32.mrb[0].mxu0
      %v619 = vadd.f32 %v363, %v618
      %v620 = vpop.f32.mrb[0].mxu0
      %v621 = vadd.f32 %v367, %v620
      %622 = vdwg.mxu0
      %v623 = vld [vmem:[%s320] sm:$0xff]
      %v624 = vld [vmem:[%s320 + $0x8] sm:$0xff]
      %v625 = vld [vmem:[%s320 + $0x10] sm:$0xff]
      %v626 = vld [vmem:[%s320 + $0x18] sm:$0xff]
      %v627 = vld [vmem:[%s320 + $0x20] sm:$0xff]
      %v628 = vld [vmem:[%s320 + $0x28] sm:$0xff]
      %v629 = vld [vmem:[%s320 + $0x30] sm:$0xff]
      %v630 = vld [vmem:[%s320 + $0x38] sm:$0xff]
      %639 = vrot.lane.b32.xlu0 %v464, 64
      %v640 = vpop.permute.xlu0 %639
      %641 = vrot.lane.b32.xlu0 %v470, 64
      %v642 = vpop.permute.xlu0 %641
      %643 = vrot.lane.b32.xlu0 %v476, 64
      %v644 = vpop.permute.xlu0 %643
      %645 = vrot.lane.b32.xlu0 %v482, 64
      %v646 = vpop.permute.xlu0 %645
      %647 = vrot.lane.b32.xlu0 %v488, 64
      %v648 = vpop.permute.xlu0 %647
      %649 = vrot.lane.b32.xlu0 %v494, 64
      %v650 = vpop.permute.xlu0 %649
      %651 = vrot.lane.b32.xlu0 %v500, 64
      %v652 = vpop.permute.xlu0 %651
      %653 = vrot.lane.b32.xlu0 %v506, 64
      %v654 = vpop.permute.xlu0 %653
      %v655 = vsel %vm372, %v464, 0
      %v657 = vsel %vm372, %v470, 0
      %v659 = vsel %vm372, %v476, 0
      %v661 = vsel %vm372, %v482, 0
      %v663 = vsel %vm372, %v488, 0
      %v665 = vsel %vm372, %v494, 0
      %v667 = vsel %vm372, %v500, 0
      %v669 = vsel %vm372, %v506, 0
      %v671 = vsel %vm372, %v640, 0
      %v673 = vsel %vm372, %v642, 0
      %v675 = vsel %vm372, %v644, 0
      %v677 = vsel %vm372, %v646, 0
      %v679 = vsel %vm372, %v648, 0
      %v681 = vsel %vm372, %v650, 0
      %v683 = vsel %vm372, %v652, 0
      %v685 = vsel %vm372, %v654, 0
      %687 = vmatprep.subr.mxu0 0.0
      %688 = vmatpush1.xpose.msra.mxu0 %v671
      %689 = vmatprep.subr.mxu0 0.0
      %690 = vmatpush1.xpose.msra.mxu0 %v673
      %691 = vmatprep.subr.mxu0 0.0
      %692 = vmatpush1.xpose.msra.mxu0 %v675
      %693 = vmatprep.subr.mxu0 0.0
      %694 = vmatpush1.xpose.msra.mxu0 %v677
      %695 = vmatprep.subr.mxu0 0.0
      %696 = vmatpush1.xpose.msra.mxu0 %v679
      %697 = vmatprep.subr.mxu0 0.0
      %698 = vmatpush1.xpose.msra.mxu0 %v681
      %699 = vmatprep.subr.mxu0 0.0
      %700 = vmatpush1.xpose.msra.mxu0 %v683
      %701 = vmatprep.subr.mxu0 0.0
      %702 = vmatpush1.xpose.msra.mxu0 %v685
      %703 = vmatprep.subr.mxu0 0.0
      %704 = vmatpush1.xpose.msra.mxu0 0.0
      %705 = vmatprep.subr.mxu0 0.0
      %706 = vmatpush1.xpose.msra.mxu0 0.0
      %707 = vmatprep.subr.mxu0 0.0
      %708 = vmatpush1.xpose.msra.mxu0 0.0
      %709 = vmatprep.subr.mxu0 0.0
      %710 = vmatpush1.xpose.msra.mxu0 0.0
      %711 = vmatprep.subr.mxu0 0.0
      %712 = vmatpush1.xpose.msra.mxu0 0.0
      %713 = vmatprep.subr.mxu0 0.0
      %714 = vmatpush1.xpose.msra.mxu0 0.0
      %715 = vmatprep.subr.mxu0 0.0
      %716 = vmatpush1.xpose.msra.mxu0 0.0
      %717 = vmatprep.subr.mxu0 0.0
      %718 = vmatpush1.xpose.msra.mxu0 0.0
      %719 = vmatprep.subr.mxu0 0.0
      %720 = vmatpush1.xpose.msra.mxu0 0.0
      %721 = vmatprep.subr.mxu0 0.0
      %722 = vmatpush1.xpose.msra.mxu0 0.0
      %723 = vmatprep.subr.mxu0 0.0
      %724 = vmatpush1.xpose.msra.mxu0 0.0
      %725 = vmatprep.subr.mxu0 0.0
      %726 = vmatpush1.xpose.msra.mxu0 0.0
      %727 = vmatprep.subr.mxu0 0.0
      %728 = vmatpush1.xpose.msra.mxu0 0.0
      %729 = vmatprep.subr.mxu0 0.0
      %730 = vmatpush1.xpose.msra.mxu0 0.0
      %731 = vmatprep.subr.mxu0 0.0
      %732 = vmatpush1.xpose.msra.mxu0 0.0
      %733 = vmatprep.subr.mxu0 0.0
      %734 = vmatpush1.xpose.msra.mxu0 0.0
      %735 = vmatprep.subr.mxu0 0.0
      %736 = vmatpush1.xpose.msra.mxu0 0.0
      %737 = vmatprep.subr.mxu0 0.0
      %738 = vmatpush1.xpose.msra.mxu0 0.0
      %739 = vmatprep.subr.mxu0 0.0
      %740 = vmatpush1.xpose.msra.mxu0 0.0
      %741 = vmatprep.subr.mxu0 0.0
      %742 = vmatpush1.xpose.msra.mxu0 0.0
      %743 = vmatprep.subr.mxu0 0.0
      %744 = vmatpush1.xpose.msra.mxu0 0.0
      %745 = vmatprep.subr.mxu0 0.0
      %746 = vmatpush1.xpose.msra.mxu0 0.0
      %747 = vmatprep.subr.mxu0 0.0
      %748 = vmatpush1.xpose.msra.mxu0 0.0
      %749 = vmatprep.subr.mxu0 0.0
      %750 = vmatpush1.xpose.msra.mxu0 0.0
      %751 = vmatprep.mubr.f32.mxu0 0.0
      %752 = vmatmul.mubr.f32.gmra.mrb[0].mxu0 %v655
      %v753 = vpop.f32.mrb[0].mxu0
      %v754 = vadd.f32 0.0, %v753
      %v755 = vpop.f32.mrb[0].mxu0
      %756 = vmatprep.mubr.f32.mxu0 0.0
      %757 = vmatmul.mubr.f32.gmra.mrb[0].mxu0 %v657
      %v758 = vpop.f32.mrb[0].mxu0
      %v759 = vadd.f32 0.0, %v758
      %v760 = vpop.f32.mrb[0].mxu0
      %761 = vmatprep.mubr.f32.mxu0 0.0
      %762 = vmatmul.mubr.f32.gmra.mrb[0].mxu0 %v659
      %v763 = vpop.f32.mrb[0].mxu0
      %v764 = vadd.f32 0.0, %v763
      %v765 = vpop.f32.mrb[0].mxu0
      %766 = vmatprep.mubr.f32.mxu0 0.0
      %767 = vmatmul.mubr.f32.gmra.mrb[0].mxu0 %v661
      %v768 = vpop.f32.mrb[0].mxu0
      %v769 = vadd.f32 0.0, %v768
      %v770 = vpop.f32.mrb[0].mxu0
      %771 = vmatprep.mubr.f32.mxu0 0.0
      %772 = vmatmul.mubr.f32.gmra.mrb[0].mxu0 %v663
      %v773 = vpop.f32.mrb[0].mxu0
      %v774 = vadd.f32 0.0, %v773
      %v775 = vpop.f32.mrb[0].mxu0
      %776 = vmatprep.mubr.f32.mxu0 0.0
      %777 = vmatmul.mubr.f32.gmra.mrb[0].mxu0 %v665
      %v778 = vpop.f32.mrb[0].mxu0
      %v779 = vadd.f32 0.0, %v778
      %v780 = vpop.f32.mrb[0].mxu0
      %781 = vmatprep.mubr.f32.mxu0 0.0
      %782 = vmatmul.mubr.f32.gmra.mrb[0].mxu0 %v667
      %v783 = vpop.f32.mrb[0].mxu0
      %v784 = vadd.f32 0.0, %v783
      %v785 = vpop.f32.mrb[0].mxu0
      %786 = vmatprep.mubr.f32.mxu0 0.0
      %787 = vmatmul.mubr.f32.gmra.mrb[0].mxu0 %v669
      %v788 = vpop.f32.mrb[0].mxu0
      %v789 = vadd.f32 0.0, %v788
      %v790 = vpop.f32.mrb[0].mxu0
      %791 = vdwg.mxu0
      %v792 = vmul.f32 %v754, 0.17677669
      %v793 = vmul.f32 %v759, 0.17677669
      %v794 = vmul.f32 %v764, 0.17677669
      %v795 = vmul.f32 %v769, 0.17677669
      %v796 = vmul.f32 %v774, 0.17677669
      %v797 = vmul.f32 %v779, 0.17677669
      %v798 = vmul.f32 %v784, 0.17677669
      %v799 = vmul.f32 %v789, 0.17677669
      %800 = vrot.lane.b32.xlu0 %v464, 96
      %v801 = vpop.permute.xlu0 %800
      %802 = vrot.lane.b32.xlu0 %v470, 96
      %v803 = vpop.permute.xlu0 %802
      %804 = vrot.lane.b32.xlu0 %v476, 96
      %v805 = vpop.permute.xlu0 %804
      %806 = vrot.lane.b32.xlu0 %v482, 96
      %v807 = vpop.permute.xlu0 %806
      %808 = vrot.lane.b32.xlu0 %v488, 96
      %v809 = vpop.permute.xlu0 %808
      %810 = vrot.lane.b32.xlu0 %v494, 96
      %v811 = vpop.permute.xlu0 %810
      %812 = vrot.lane.b32.xlu0 %v500, 96
      %v813 = vpop.permute.xlu0 %812
      %814 = vrot.lane.b32.xlu0 %v506, 96
      %v815 = vpop.permute.xlu0 %814
      %816 = vrot.lane.b32.xlu0 %v464, 32
      %v817 = vpop.permute.xlu0 %816
      %818 = vrot.lane.b32.xlu0 %v470, 32
      %v819 = vpop.permute.xlu0 %818
      %820 = vrot.lane.b32.xlu0 %v476, 32
      %v821 = vpop.permute.xlu0 %820
      %822 = vrot.lane.b32.xlu0 %v482, 32
      %v823 = vpop.permute.xlu0 %822
      %824 = vrot.lane.b32.xlu0 %v488, 32
      %v825 = vpop.permute.xlu0 %824
      %826 = vrot.lane.b32.xlu0 %v494, 32
      %v827 = vpop.permute.xlu0 %826
      %828 = vrot.lane.b32.xlu0 %v500, 32
      %v829 = vpop.permute.xlu0 %828
      %830 = vrot.lane.b32.xlu0 %v506, 32
      %v831 = vpop.permute.xlu0 %830
      %v832 = vsel %vm372, %v801, 0
      %v834 = vsel %vm372, %v803, 0
      %v836 = vsel %vm372, %v805, 0
      %v838 = vsel %vm372, %v807, 0
      %v840 = vsel %vm372, %v809, 0
      %v842 = vsel %vm372, %v811, 0
      %v844 = vsel %vm372, %v813, 0
      %v846 = vsel %vm372, %v815, 0
      %v848 = vsel %vm372, %v817, 0
      %v850 = vsel %vm372, %v819, 0
      %v852 = vsel %vm372, %v821, 0
      %v854 = vsel %vm372, %v823, 0
      %v856 = vsel %vm372, %v825, 0
      %v858 = vsel %vm372, %v827, 0
      %v860 = vsel %vm372, %v829, 0
      %v862 = vsel %vm372, %v831, 0
      %864 = vmatprep.subr.mxu0 0.0
      %865 = vmatpush1.xpose.msra.mxu0 %v848
      %866 = vmatprep.subr.mxu0 0.0
      %867 = vmatpush1.xpose.msra.mxu0 %v850
      %868 = vmatprep.subr.mxu0 0.0
      %869 = vmatpush1.xpose.msra.mxu0 %v852
      %870 = vmatprep.subr.mxu0 0.0
      %871 = vmatpush1.xpose.msra.mxu0 %v854
      %872 = vmatprep.subr.mxu0 0.0
      %873 = vmatpush1.xpose.msra.mxu0 %v856
      %874 = vmatprep.subr.mxu0 0.0
      %875 = vmatpush1.xpose.msra.mxu0 %v858
      %876 = vmatprep.subr.mxu0 0.0
      %877 = vmatpush1.xpose.msra.mxu0 %v860
      %878 = vmatprep.subr.mxu0 0.0
      %879 = vmatpush1.xpose.msra.mxu0 %v862
      %880 = vmatprep.subr.mxu0 0.0
      %881 = vmatpush1.xpose.msra.mxu0 0.0
      %882 = vmatprep.subr.mxu0 0.0
      %883 = vmatpush1.xpose.msra.mxu0 0.0
      %884 = vmatprep.subr.mxu0 0.0
      %885 = vmatpush1.xpose.msra.mxu0 0.0
      %886 = vmatprep.subr.mxu0 0.0
      %887 = vmatpush1.xpose.msra.mxu0 0.0
      %888 = vmatprep.subr.mxu0 0.0
      %889 = vmatpush1.xpose.msra.mxu0 0.0
      %890 = vmatprep.subr.mxu0 0.0
      %891 = vmatpush1.xpose.msra.mxu0 0.0
      %892 = vmatprep.subr.mxu0 0.0
      %893 = vmatpush1.xpose.msra.mxu0 0.0
      %894 = vmatprep.subr.mxu0 0.0
      %895 = vmatpush1.xpose.msra.mxu0 0.0
      %896 = vmatprep.subr.mxu0 0.0
      %897 = vmatpush1.xpose.msra.mxu0 0.0
      %898 = vmatprep.subr.mxu0 0.0
      %899 = vmatpush1.xpose.msra.mxu0 0.0
      %900 = vmatprep.subr.mxu0 0.0
      %901 = vmatpush1.xpose.msra.mxu0 0.0
      %902 = vmatprep.subr.mxu0 0.0
      %903 = vmatpush1.xpose.msra.mxu0 0.0
      %904 = vmatprep.subr.mxu0 0.0
      %905 = vmatpush1.xpose.msra.mxu0 0.0
      %906 = vmatprep.subr.mxu0 0.0
      %907 = vmatpush1.xpose.msra.mxu0 0.0
      %908 = vmatprep.subr.mxu0 0.0
      %909 = vmatpush1.xpose.msra.mxu0 0.0
      %910 = vmatprep.subr.mxu0 0.0
      %911 = vmatpush1.xpose.msra.mxu0 0.0
      %912 = vmatprep.subr.mxu0 0.0
      %913 = vmatpush1.xpose.msra.mxu0 0.0
      %914 = vmatprep.subr.mxu0 0.0
      %915 = vmatpush1.xpose.msra.mxu0 0.0
      %916 = vmatprep.subr.mxu0 0.0
      %917 = vmatpush1.xpose.msra.mxu0 0.0
      %918 = vmatprep.subr.mxu0 0.0
      %919 = vmatpush1.xpose.msra.mxu0 0.0
      %920 = vmatprep.subr.mxu0 0.0
      %921 = vmatpush1.xpose.msra.mxu0 0.0
      %922 = vmatprep.subr.mxu0 0.0
      %923 = vmatpush1.xpose.msra.mxu0 0.0
      %924 = vmatprep.subr.mxu0 0.0
      %925 = vmatpush1.xpose.msra.mxu0 0.0
      %926 = vmatprep.subr.mxu0 0.0
      %927 = vmatpush1.xpose.msra.mxu0 0.0
      %928 = vmatprep.mubr.f32.mxu0 0.0
      %929 = vmatmul.mubr.f32.gmra.mrb[0].mxu0 %v832
      %v930 = vpop.f32.mrb[0].mxu0
      %v931 = vadd.f32 0.0, %v930
      %v932 = vpop.f32.mrb[0].mxu0
      %933 = vmatprep.mubr.f32.mxu0 0.0
      %934 = vmatmul.mubr.f32.gmra.mrb[0].mxu0 %v834
      %v935 = vpop.f32.mrb[0].mxu0
      %v936 = vadd.f32 0.0, %v935
      %v937 = vpop.f32.mrb[0].mxu0
      %938 = vmatprep.mubr.f32.mxu0 0.0
      %939 = vmatmul.mubr.f32.gmra.mrb[0].mxu0 %v836
      %v940 = vpop.f32.mrb[0].mxu0
      %v941 = vadd.f32 0.0, %v940
      %v942 = vpop.f32.mrb[0].mxu0
      %943 = vmatprep.mubr.f32.mxu0 0.0
      %944 = vmatmul.mubr.f32.gmra.mrb[0].mxu0 %v838
      %v945 = vpop.f32.mrb[0].mxu0
      %v946 = vadd.f32 0.0, %v945
      %v947 = vpop.f32.mrb[0].mxu0
      %948 = vmatprep.mubr.f32.mxu0 0.0
      %949 = vmatmul.mubr.f32.gmra.mrb[0].mxu0 %v840
      %v950 = vpop.f32.mrb[0].mxu0
      %v951 = vadd.f32 0.0, %v950
      %v952 = vpop.f32.mrb[0].mxu0
      %953 = vmatprep.mubr.f32.mxu0 0.0
      %954 = vmatmul.mubr.f32.gmra.mrb[0].mxu0 %v842
      %v955 = vpop.f32.mrb[0].mxu0
      %v956 = vadd.f32 0.0, %v955
      %v957 = vpop.f32.mrb[0].mxu0
      %958 = vmatprep.mubr.f32.mxu0 0.0
      %959 = vmatmul.mubr.f32.gmra.mrb[0].mxu0 %v844
      %v960 = vpop.f32.mrb[0].mxu0
      %v961 = vadd.f32 0.0, %v960
      %v962 = vpop.f32.mrb[0].mxu0
      %963 = vmatprep.mubr.f32.mxu0 0.0
      %964 = vmatmul.mubr.f32.gmra.mrb[0].mxu0 %v846
      %v965 = vpop.f32.mrb[0].mxu0
      %v966 = vadd.f32 0.0, %v965
      %v967 = vpop.f32.mrb[0].mxu0
      %968 = vdwg.mxu0
      %v969 = vmul.f32 %v931, 0.17677669
      %v970 = vmul.f32 %v936, 0.17677669
      %v971 = vmul.f32 %v941, 0.17677669
      %v972 = vmul.f32 %v946, 0.17677669
      %v973 = vmul.f32 %v951, 0.17677669
      %v974 = vmul.f32 %v956, 0.17677669
      %v975 = vmul.f32 %v961, 0.17677669
      %v976 = vmul.f32 %v966, 0.17677669
      %s977 = scalar_lea.vmem %s320, 64
      %v978 = vld [vmem:[%s977] sm:$0xff]
      %v979 = vld [vmem:[%s977 + $0x8] sm:$0xff]
      %v980 = vld [vmem:[%s977 + $0x10] sm:$0xff]
      %v981 = vld [vmem:[%s977 + $0x18] sm:$0xff]
      %v982 = vld [vmem:[%s977 + $0x20] sm:$0xff]
      %v983 = vld [vmem:[%s977 + $0x28] sm:$0xff]
      %v984 = vld [vmem:[%s977 + $0x30] sm:$0xff]
      %v985 = vld [vmem:[%s977 + $0x38] sm:$0xff]
      %994 = vrot.lane.b32.xlu0 %v466, 64
      %v995 = vpop.permute.xlu0 %994
      %996 = vrot.lane.b32.xlu0 %v472, 64
      %v997 = vpop.permute.xlu0 %996
      %998 = vrot.lane.b32.xlu0 %v478, 64
      %v999 = vpop.permute.xlu0 %998
      %1000 = vrot.lane.b32.xlu0 %v484, 64
      %v1001 = vpop.permute.xlu0 %1000
      %1002 = vrot.lane.b32.xlu0 %v490, 64
      %v1003 = vpop.permute.xlu0 %1002
      %1004 = vrot.lane.b32.xlu0 %v496, 64
      %v1005 = vpop.permute.xlu0 %1004
      %1006 = vrot.lane.b32.xlu0 %v502, 64
      %v1007 = vpop.permute.xlu0 %1006
      %1008 = vrot.lane.b32.xlu0 %v508, 64
      %v1009 = vpop.permute.xlu0 %1008
      %v1010 = vsel %vm372, %v995, 0
      %v1012 = vsel %vm372, %v997, 0
      %v1014 = vsel %vm372, %v999, 0
      %v1016 = vsel %vm372, %v1001, 0
      %v1018 = vsel %vm372, %v1003, 0
      %v1020 = vsel %vm372, %v1005, 0
      %v1022 = vsel %vm372, %v1007, 0
      %v1024 = vsel %vm372, %v1009, 0
      %v1027 = vsel %vm372, %v577, 0
      %v1030 = vsel %vm372, %v583, 0
      %v1033 = vsel %vm372, %v589, 0
      %v1036 = vsel %vm372, %v595, 0
      %v1039 = vsel %vm372, %v601, 0
      %v1042 = vsel %vm372, %v607, 0
      %v1045 = vsel %vm372, %v613, 0
      %v1048 = vsel %vm372, %v619, 0
      %1050 = vmatprep.subr.mxu0 0.0
      %1051 = vmatpush1.xpose.msra.mxu0 %v1027
      %1052 = vmatprep.subr.mxu0 0.0
      %1053 = vmatpush1.xpose.msra.mxu0 %v1030
      %1054 = vmatprep.subr.mxu0 0.0
      %1055 = vmatpush1.xpose.msra.mxu0 %v1033
      %1056 = vmatprep.subr.mxu0 0.0
      %1057 = vmatpush1.xpose.msra.mxu0 %v1036
      %1058 = vmatprep.subr.mxu0 0.0
      %1059 = vmatpush1.xpose.msra.mxu0 %v1039
      %1060 = vmatprep.subr.mxu0 0.0
      %1061 = vmatpush1.xpose.msra.mxu0 %v1042
      %1062 = vmatprep.subr.mxu0 0.0
      %1063 = vmatpush1.xpose.msra.mxu0 %v1045
      %1064 = vmatprep.subr.mxu0 0.0
      %1065 = vmatpush1.xpose.msra.mxu0 %v1048
      %1066 = vmatprep.subr.mxu0 0.0
      %1067 = vmatpush1.xpose.msra.mxu0 0.0
      %1068 = vmatprep.subr.mxu0 0.0
      %1069 = vmatpush1.xpose.msra.mxu0 0.0
      %1070 = vmatprep.subr.mxu0 0.0
      %1071 = vmatpush1.xpose.msra.mxu0 0.0
      %1072 = vmatprep.subr.mxu0 0.0
      %1073 = vmatpush1.xpose.msra.mxu0 0.0
      %1074 = vmatprep.subr.mxu0 0.0
      %1075 = vmatpush1.xpose.msra.mxu0 0.0
      %1076 = vmatprep.subr.mxu0 0.0
      %1077 = vmatpush1.xpose.msra.mxu0 0.0
      %1078 = vmatprep.subr.mxu0 0.0
      %1079 = vmatpush1.xpose.msra.mxu0 0.0
      %1080 = vmatprep.subr.mxu0 0.0
      %1081 = vmatpush1.xpose.msra.mxu0 0.0
      %1082 = vmatprep.subr.mxu0 0.0
      %1083 = vmatpush1.xpose.msra.mxu0 0.0
      %1084 = vmatprep.subr.mxu0 0.0
      %1085 = vmatpush1.xpose.msra.mxu0 0.0
      %1086 = vmatprep.subr.mxu0 0.0
      %1087 = vmatpush1.xpose.msra.mxu0 0.0
      %1088 = vmatprep.subr.mxu0 0.0
      %1089 = vmatpush1.xpose.msra.mxu0 0.0
      %1090 = vmatprep.subr.mxu0 0.0
      %1091 = vmatpush1.xpose.msra.mxu0 0.0
      %1092 = vmatprep.subr.mxu0 0.0
      %1093 = vmatpush1.xpose.msra.mxu0 0.0
      %1094 = vmatprep.subr.mxu0 0.0
      %1095 = vmatpush1.xpose.msra.mxu0 0.0
      %1096 = vmatprep.subr.mxu0 0.0
      %1097 = vmatpush1.xpose.msra.mxu0 0.0
      %1098 = vmatprep.subr.mxu0 0.0
      %1099 = vmatpush1.xpose.msra.mxu0 0.0
      %1100 = vmatprep.subr.mxu0 0.0
      %1101 = vmatpush1.xpose.msra.mxu0 0.0
      %1102 = vmatprep.subr.mxu0 0.0
      %1103 = vmatpush1.xpose.msra.mxu0 0.0
      %1104 = vmatprep.subr.mxu0 0.0
      %1105 = vmatpush1.xpose.msra.mxu0 0.0
      %1106 = vmatprep.subr.mxu0 0.0
      %1107 = vmatpush1.xpose.msra.mxu0 0.0
      %1108 = vmatprep.subr.mxu0 0.0
      %1109 = vmatpush1.xpose.msra.mxu0 0.0
      %1110 = vmatprep.subr.mxu0 0.0
      %1111 = vmatpush1.xpose.msra.mxu0 0.0
      %1112 = vmatprep.subr.mxu0 0.0
      %1113 = vmatpush1.xpose.msra.mxu0 0.0
      %1114 = vmatprep.mubr.f32.mxu0 0.0
      %1115 = vmatmul.mubr.f32.gmra.mrb[0].mxu0 %v1010
      %v1116 = vpop.f32.mrb[0].mxu0
      %v1117 = vadd.f32 0.0, %v1116
      %v1118 = vpop.f32.mrb[0].mxu0
      %1119 = vmatprep.mubr.f32.mxu0 0.0
      %1120 = vmatmul.mubr.f32.gmra.mrb[0].mxu0 %v1012
      %v1121 = vpop.f32.mrb[0].mxu0
      %v1122 = vadd.f32 0.0, %v1121
      %v1123 = vpop.f32.mrb[0].mxu0
      %1124 = vmatprep.mubr.f32.mxu0 0.0
      %1125 = vmatmul.mubr.f32.gmra.mrb[0].mxu0 %v1014
      %v1126 = vpop.f32.mrb[0].mxu0
      %v1127 = vadd.f32 0.0, %v1126
      %v1128 = vpop.f32.mrb[0].mxu0
      %1129 = vmatprep.mubr.f32.mxu0 0.0
      %1130 = vmatmul.mubr.f32.gmra.mrb[0].mxu0 %v1016
      %v1131 = vpop.f32.mrb[0].mxu0
      %v1132 = vadd.f32 0.0, %v1131
      %v1133 = vpop.f32.mrb[0].mxu0
      %1134 = vmatprep.mubr.f32.mxu0 0.0
      %1135 = vmatmul.mubr.f32.gmra.mrb[0].mxu0 %v1018
      %v1136 = vpop.f32.mrb[0].mxu0
      %v1137 = vadd.f32 0.0, %v1136
      %v1138 = vpop.f32.mrb[0].mxu0
      %1139 = vmatprep.mubr.f32.mxu0 0.0
      %1140 = vmatmul.mubr.f32.gmra.mrb[0].mxu0 %v1020
      %v1141 = vpop.f32.mrb[0].mxu0
      %v1142 = vadd.f32 0.0, %v1141
      %v1143 = vpop.f32.mrb[0].mxu0
      %1144 = vmatprep.mubr.f32.mxu0 0.0
      %1145 = vmatmul.mubr.f32.gmra.mrb[0].mxu0 %v1022
      %v1146 = vpop.f32.mrb[0].mxu0
      %v1147 = vadd.f32 0.0, %v1146
      %v1148 = vpop.f32.mrb[0].mxu0
      %1149 = vmatprep.mubr.f32.mxu0 0.0
      %1150 = vmatmul.mubr.f32.gmra.mrb[0].mxu0 %v1024
      %v1151 = vpop.f32.mrb[0].mxu0
      %v1152 = vadd.f32 0.0, %v1151
      %v1153 = vpop.f32.mrb[0].mxu0
      %1154 = vdwg.mxu0
      %v1155 = vmul.f32 %v1117, 0.17677669
      %v1156 = vmul.f32 %v1122, 0.17677669
      %v1157 = vmul.f32 %v1127, 0.17677669
      %v1158 = vmul.f32 %v1132, 0.17677669
      %v1159 = vmul.f32 %v1137, 0.17677669
      %v1160 = vmul.f32 %v1142, 0.17677669
      %v1161 = vmul.f32 %v1147, 0.17677669
      %v1162 = vmul.f32 %v1152, 0.17677669
      %1163 = vrot.lane.b32.xlu0 %v466, 32
      %v1164 = vpop.permute.xlu0 %1163
      %1165 = vrot.lane.b32.xlu0 %v472, 32
      %v1166 = vpop.permute.xlu0 %1165
      %1167 = vrot.lane.b32.xlu0 %v478, 32
      %v1168 = vpop.permute.xlu0 %1167
      %1169 = vrot.lane.b32.xlu0 %v484, 32
      %v1170 = vpop.permute.xlu0 %1169
      %1171 = vrot.lane.b32.xlu0 %v490, 32
      %v1172 = vpop.permute.xlu0 %1171
      %1173 = vrot.lane.b32.xlu0 %v496, 32
      %v1174 = vpop.permute.xlu0 %1173
      %1175 = vrot.lane.b32.xlu0 %v502, 32
      %v1176 = vpop.permute.xlu0 %1175
      %1177 = vrot.lane.b32.xlu0 %v508, 32
      %v1178 = vpop.permute.xlu0 %1177
      %1179 = vrot.lane.b32.xlu0 %v577, 96
      %v1180 = vpop.permute.xlu0 %1179
      %1181 = vrot.lane.b32.xlu0 %v583, 96
      %v1182 = vpop.permute.xlu0 %1181
      %1183 = vrot.lane.b32.xlu0 %v589, 96
      %v1184 = vpop.permute.xlu0 %1183
      %1185 = vrot.lane.b32.xlu0 %v595, 96
      %v1186 = vpop.permute.xlu0 %1185
      %1187 = vrot.lane.b32.xlu0 %v601, 96
      %v1188 = vpop.permute.xlu0 %1187
      %1189 = vrot.lane.b32.xlu0 %v607, 96
      %v1190 = vpop.permute.xlu0 %1189
      %1191 = vrot.lane.b32.xlu0 %v613, 96
      %v1192 = vpop.permute.xlu0 %1191
      %1193 = vrot.lane.b32.xlu0 %v619, 96
      %v1194 = vpop.permute.xlu0 %1193
      %v1195 = vsel %vm372, %v1164, 0
      %v1197 = vsel %vm372, %v1166, 0
      %v1199 = vsel %vm372, %v1168, 0
      %v1201 = vsel %vm372, %v1170, 0
      %v1203 = vsel %vm372, %v1172, 0
      %v1205 = vsel %vm372, %v1174, 0
      %v1207 = vsel %vm372, %v1176, 0
      %v1209 = vsel %vm372, %v1178, 0
      %v1211 = vsel %vm372, %v1180, 0
      %v1213 = vsel %vm372, %v1182, 0
      %v1215 = vsel %vm372, %v1184, 0
      %v1217 = vsel %vm372, %v1186, 0
      %v1219 = vsel %vm372, %v1188, 0
      %v1221 = vsel %vm372, %v1190, 0
      %v1223 = vsel %vm372, %v1192, 0
      %v1225 = vsel %vm372, %v1194, 0
      %1227 = vmatprep.subr.mxu0 0.0
      %1228 = vmatpush1.xpose.msra.mxu0 %v1211
      %1229 = vmatprep.subr.mxu0 0.0
      %1230 = vmatpush1.xpose.msra.mxu0 %v1213
      %1231 = vmatprep.subr.mxu0 0.0
      %1232 = vmatpush1.xpose.msra.mxu0 %v1215
      %1233 = vmatprep.subr.mxu0 0.0
      %1234 = vmatpush1.xpose.msra.mxu0 %v1217
      %1235 = vmatprep.subr.mxu0 0.0
      %1236 = vmatpush1.xpose.msra.mxu0 %v1219
      %1237 = vmatprep.subr.mxu0 0.0
      %1238 = vmatpush1.xpose.msra.mxu0 %v1221
      %1239 = vmatprep.subr.mxu0 0.0
      %1240 = vmatpush1.xpose.msra.mxu0 %v1223
      %1241 = vmatprep.subr.mxu0 0.0
      %1242 = vmatpush1.xpose.msra.mxu0 %v1225
      %1243 = vmatprep.subr.mxu0 0.0
      %1244 = vmatpush1.xpose.msra.mxu0 0.0
      %1245 = vmatprep.subr.mxu0 0.0
      %1246 = vmatpush1.xpose.msra.mxu0 0.0
      %1247 = vmatprep.subr.mxu0 0.0
      %1248 = vmatpush1.xpose.msra.mxu0 0.0
      %1249 = vmatprep.subr.mxu0 0.0
      %1250 = vmatpush1.xpose.msra.mxu0 0.0
      %1251 = vmatprep.subr.mxu0 0.0
      %1252 = vmatpush1.xpose.msra.mxu0 0.0
      %1253 = vmatprep.subr.mxu0 0.0
      %1254 = vmatpush1.xpose.msra.mxu0 0.0
      %1255 = vmatprep.subr.mxu0 0.0
      %1256 = vmatpush1.xpose.msra.mxu0 0.0
      %1257 = vmatprep.subr.mxu0 0.0
      %1258 = vmatpush1.xpose.msra.mxu0 0.0
      %1259 = vmatprep.subr.mxu0 0.0
      %1260 = vmatpush1.xpose.msra.mxu0 0.0
      %1261 = vmatprep.subr.mxu0 0.0
      %1262 = vmatpush1.xpose.msra.mxu0 0.0
      %1263 = vmatprep.subr.mxu0 0.0
      %1264 = vmatpush1.xpose.msra.mxu0 0.0
      %1265 = vmatprep.subr.mxu0 0.0
      %1266 = vmatpush1.xpose.msra.mxu0 0.0
      %1267 = vmatprep.subr.mxu0 0.0
      %1268 = vmatpush1.xpose.msra.mxu0 0.0
      %1269 = vmatprep.subr.mxu0 0.0
      %1270 = vmatpush1.xpose.msra.mxu0 0.0
      %1271 = vmatprep.subr.mxu0 0.0
      %1272 = vmatpush1.xpose.msra.mxu0 0.0
      %1273 = vmatprep.subr.mxu0 0.0
      %1274 = vmatpush1.xpose.msra.mxu0 0.0
      %1275 = vmatprep.subr.mxu0 0.0
      %1276 = vmatpush1.xpose.msra.mxu0 0.0
      %1277 = vmatprep.subr.mxu0 0.0
      %1278 = vmatpush1.xpose.msra.mxu0 0.0
      %1279 = vmatprep.subr.mxu0 0.0
      %1280 = vmatpush1.xpose.msra.mxu0 0.0
      %1281 = vmatprep.subr.mxu0 0.0
      %1282 = vmatpush1.xpose.msra.mxu0 0.0
      %1283 = vmatprep.subr.mxu0 0.0
      %1284 = vmatpush1.xpose.msra.mxu0 0.0
      %1285 = vmatprep.subr.mxu0 0.0
      %1286 = vmatpush1.xpose.msra.mxu0 0.0
      %1287 = vmatprep.subr.mxu0 0.0
      %1288 = vmatpush1.xpose.msra.mxu0 0.0
      %1289 = vmatprep.subr.mxu0 0.0
      %1290 = vmatpush1.xpose.msra.mxu0 0.0
      %1291 = vmatprep.mubr.f32.mxu0 0.0
      %1292 = vmatmul.mubr.f32.gmra.mrb[0].mxu0 %v1195
      %v1293 = vpop.f32.mrb[0].mxu0
      %v1294 = vadd.f32 0.0, %v1293
      %v1295 = vpop.f32.mrb[0].mxu0
      %1296 = vmatprep.mubr.f32.mxu0 0.0
      %1297 = vmatmul.mubr.f32.gmra.mrb[0].mxu0 %v1197
      %v1298 = vpop.f32.mrb[0].mxu0
      %v1299 = vadd.f32 0.0, %v1298
      %v1300 = vpop.f32.mrb[0].mxu0
      %1301 = vmatprep.mubr.f32.mxu0 0.0
      %1302 = vmatmul.mubr.f32.gmra.mrb[0].mxu0 %v1199
      %v1303 = vpop.f32.mrb[0].mxu0
      %v1304 = vadd.f32 0.0, %v1303
      %v1305 = vpop.f32.mrb[0].mxu0
      %1306 = vmatprep.mubr.f32.mxu0 0.0
      %1307 = vmatmul.mubr.f32.gmra.mrb[0].mxu0 %v1201
      %v1308 = vpop.f32.mrb[0].mxu0
      %v1309 = vadd.f32 0.0, %v1308
      %v1310 = vpop.f32.mrb[0].mxu0
      %1311 = vmatprep.mubr.f32.mxu0 0.0
      %1312 = vmatmul.mubr.f32.gmra.mrb[0].mxu0 %v1203
      %v1313 = vpop.f32.mrb[0].mxu0
      %v1314 = vadd.f32 0.0, %v1313
      %v1315 = vpop.f32.mrb[0].mxu0
      %1316 = vmatprep.mubr.f32.mxu0 0.0
      %1317 = vmatmul.mubr.f32.gmra.mrb[0].mxu0 %v1205
      %v1318 = vpop.f32.mrb[0].mxu0
      %v1319 = vadd.f32 0.0, %v1318
      %v1320 = vpop.f32.mrb[0].mxu0
      %1321 = vmatprep.mubr.f32.mxu0 0.0
      %1322 = vmatmul.mubr.f32.gmra.mrb[0].mxu0 %v1207
      %v1323 = vpop.f32.mrb[0].mxu0
      %v1324 = vadd.f32 0.0, %v1323
      %v1325 = vpop.f32.mrb[0].mxu0
      %1326 = vmatprep.mubr.f32.mxu0 0.0
      %1327 = vmatmul.mubr.f32.gmra.mrb[0].mxu0 %v1209
      %v1328 = vpop.f32.mrb[0].mxu0
      %v1329 = vadd.f32 0.0, %v1328
      %v1330 = vpop.f32.mrb[0].mxu0
      %1331 = vdwg.mxu0
      %v1332 = vmul.f32 %v1294, 0.17677669
      %v1333 = vmul.f32 %v1299, 0.17677669
      %v1334 = vmul.f32 %v1304, 0.17677669
      %v1335 = vmul.f32 %v1309, 0.17677669
      %v1336 = vmul.f32 %v1314, 0.17677669
      %v1337 = vmul.f32 %v1319, 0.17677669
      %v1338 = vmul.f32 %v1324, 0.17677669
      %v1339 = vmul.f32 %v1329, 0.17677669
      %v1340 = vsub.f32 %v623, 1.0
      %v1341 = vsub.f32 %v624, 1.0
      %v1342 = vsub.f32 %v625, 1.0
      %v1343 = vsub.f32 %v626, 1.0
      %v1344 = vsub.f32 %v627, 1.0
      %v1345 = vsub.f32 %v628, 1.0
      %v1346 = vsub.f32 %v629, 1.0
      %v1347 = vsub.f32 %v630, 1.0
      %v1348 = vsub.f32 %v978, 1.0
      %v1349 = vsub.f32 %v979, 1.0
      %v1350 = vsub.f32 %v980, 1.0
      %v1351 = vsub.f32 %v981, 1.0
      %v1352 = vsub.f32 %v982, 1.0
      %v1353 = vsub.f32 %v983, 1.0
      %v1354 = vsub.f32 %v984, 1.0
      %v1355 = vsub.f32 %v985, 1.0
      %v1356 = vmul.f32 %v1340, 1e+30
      %v1357 = vmul.f32 %v1341, 1e+30
      %v1358 = vmul.f32 %v1342, 1e+30
      %v1359 = vmul.f32 %v1343, 1e+30
      %v1360 = vmul.f32 %v1344, 1e+30
      %v1361 = vmul.f32 %v1345, 1e+30
      %v1362 = vmul.f32 %v1346, 1e+30
      %v1363 = vmul.f32 %v1347, 1e+30
      %v1364 = vmul.f32 %v1348, 1e+30
      %v1365 = vmul.f32 %v1349, 1e+30
      %v1366 = vmul.f32 %v1350, 1e+30
      %v1367 = vmul.f32 %v1351, 1e+30
      %v1368 = vmul.f32 %v1352, 1e+30
      %v1369 = vmul.f32 %v1353, 1e+30
      %v1370 = vmul.f32 %v1354, 1e+30
      %v1371 = vmul.f32 %v1355, 1e+30
      %v1372 = vadd.f32 %v792, %v1356
      %v1373 = vadd.f32 %v793, %v1357
      %v1374 = vadd.f32 %v794, %v1358
      %v1375 = vadd.f32 %v795, %v1359
      %v1376 = vadd.f32 %v796, %v1360
      %v1377 = vadd.f32 %v797, %v1361
      %v1378 = vadd.f32 %v798, %v1362
      %v1379 = vadd.f32 %v799, %v1363
      %v1380 = vadd.f32 %v969, %v1356
      %v1381 = vadd.f32 %v970, %v1357
      %v1382 = vadd.f32 %v971, %v1358
      %v1383 = vadd.f32 %v972, %v1359
      %v1384 = vadd.f32 %v973, %v1360
      %v1385 = vadd.f32 %v974, %v1361
      %v1386 = vadd.f32 %v975, %v1362
      %v1387 = vadd.f32 %v976, %v1363
      %v1388 = vadd.f32 %v1155, %v1364
      %v1389 = vadd.f32 %v1156, %v1365
      %v1390 = vadd.f32 %v1157, %v1366
      %v1391 = vadd.f32 %v1158, %v1367
      %v1392 = vadd.f32 %v1159, %v1368
      %v1393 = vadd.f32 %v1160, %v1369
      %v1394 = vadd.f32 %v1161, %v1370
      %v1395 = vadd.f32 %v1162, %v1371
      %v1396 = vadd.f32 %v1332, %v1364
      %v1397 = vadd.f32 %v1333, %v1365
      %v1398 = vadd.f32 %v1334, %v1366
      %v1399 = vadd.f32 %v1335, %v1367
      %v1400 = vadd.f32 %v1336, %v1368
      %v1401 = vadd.f32 %v1337, %v1369
      %v1402 = vadd.f32 %v1338, %v1370
      %v1403 = vadd.f32 %v1339, %v1371
      %vm1404 = vcmask 523264
      %v1405 = vsel %vm1404, %v1372, -inf
      %1406 = vmax.xlane.f32.xlu0 %v1405
      %v1407 = vpop.xlane.xlu0 %1406
      %v1408 = vsel %vm1404, %v1373, -inf
      %1409 = vmax.xlane.f32.xlu0 %v1408
      %v1410 = vpop.xlane.xlu0 %1409
      %v1411 = vsel %vm1404, %v1374, -inf
      %1412 = vmax.xlane.f32.xlu0 %v1411
      %v1413 = vpop.xlane.xlu0 %1412
      %v1414 = vsel %vm1404, %v1375, -inf
      %1415 = vmax.xlane.f32.xlu0 %v1414
      %v1416 = vpop.xlane.xlu0 %1415
      %v1417 = vsel %vm1404, %v1376, -inf
      %1418 = vmax.xlane.f32.xlu0 %v1417
      %v1419 = vpop.xlane.xlu0 %1418
      %v1420 = vsel %vm1404, %v1377, -inf
      %1421 = vmax.xlane.f32.xlu0 %v1420
      %v1422 = vpop.xlane.xlu0 %1421
      %v1423 = vsel %vm1404, %v1378, -inf
      %1424 = vmax.xlane.f32.xlu0 %v1423
      %v1425 = vpop.xlane.xlu0 %1424
      %v1426 = vsel %vm1404, %v1379, -inf
      %1427 = vmax.xlane.f32.xlu0 %v1426
      %v1428 = vpop.xlane.xlu0 %1427
      %v1429 = vsel %vm1404, %v1380, -inf
      %1430 = vmax.xlane.f32.xlu0 %v1429
      %v1431 = vpop.xlane.xlu0 %1430
      %v1432 = vsel %vm1404, %v1381, -inf
      %1433 = vmax.xlane.f32.xlu0 %v1432
      %v1434 = vpop.xlane.xlu0 %1433
      %v1435 = vsel %vm1404, %v1382, -inf
      %1436 = vmax.xlane.f32.xlu0 %v1435
      %v1437 = vpop.xlane.xlu0 %1436
      %v1438 = vsel %vm1404, %v1383, -inf
      %1439 = vmax.xlane.f32.xlu0 %v1438
      %v1440 = vpop.xlane.xlu0 %1439
      %v1441 = vsel %vm1404, %v1384, -inf
      %1442 = vmax.xlane.f32.xlu0 %v1441
      %v1443 = vpop.xlane.xlu0 %1442
      %v1444 = vsel %vm1404, %v1385, -inf
      %1445 = vmax.xlane.f32.xlu0 %v1444
      %v1446 = vpop.xlane.xlu0 %1445
      %v1447 = vsel %vm1404, %v1386, -inf
      %1448 = vmax.xlane.f32.xlu0 %v1447
      %v1449 = vpop.xlane.xlu0 %1448
      %v1450 = vsel %vm1404, %v1387, -inf
      %1451 = vmax.xlane.f32.xlu0 %v1450
      %v1452 = vpop.xlane.xlu0 %1451
      %v1453 = vsel %vm1404, %v1388, -inf
      %1454 = vmax.xlane.f32.xlu0 %v1453
      %v1455 = vpop.xlane.xlu0 %1454
      %v1456 = vsel %vm1404, %v1389, -inf
      %1457 = vmax.xlane.f32.xlu0 %v1456
      %v1458 = vpop.xlane.xlu0 %1457
      %v1459 = vsel %vm1404, %v1390, -inf
      %1460 = vmax.xlane.f32.xlu0 %v1459
      %v1461 = vpop.xlane.xlu0 %1460
      %v1462 = vsel %vm1404, %v1391, -inf
      %1463 = vmax.xlane.f32.xlu0 %v1462
      %v1464 = vpop.xlane.xlu0 %1463
      %v1465 = vsel %vm1404, %v1392, -inf
      %1466 = vmax.xlane.f32.xlu0 %v1465
      %v1467 = vpop.xlane.xlu0 %1466
      %v1468 = vsel %vm1404, %v1393, -inf
      %1469 = vmax.xlane.f32.xlu0 %v1468
      %v1470 = vpop.xlane.xlu0 %1469
      %v1471 = vsel %vm1404, %v1394, -inf
      %1472 = vmax.xlane.f32.xlu0 %v1471
      %v1473 = vpop.xlane.xlu0 %1472
      %v1474 = vsel %vm1404, %v1395, -inf
      %1475 = vmax.xlane.f32.xlu0 %v1474
      %v1476 = vpop.xlane.xlu0 %1475
      %v1477 = vsel %vm1404, %v1396, -inf
      %1478 = vmax.xlane.f32.xlu0 %v1477
      %v1479 = vpop.xlane.xlu0 %1478
      %v1480 = vsel %vm1404, %v1397, -inf
      %1481 = vmax.xlane.f32.xlu0 %v1480
      %v1482 = vpop.xlane.xlu0 %1481
      %v1483 = vsel %vm1404, %v1398, -inf
      %1484 = vmax.xlane.f32.xlu0 %v1483
      %v1485 = vpop.xlane.xlu0 %1484
      %v1486 = vsel %vm1404, %v1399, -inf
      %1487 = vmax.xlane.f32.xlu0 %v1486
      %v1488 = vpop.xlane.xlu0 %1487
      %v1489 = vsel %vm1404, %v1400, -inf
      %1490 = vmax.xlane.f32.xlu0 %v1489
      %v1491 = vpop.xlane.xlu0 %1490
      %v1492 = vsel %vm1404, %v1401, -inf
      %1493 = vmax.xlane.f32.xlu0 %v1492
      %v1494 = vpop.xlane.xlu0 %1493
      %v1495 = vsel %vm1404, %v1402, -inf
      %1496 = vmax.xlane.f32.xlu0 %v1495
      %v1497 = vpop.xlane.xlu0 %1496
      %v1498 = vsel %vm1404, %v1403, -inf
      %1499 = vmax.xlane.f32.xlu0 %v1498
      %v1500 = vpop.xlane.xlu0 %1499
      %v1501 = vsub.f32 %v1372, %v1407
      %v1502 = vsub.f32 %v1373, %v1410
      %v1503 = vsub.f32 %v1374, %v1413
      %v1504 = vsub.f32 %v1375, %v1416
      %v1505 = vsub.f32 %v1376, %v1419
      %v1506 = vsub.f32 %v1377, %v1422
      %v1507 = vsub.f32 %v1378, %v1425
      %v1508 = vsub.f32 %v1379, %v1428
      %v1509 = vsub.f32 %v1380, %v1431
      %v1510 = vsub.f32 %v1381, %v1434
      %v1511 = vsub.f32 %v1382, %v1437
      %v1512 = vsub.f32 %v1383, %v1440
      %v1513 = vsub.f32 %v1384, %v1443
      %v1514 = vsub.f32 %v1385, %v1446
      %v1515 = vsub.f32 %v1386, %v1449
      %v1516 = vsub.f32 %v1387, %v1452
      %v1517 = vsub.f32 %v1388, %v1455
      %v1518 = vsub.f32 %v1389, %v1458
      %v1519 = vsub.f32 %v1390, %v1461
      %v1520 = vsub.f32 %v1391, %v1464
      %v1521 = vsub.f32 %v1392, %v1467
      %v1522 = vsub.f32 %v1393, %v1470
      %v1523 = vsub.f32 %v1394, %v1473
      %v1524 = vsub.f32 %v1395, %v1476
      %v1525 = vsub.f32 %v1396, %v1479
      %v1526 = vsub.f32 %v1397, %v1482
      %v1527 = vsub.f32 %v1398, %v1485
      %v1528 = vsub.f32 %v1399, %v1488
      %v1529 = vsub.f32 %v1400, %v1491
      %v1530 = vsub.f32 %v1401, %v1494
      %v1531 = vsub.f32 %v1402, %v1497
      %v1532 = vsub.f32 %v1403, %v1500
      %v1533 = vmul.f32 %v1501, 1.442695
      %v1534 = vpow.pop %v1533
      %v1535 = vmul.f32 %v1502, 1.442695
      %v1536 = vpow.pop %v1535
      %v1537 = vmul.f32 %v1503, 1.442695
      %v1538 = vpow.pop %v1537
      %v1539 = vmul.f32 %v1504, 1.442695
      %v1540 = vpow.pop %v1539
      %v1541 = vmul.f32 %v1505, 1.442695
      %v1542 = vpow.pop %v1541
      %v1543 = vmul.f32 %v1506, 1.442695
      %v1544 = vpow.pop %v1543
      %v1545 = vmul.f32 %v1507, 1.442695
      %v1546 = vpow.pop %v1545
      %v1547 = vmul.f32 %v1508, 1.442695
      %v1548 = vpow.pop %v1547
      %v1549 = vmul.f32 %v1509, 1.442695
      %v1550 = vpow.pop %v1549
      %v1551 = vmul.f32 %v1510, 1.442695
      %v1552 = vpow.pop %v1551
      %v1553 = vmul.f32 %v1511, 1.442695
      %v1554 = vpow.pop %v1553
      %v1555 = vmul.f32 %v1512, 1.442695
      %v1556 = vpow.pop %v1555
      %v1557 = vmul.f32 %v1513, 1.442695
      %v1558 = vpow.pop %v1557
      %v1559 = vmul.f32 %v1514, 1.442695
      %v1560 = vpow.pop %v1559
      %v1561 = vmul.f32 %v1515, 1.442695
      %v1562 = vpow.pop %v1561
      %v1563 = vmul.f32 %v1516, 1.442695
      %v1564 = vpow.pop %v1563
      %v1565 = vmul.f32 %v1517, 1.442695
      %v1566 = vpow.pop %v1565
      %v1567 = vmul.f32 %v1518, 1.442695
      %v1568 = vpow.pop %v1567
      %v1569 = vmul.f32 %v1519, 1.442695
      %v1570 = vpow.pop %v1569
      %v1571 = vmul.f32 %v1520, 1.442695
      %v1572 = vpow.pop %v1571
      %v1573 = vmul.f32 %v1521, 1.442695
      %v1574 = vpow.pop %v1573
      %v1575 = vmul.f32 %v1522, 1.442695
      %v1576 = vpow.pop %v1575
      %v1577 = vmul.f32 %v1523, 1.442695
      %v1578 = vpow.pop %v1577
      %v1579 = vmul.f32 %v1524, 1.442695
      %v1580 = vpow.pop %v1579
      %v1581 = vmul.f32 %v1525, 1.442695
      %v1582 = vpow.pop %v1581
      %v1583 = vmul.f32 %v1526, 1.442695
      %v1584 = vpow.pop %v1583
      %v1585 = vmul.f32 %v1527, 1.442695
      %v1586 = vpow.pop %v1585
      %v1587 = vmul.f32 %v1528, 1.442695
      %v1588 = vpow.pop %v1587
      %v1589 = vmul.f32 %v1529, 1.442695
      %v1590 = vpow.pop %v1589
      %v1591 = vmul.f32 %v1530, 1.442695
      %v1592 = vpow.pop %v1591
      %v1593 = vmul.f32 %v1531, 1.442695
      %v1594 = vpow.pop %v1593
      %v1595 = vmul.f32 %v1532, 1.442695
      %v1596 = vpow.pop %v1595
      %v1597 = vmul.f32 %v1534, %v623
      %v1598 = vmul.f32 %v1536, %v624
      %v1599 = vmul.f32 %v1538, %v625
      %v1600 = vmul.f32 %v1540, %v626
      %v1601 = vmul.f32 %v1542, %v627
      %v1602 = vmul.f32 %v1544, %v628
      %v1603 = vmul.f32 %v1546, %v629
      %v1604 = vmul.f32 %v1548, %v630
      %v1605 = vmul.f32 %v1550, %v623
      %v1606 = vmul.f32 %v1552, %v624
      %v1607 = vmul.f32 %v1554, %v625
      %v1608 = vmul.f32 %v1556, %v626
      %v1609 = vmul.f32 %v1558, %v627
      %v1610 = vmul.f32 %v1560, %v628
      %v1611 = vmul.f32 %v1562, %v629
      %v1612 = vmul.f32 %v1564, %v630
      %v1613 = vmul.f32 %v1566, %v978
      %v1614 = vmul.f32 %v1568, %v979
      %v1615 = vmul.f32 %v1570, %v980
      %v1616 = vmul.f32 %v1572, %v981
      %v1617 = vmul.f32 %v1574, %v982
      %v1618 = vmul.f32 %v1576, %v983
      %v1619 = vmul.f32 %v1578, %v984
      %v1620 = vmul.f32 %v1580, %v985
      %v1621 = vmul.f32 %v1582, %v978
      %v1622 = vmul.f32 %v1584, %v979
      %v1623 = vmul.f32 %v1586, %v980
      %v1624 = vmul.f32 %v1588, %v981
      %v1625 = vmul.f32 %v1590, %v982
      %v1626 = vmul.f32 %v1592, %v983
      %v1627 = vmul.f32 %v1594, %v984
      %v1628 = vmul.f32 %v1596, %v985
      %v1629 = vsel %vm1404, %v1597, 0.0
      %1630 = vadd.xlane.f32.xlu0 %v1629
      %v1631 = vpop.xlane.xlu0 %1630
      %v1632 = vsel %vm1404, %v1598, 0.0
      %1633 = vadd.xlane.f32.xlu0 %v1632
      %v1634 = vpop.xlane.xlu0 %1633
      %v1635 = vsel %vm1404, %v1599, 0.0
      %1636 = vadd.xlane.f32.xlu0 %v1635
      %v1637 = vpop.xlane.xlu0 %1636
      %v1638 = vsel %vm1404, %v1600, 0.0
      %1639 = vadd.xlane.f32.xlu0 %v1638
      %v1640 = vpop.xlane.xlu0 %1639
      %v1641 = vsel %vm1404, %v1601, 0.0
      %1642 = vadd.xlane.f32.xlu0 %v1641
      %v1643 = vpop.xlane.xlu0 %1642
      %v1644 = vsel %vm1404, %v1602, 0.0
      %1645 = vadd.xlane.f32.xlu0 %v1644
      %v1646 = vpop.xlane.xlu0 %1645
      %v1647 = vsel %vm1404, %v1603, 0.0
      %1648 = vadd.xlane.f32.xlu0 %v1647
      %v1649 = vpop.xlane.xlu0 %1648
      %v1650 = vsel %vm1404, %v1604, 0.0
      %1651 = vadd.xlane.f32.xlu0 %v1650
      %v1652 = vpop.xlane.xlu0 %1651
      %v1653 = vsel %vm1404, %v1605, 0.0
      %1654 = vadd.xlane.f32.xlu0 %v1653
      %v1655 = vpop.xlane.xlu0 %1654
      %v1656 = vsel %vm1404, %v1606, 0.0
      %1657 = vadd.xlane.f32.xlu0 %v1656
      %v1658 = vpop.xlane.xlu0 %1657
      %v1659 = vsel %vm1404, %v1607, 0.0
      %1660 = vadd.xlane.f32.xlu0 %v1659
      %v1661 = vpop.xlane.xlu0 %1660
      %v1662 = vsel %vm1404, %v1608, 0.0
      %1663 = vadd.xlane.f32.xlu0 %v1662
      %v1664 = vpop.xlane.xlu0 %1663
      %v1665 = vsel %vm1404, %v1609, 0.0
      %1666 = vadd.xlane.f32.xlu0 %v1665
      %v1667 = vpop.xlane.xlu0 %1666
      %v1668 = vsel %vm1404, %v1610, 0.0
      %1669 = vadd.xlane.f32.xlu0 %v1668
      %v1670 = vpop.xlane.xlu0 %1669
      %v1671 = vsel %vm1404, %v1611, 0.0
      %1672 = vadd.xlane.f32.xlu0 %v1671
      %v1673 = vpop.xlane.xlu0 %1672
      %v1674 = vsel %vm1404, %v1612, 0.0
      %1675 = vadd.xlane.f32.xlu0 %v1674
      %v1676 = vpop.xlane.xlu0 %1675
      %v1677 = vsel %vm1404, %v1613, 0.0
      %1678 = vadd.xlane.f32.xlu0 %v1677
      %v1679 = vpop.xlane.xlu0 %1678
      %v1680 = vsel %vm1404, %v1614, 0.0
      %1681 = vadd.xlane.f32.xlu0 %v1680
      %v1682 = vpop.xlane.xlu0 %1681
      %v1683 = vsel %vm1404, %v1615, 0.0
      %1684 = vadd.xlane.f32.xlu0 %v1683
      %v1685 = vpop.xlane.xlu0 %1684
      %v1686 = vsel %vm1404, %v1616, 0.0
      %1687 = vadd.xlane.f32.xlu0 %v1686
      %v1688 = vpop.xlane.xlu0 %1687
      %v1689 = vsel %vm1404, %v1617, 0.0
      %1690 = vadd.xlane.f32.xlu0 %v1689
      %v1691 = vpop.xlane.xlu0 %1690
      %v1692 = vsel %vm1404, %v1618, 0.0
      %1693 = vadd.xlane.f32.xlu0 %v1692
      %v1694 = vpop.xlane.xlu0 %1693
      %v1695 = vsel %vm1404, %v1619, 0.0
      %1696 = vadd.xlane.f32.xlu0 %v1695
      %v1697 = vpop.xlane.xlu0 %1696
      %v1698 = vsel %vm1404, %v1620, 0.0
      %1699 = vadd.xlane.f32.xlu0 %v1698
      %v1700 = vpop.xlane.xlu0 %1699
      %v1701 = vsel %vm1404, %v1621, 0.0
      %1702 = vadd.xlane.f32.xlu0 %v1701
      %v1703 = vpop.xlane.xlu0 %1702
      %v1704 = vsel %vm1404, %v1622, 0.0
      %1705 = vadd.xlane.f32.xlu0 %v1704
      %v1706 = vpop.xlane.xlu0 %1705
      %v1707 = vsel %vm1404, %v1623, 0.0
      %1708 = vadd.xlane.f32.xlu0 %v1707
      %v1709 = vpop.xlane.xlu0 %1708
      %v1710 = vsel %vm1404, %v1624, 0.0
      %1711 = vadd.xlane.f32.xlu0 %v1710
      %v1712 = vpop.xlane.xlu0 %1711
      %v1713 = vsel %vm1404, %v1625, 0.0
      %1714 = vadd.xlane.f32.xlu0 %v1713
      %v1715 = vpop.xlane.xlu0 %1714
      %v1716 = vsel %vm1404, %v1626, 0.0
      %1717 = vadd.xlane.f32.xlu0 %v1716
      %v1718 = vpop.xlane.xlu0 %1717
      %v1719 = vsel %vm1404, %v1627, 0.0
      %1720 = vadd.xlane.f32.xlu0 %v1719
      %v1721 = vpop.xlane.xlu0 %1720
      %v1722 = vsel %vm1404, %v1628, 0.0
      %1723 = vadd.xlane.f32.xlu0 %v1722
      %v1724 = vpop.xlane.xlu0 %1723
      %vm1725 = vcmp.eq.f32.partialorder %v1631, 0.0
      %vm1726 = vcmp.eq.f32.partialorder %v1634, 0.0
      %vm1727 = vcmp.eq.f32.partialorder %v1637, 0.0
      %vm1728 = vcmp.eq.f32.partialorder %v1640, 0.0
      %vm1729 = vcmp.eq.f32.partialorder %v1643, 0.0
      %vm1730 = vcmp.eq.f32.partialorder %v1646, 0.0
      %vm1731 = vcmp.eq.f32.partialorder %v1649, 0.0
      %vm1732 = vcmp.eq.f32.partialorder %v1652, 0.0
      %vm1733 = vcmp.eq.f32.partialorder %v1655, 0.0
      %vm1734 = vcmp.eq.f32.partialorder %v1658, 0.0
      %vm1735 = vcmp.eq.f32.partialorder %v1661, 0.0
      %vm1736 = vcmp.eq.f32.partialorder %v1664, 0.0
      %vm1737 = vcmp.eq.f32.partialorder %v1667, 0.0
      %vm1738 = vcmp.eq.f32.partialorder %v1670, 0.0
      %vm1739 = vcmp.eq.f32.partialorder %v1673, 0.0
      %vm1740 = vcmp.eq.f32.partialorder %v1676, 0.0
      %vm1741 = vcmp.eq.f32.partialorder %v1679, 0.0
      %vm1742 = vcmp.eq.f32.partialorder %v1682, 0.0
      %vm1743 = vcmp.eq.f32.partialorder %v1685, 0.0
      %vm1744 = vcmp.eq.f32.partialorder %v1688, 0.0
      %vm1745 = vcmp.eq.f32.partialorder %v1691, 0.0
      %vm1746 = vcmp.eq.f32.partialorder %v1694, 0.0
      %vm1747 = vcmp.eq.f32.partialorder %v1697, 0.0
      %vm1748 = vcmp.eq.f32.partialorder %v1700, 0.0
      %vm1749 = vcmp.eq.f32.partialorder %v1703, 0.0
      %vm1750 = vcmp.eq.f32.partialorder %v1706, 0.0
      %vm1751 = vcmp.eq.f32.partialorder %v1709, 0.0
      %vm1752 = vcmp.eq.f32.partialorder %v1712, 0.0
      %vm1753 = vcmp.eq.f32.partialorder %v1715, 0.0
      %vm1754 = vcmp.eq.f32.partialorder %v1718, 0.0
      %vm1755 = vcmp.eq.f32.partialorder %v1721, 0.0
      %vm1756 = vcmp.eq.f32.partialorder %v1724, 0.0
      %v1757 = vsel %vm1725, 1.0, %v1631
      %v1758 = vsel %vm1726, 1.0, %v1634
      %v1759 = vsel %vm1727, 1.0, %v1637
      %v1760 = vsel %vm1728, 1.0, %v1640
      %v1761 = vsel %vm1729, 1.0, %v1643
      %v1762 = vsel %vm1730, 1.0, %v1646
      %v1763 = vsel %vm1731, 1.0, %v1649
      %v1764 = vsel %vm1732, 1.0, %v1652
      %v1765 = vsel %vm1733, 1.0, %v1655
      %v1766 = vsel %vm1734, 1.0, %v1658
      %v1767 = vsel %vm1735, 1.0, %v1661
      %v1768 = vsel %vm1736, 1.0, %v1664
      %v1769 = vsel %vm1737, 1.0, %v1667
      %v1770 = vsel %vm1738, 1.0, %v1670
      %v1771 = vsel %vm1739, 1.0, %v1673
      %v1772 = vsel %vm1740, 1.0, %v1676
      %v1773 = vsel %vm1741, 1.0, %v1679
      %v1774 = vsel %vm1742, 1.0, %v1682
      %v1775 = vsel %vm1743, 1.0, %v1685
      %v1776 = vsel %vm1744, 1.0, %v1688
      %v1777 = vsel %vm1745, 1.0, %v1691
      %v1778 = vsel %vm1746, 1.0, %v1694
      %v1779 = vsel %vm1747, 1.0, %v1697
      %v1780 = vsel %vm1748, 1.0, %v1700
      %v1781 = vsel %vm1749, 1.0, %v1703
      %v1782 = vsel %vm1750, 1.0, %v1706
      %v1783 = vsel %vm1751, 1.0, %v1709
      %v1784 = vsel %vm1752, 1.0, %v1712
      %v1785 = vsel %vm1753, 1.0, %v1715
      %v1786 = vsel %vm1754, 1.0, %v1718
      %v1787 = vsel %vm1755, 1.0, %v1721
      %v1788 = vsel %vm1756, 1.0, %v1724
      %v1789 = vrcp.pop %v1757
      %v1790 = vrcp.pop %v1758
      %v1791 = vrcp.pop %v1759
      %v1792 = vrcp.pop %v1760
      %v1793 = vrcp.pop %v1761
      %v1794 = vrcp.pop %v1762
      %v1795 = vrcp.pop %v1763
      %v1796 = vrcp.pop %v1764
      %v1797 = vrcp.pop %v1765
      %v1798 = vrcp.pop %v1766
      %v1799 = vrcp.pop %v1767
      %v1800 = vrcp.pop %v1768
      %v1801 = vrcp.pop %v1769
      %v1802 = vrcp.pop %v1770
      %v1803 = vrcp.pop %v1771
      %v1804 = vrcp.pop %v1772
      %v1805 = vrcp.pop %v1773
      %v1806 = vrcp.pop %v1774
      %v1807 = vrcp.pop %v1775
      %v1808 = vrcp.pop %v1776
      %v1809 = vrcp.pop %v1777
      %v1810 = vrcp.pop %v1778
      %v1811 = vrcp.pop %v1779
      %v1812 = vrcp.pop %v1780
      %v1813 = vrcp.pop %v1781
      %v1814 = vrcp.pop %v1782
      %v1815 = vrcp.pop %v1783
      %v1816 = vrcp.pop %v1784
      %v1817 = vrcp.pop %v1785
      %v1818 = vrcp.pop %v1786
      %v1819 = vrcp.pop %v1787
      %v1820 = vrcp.pop %v1788
      %v1821 = vmul.f32 %v1597, %v1789
      %v1822 = vmul.f32 %v1598, %v1790
      %v1823 = vmul.f32 %v1599, %v1791
      %v1824 = vmul.f32 %v1600, %v1792
      %v1825 = vmul.f32 %v1601, %v1793
      %v1826 = vmul.f32 %v1602, %v1794
      %v1827 = vmul.f32 %v1603, %v1795
      %v1828 = vmul.f32 %v1604, %v1796
      %v1829 = vmul.f32 %v1605, %v1797
      %v1830 = vmul.f32 %v1606, %v1798
      %v1831 = vmul.f32 %v1607, %v1799
      %v1832 = vmul.f32 %v1608, %v1800
      %v1833 = vmul.f32 %v1609, %v1801
      %v1834 = vmul.f32 %v1610, %v1802
      %v1835 = vmul.f32 %v1611, %v1803
      %v1836 = vmul.f32 %v1612, %v1804
      %v1837 = vmul.f32 %v1613, %v1805
      %v1838 = vmul.f32 %v1614, %v1806
      %v1839 = vmul.f32 %v1615, %v1807
      %v1840 = vmul.f32 %v1616, %v1808
      %v1841 = vmul.f32 %v1617, %v1809
      %v1842 = vmul.f32 %v1618, %v1810
      %v1843 = vmul.f32 %v1619, %v1811
      %v1844 = vmul.f32 %v1620, %v1812
      %v1845 = vmul.f32 %v1621, %v1813
      %v1846 = vmul.f32 %v1622, %v1814
      %v1847 = vmul.f32 %v1623, %v1815
      %v1848 = vmul.f32 %v1624, %v1816
      %v1849 = vmul.f32 %v1625, %v1817
      %v1850 = vmul.f32 %v1626, %v1818
      %v1851 = vmul.f32 %v1627, %v1819
      %v1852 = vmul.f32 %v1628, %v1820
      %1861 = vrot.lane.b32.xlu0 %v1829, 64
      %v1862 = vpop.permute.xlu0 %1861
      %1863 = vrot.lane.b32.xlu0 %v1830, 64
      %v1864 = vpop.permute.xlu0 %1863
      %1865 = vrot.lane.b32.xlu0 %v1831, 64
      %v1866 = vpop.permute.xlu0 %1865
      %1867 = vrot.lane.b32.xlu0 %v1832, 64
      %v1868 = vpop.permute.xlu0 %1867
      %1869 = vrot.lane.b32.xlu0 %v1833, 64
      %v1870 = vpop.permute.xlu0 %1869
      %1871 = vrot.lane.b32.xlu0 %v1834, 64
      %v1872 = vpop.permute.xlu0 %1871
      %1873 = vrot.lane.b32.xlu0 %v1835, 64
      %v1874 = vpop.permute.xlu0 %1873
      %1875 = vrot.lane.b32.xlu0 %v1836, 64
      %v1876 = vpop.permute.xlu0 %1875
      %v1885 = vsel %vm1404, %v1821, %v1862
      %v1886 = vsel %vm1404, %v1822, %v1864
      %v1887 = vsel %vm1404, %v1823, %v1866
      %v1888 = vsel %vm1404, %v1824, %v1868
      %v1889 = vsel %vm1404, %v1825, %v1870
      %v1890 = vsel %vm1404, %v1826, %v1872
      %v1891 = vsel %vm1404, %v1827, %v1874
      %v1892 = vsel %vm1404, %v1828, %v1876
      %1893 = vrot.lane.b32.xlu0 %v466, 96
      %v1894 = vpop.permute.xlu0 %1893
      %1895 = vrot.lane.b32.xlu0 %v472, 96
      %v1896 = vpop.permute.xlu0 %1895
      %1897 = vrot.lane.b32.xlu0 %v478, 96
      %v1898 = vpop.permute.xlu0 %1897
      %1899 = vrot.lane.b32.xlu0 %v484, 96
      %v1900 = vpop.permute.xlu0 %1899
      %1901 = vrot.lane.b32.xlu0 %v490, 96
      %v1902 = vpop.permute.xlu0 %1901
      %1903 = vrot.lane.b32.xlu0 %v496, 96
      %v1904 = vpop.permute.xlu0 %1903
      %1905 = vrot.lane.b32.xlu0 %v502, 96
      %v1906 = vpop.permute.xlu0 %1905
      %1907 = vrot.lane.b32.xlu0 %v508, 96
      %v1908 = vpop.permute.xlu0 %1907
      %1917 = vmatprep.subr.mxu0 0.0
      %1918 = vmatpush1.msra.mxu0 %v466
      %1919 = vmatprep.subr.mxu0 0.0
      %1920 = vmatpush1.msra.mxu0 %v472
      %1921 = vmatprep.subr.mxu0 0.0
      %1922 = vmatpush1.msra.mxu0 %v478
      %1923 = vmatprep.subr.mxu0 0.0
      %1924 = vmatpush1.msra.mxu0 %v484
      %1925 = vmatprep.subr.mxu0 0.0
      %1926 = vmatpush1.msra.mxu0 %v490
      %1927 = vmatprep.subr.mxu0 0.0
      %1928 = vmatpush1.msra.mxu0 %v496
      %1929 = vmatprep.subr.mxu0 0.0
      %1930 = vmatpush1.msra.mxu0 %v502
      %1931 = vmatprep.subr.mxu0 0.0
      %1932 = vmatpush1.msra.mxu0 %v508
      %1933 = vmatprep.subr.mxu0 0.0
      %1934 = vmatpush1.msra.mxu0 %v1894
      %1935 = vmatprep.subr.mxu0 0.0
      %1936 = vmatpush1.msra.mxu0 %v1896
      %1937 = vmatprep.subr.mxu0 0.0
      %1938 = vmatpush1.msra.mxu0 %v1898
      %1939 = vmatprep.subr.mxu0 0.0
      %1940 = vmatpush1.msra.mxu0 %v1900
      %1941 = vmatprep.subr.mxu0 0.0
      %1942 = vmatpush1.msra.mxu0 %v1902
      %1943 = vmatprep.subr.mxu0 0.0
      %1944 = vmatpush1.msra.mxu0 %v1904
      %1945 = vmatprep.subr.mxu0 0.0
      %1946 = vmatpush1.msra.mxu0 %v1906
      %1947 = vmatprep.subr.mxu0 0.0
      %1948 = vmatpush1.msra.mxu0 %v1908
      %1949 = vmatprep.subr.mxu0 0.0
      %1950 = vmatpush1.msra.mxu0 0.0
      %1951 = vmatprep.subr.mxu0 0.0
      %1952 = vmatpush1.msra.mxu0 0.0
      %1953 = vmatprep.subr.mxu0 0.0
      %1954 = vmatpush1.msra.mxu0 0.0
      %1955 = vmatprep.subr.mxu0 0.0
      %1956 = vmatpush1.msra.mxu0 0.0
      %1957 = vmatprep.subr.mxu0 0.0
      %1958 = vmatpush1.msra.mxu0 0.0
      %1959 = vmatprep.subr.mxu0 0.0
      %1960 = vmatpush1.msra.mxu0 0.0
      %1961 = vmatprep.subr.mxu0 0.0
      %1962 = vmatpush1.msra.mxu0 0.0
      %1963 = vmatprep.subr.mxu0 0.0
      %1964 = vmatpush1.msra.mxu0 0.0
      %1965 = vmatprep.subr.mxu0 0.0
      %1966 = vmatpush1.msra.mxu0 0.0
      %1967 = vmatprep.subr.mxu0 0.0
      %1968 = vmatpush1.msra.mxu0 0.0
      %1969 = vmatprep.subr.mxu0 0.0
      %1970 = vmatpush1.msra.mxu0 0.0
      %1971 = vmatprep.subr.mxu0 0.0
      %1972 = vmatpush1.msra.mxu0 0.0
      %1973 = vmatprep.subr.mxu0 0.0
      %1974 = vmatpush1.msra.mxu0 0.0
      %1975 = vmatprep.subr.mxu0 0.0
      %1976 = vmatpush1.msra.mxu0 0.0
      %1977 = vmatprep.subr.mxu0 0.0
      %1978 = vmatpush1.msra.mxu0 0.0
      %1979 = vmatprep.subr.mxu0 0.0
      %1980 = vmatpush1.msra.mxu0 0.0
      %1981 = vmatprep.mubr.f32.mxu0 0.0
      %1982 = vmatmul.mubr.f32.gmra.mrb[0].mxu0 %v1885
      %v1983 = vpop.f32.mrb[0].mxu0
      %v1984 = vadd.f32 0.0, %v1983
      %v1985 = vpop.f32.mrb[0].mxu0
      %1986 = vmatprep.mubr.f32.mxu0 0.0
      %1987 = vmatmul.mubr.f32.gmra.mrb[0].mxu0 %v1886
      %v1988 = vpop.f32.mrb[0].mxu0
      %v1989 = vadd.f32 0.0, %v1988
      %v1990 = vpop.f32.mrb[0].mxu0
      %1991 = vmatprep.mubr.f32.mxu0 0.0
      %1992 = vmatmul.mubr.f32.gmra.mrb[0].mxu0 %v1887
      %v1993 = vpop.f32.mrb[0].mxu0
      %v1994 = vadd.f32 0.0, %v1993
      %v1995 = vpop.f32.mrb[0].mxu0
      %1996 = vmatprep.mubr.f32.mxu0 0.0
      %1997 = vmatmul.mubr.f32.gmra.mrb[0].mxu0 %v1888
      %v1998 = vpop.f32.mrb[0].mxu0
      %v1999 = vadd.f32 0.0, %v1998
      %v2000 = vpop.f32.mrb[0].mxu0
      %2001 = vmatprep.mubr.f32.mxu0 0.0
      %2002 = vmatmul.mubr.f32.gmra.mrb[0].mxu0 %v1889
      %v2003 = vpop.f32.mrb[0].mxu0
      %v2004 = vadd.f32 0.0, %v2003
      %v2005 = vpop.f32.mrb[0].mxu0
      %2006 = vmatprep.mubr.f32.mxu0 0.0
      %2007 = vmatmul.mubr.f32.gmra.mrb[0].mxu0 %v1890
      %v2008 = vpop.f32.mrb[0].mxu0
      %v2009 = vadd.f32 0.0, %v2008
      %v2010 = vpop.f32.mrb[0].mxu0
      %2011 = vmatprep.mubr.f32.mxu0 0.0
      %2012 = vmatmul.mubr.f32.gmra.mrb[0].mxu0 %v1891
      %v2013 = vpop.f32.mrb[0].mxu0
      %v2014 = vadd.f32 0.0, %v2013
      %v2015 = vpop.f32.mrb[0].mxu0
      %2016 = vmatprep.mubr.f32.mxu0 0.0
      %2017 = vmatmul.mubr.f32.gmra.mrb[0].mxu0 %v1892
      %v2018 = vpop.f32.mrb[0].mxu0
      %v2019 = vadd.f32 0.0, %v2018
      %v2020 = vpop.f32.mrb[0].mxu0
      %2021 = vdwg.mxu0
      %v2022 = vmul.f32 %v1984, 0.5
      %v2023 = vmul.f32 %v1989, 0.5
      %v2024 = vmul.f32 %v1994, 0.5
      %v2025 = vmul.f32 %v1999, 0.5
      %v2026 = vmul.f32 %v2004, 0.5
      %v2027 = vmul.f32 %v2009, 0.5
      %v2028 = vmul.f32 %v2014, 0.5
      %v2029 = vmul.f32 %v2019, 0.5
      %v2030 = vadd.f32 %v2022, %v579
      %v2031 = vadd.f32 %v2023, %v585
      %v2032 = vadd.f32 %v2024, %v591
      %v2033 = vadd.f32 %v2025, %v597
      %v2034 = vadd.f32 %v2026, %v603
      %v2035 = vadd.f32 %v2027, %v609
      %v2036 = vadd.f32 %v2028, %v615
      %v2037 = vadd.f32 %v2029, %v621
      %2046 = vrot.lane.b32.xlu0 %v1845, 64
      %v2047 = vpop.permute.xlu0 %2046
      %2048 = vrot.lane.b32.xlu0 %v1846, 64
      %v2049 = vpop.permute.xlu0 %2048
      %2050 = vrot.lane.b32.xlu0 %v1847, 64
      %v2051 = vpop.permute.xlu0 %2050
      %2052 = vrot.lane.b32.xlu0 %v1848, 64
      %v2053 = vpop.permute.xlu0 %2052
      %2054 = vrot.lane.b32.xlu0 %v1849, 64
      %v2055 = vpop.permute.xlu0 %2054
      %2056 = vrot.lane.b32.xlu0 %v1850, 64
      %v2057 = vpop.permute.xlu0 %2056
      %2058 = vrot.lane.b32.xlu0 %v1851, 64
      %v2059 = vpop.permute.xlu0 %2058
      %2060 = vrot.lane.b32.xlu0 %v1852, 64
      %v2061 = vpop.permute.xlu0 %2060
      %v2070 = vsel %vm1404, %v1837, %v2047
      %v2071 = vsel %vm1404, %v1838, %v2049
      %v2072 = vsel %vm1404, %v1839, %v2051
      %v2073 = vsel %vm1404, %v1840, %v2053
      %v2074 = vsel %vm1404, %v1841, %v2055
      %v2075 = vsel %vm1404, %v1842, %v2057
      %v2076 = vsel %vm1404, %v1843, %v2059
      %v2077 = vsel %vm1404, %v1844, %v2061
      %2078 = vrot.lane.b32.xlu0 %v577, 64
      %v2079 = vpop.permute.xlu0 %2078
      %2080 = vrot.lane.b32.xlu0 %v583, 64
      %v2081 = vpop.permute.xlu0 %2080
      %2082 = vrot.lane.b32.xlu0 %v589, 64
      %v2083 = vpop.permute.xlu0 %2082
      %2084 = vrot.lane.b32.xlu0 %v595, 64
      %v2085 = vpop.permute.xlu0 %2084
      %2086 = vrot.lane.b32.xlu0 %v601, 64
      %v2087 = vpop.permute.xlu0 %2086
      %2088 = vrot.lane.b32.xlu0 %v607, 64
      %v2089 = vpop.permute.xlu0 %2088
      %2090 = vrot.lane.b32.xlu0 %v613, 64
      %v2091 = vpop.permute.xlu0 %2090
      %2092 = vrot.lane.b32.xlu0 %v619, 64
      %v2093 = vpop.permute.xlu0 %2092
      %2094 = vrot.lane.b32.xlu0 %v1180, 64
      %v2095 = vpop.permute.xlu0 %2094
      %2096 = vrot.lane.b32.xlu0 %v1182, 64
      %v2097 = vpop.permute.xlu0 %2096
      %2098 = vrot.lane.b32.xlu0 %v1184, 64
      %v2099 = vpop.permute.xlu0 %2098
      %2100 = vrot.lane.b32.xlu0 %v1186, 64
      %v2101 = vpop.permute.xlu0 %2100
      %2102 = vrot.lane.b32.xlu0 %v1188, 64
      %v2103 = vpop.permute.xlu0 %2102
      %2104 = vrot.lane.b32.xlu0 %v1190, 64
      %v2105 = vpop.permute.xlu0 %2104
      %2106 = vrot.lane.b32.xlu0 %v1192, 64
      %v2107 = vpop.permute.xlu0 %2106
      %2108 = vrot.lane.b32.xlu0 %v1194, 64
      %v2109 = vpop.permute.xlu0 %2108
      %2126 = vmatprep.subr.mxu0 0.0
      %2127 = vmatpush1.msra.mxu0 %v2079
      %2128 = vmatprep.subr.mxu0 0.0
      %2129 = vmatpush1.msra.mxu0 %v2081
      %2130 = vmatprep.subr.mxu0 0.0
      %2131 = vmatpush1.msra.mxu0 %v2083
      %2132 = vmatprep.subr.mxu0 0.0
      %2133 = vmatpush1.msra.mxu0 %v2085
      %2134 = vmatprep.subr.mxu0 0.0
      %2135 = vmatpush1.msra.mxu0 %v2087
      %2136 = vmatprep.subr.mxu0 0.0
      %2137 = vmatpush1.msra.mxu0 %v2089
      %2138 = vmatprep.subr.mxu0 0.0
      %2139 = vmatpush1.msra.mxu0 %v2091
      %2140 = vmatprep.subr.mxu0 0.0
      %2141 = vmatpush1.msra.mxu0 %v2093
      %2142 = vmatprep.subr.mxu0 0.0
      %2143 = vmatpush1.msra.mxu0 %v2095
      %2144 = vmatprep.subr.mxu0 0.0
      %2145 = vmatpush1.msra.mxu0 %v2097
      %2146 = vmatprep.subr.mxu0 0.0
      %2147 = vmatpush1.msra.mxu0 %v2099
      %2148 = vmatprep.subr.mxu0 0.0
      %2149 = vmatpush1.msra.mxu0 %v2101
      %2150 = vmatprep.subr.mxu0 0.0
      %2151 = vmatpush1.msra.mxu0 %v2103
      %2152 = vmatprep.subr.mxu0 0.0
      %2153 = vmatpush1.msra.mxu0 %v2105
      %2154 = vmatprep.subr.mxu0 0.0
      %2155 = vmatpush1.msra.mxu0 %v2107
      %2156 = vmatprep.subr.mxu0 0.0
      %2157 = vmatpush1.msra.mxu0 %v2109
      %2158 = vmatprep.subr.mxu0 0.0
      %2159 = vmatpush1.msra.mxu0 0.0
      %2160 = vmatprep.subr.mxu0 0.0
      %2161 = vmatpush1.msra.mxu0 0.0
      %2162 = vmatprep.subr.mxu0 0.0
      %2163 = vmatpush1.msra.mxu0 0.0
      %2164 = vmatprep.subr.mxu0 0.0
      %2165 = vmatpush1.msra.mxu0 0.0
      %2166 = vmatprep.subr.mxu0 0.0
      %2167 = vmatpush1.msra.mxu0 0.0
      %2168 = vmatprep.subr.mxu0 0.0
      %2169 = vmatpush1.msra.mxu0 0.0
      %2170 = vmatprep.subr.mxu0 0.0
      %2171 = vmatpush1.msra.mxu0 0.0
      %2172 = vmatprep.subr.mxu0 0.0
      %2173 = vmatpush1.msra.mxu0 0.0
      %2174 = vmatprep.subr.mxu0 0.0
      %2175 = vmatpush1.msra.mxu0 0.0
      %2176 = vmatprep.subr.mxu0 0.0
      %2177 = vmatpush1.msra.mxu0 0.0
      %2178 = vmatprep.subr.mxu0 0.0
      %2179 = vmatpush1.msra.mxu0 0.0
      %2180 = vmatprep.subr.mxu0 0.0
      %2181 = vmatpush1.msra.mxu0 0.0
      %2182 = vmatprep.subr.mxu0 0.0
      %2183 = vmatpush1.msra.mxu0 0.0
      %2184 = vmatprep.subr.mxu0 0.0
      %2185 = vmatpush1.msra.mxu0 0.0
      %2186 = vmatprep.subr.mxu0 0.0
      %2187 = vmatpush1.msra.mxu0 0.0
      %2188 = vmatprep.subr.mxu0 0.0
      %2189 = vmatpush1.msra.mxu0 0.0
      %2190 = vmatprep.mubr.f32.mxu0 0.0
      %2191 = vmatmul.mubr.f32.gmra.mrb[0].mxu0 %v2070
      %v2192 = vpop.f32.mrb[0].mxu0
      %v2193 = vadd.f32 0.0, %v2192
      %v2194 = vpop.f32.mrb[0].mxu0
      %2195 = vmatprep.mubr.f32.mxu0 0.0
      %2196 = vmatmul.mubr.f32.gmra.mrb[0].mxu0 %v2071
      %v2197 = vpop.f32.mrb[0].mxu0
      %v2198 = vadd.f32 0.0, %v2197
      %v2199 = vpop.f32.mrb[0].mxu0
      %2200 = vmatprep.mubr.f32.mxu0 0.0
      %2201 = vmatmul.mubr.f32.gmra.mrb[0].mxu0 %v2072
      %v2202 = vpop.f32.mrb[0].mxu0
      %v2203 = vadd.f32 0.0, %v2202
      %v2204 = vpop.f32.mrb[0].mxu0
      %2205 = vmatprep.mubr.f32.mxu0 0.0
      %2206 = vmatmul.mubr.f32.gmra.mrb[0].mxu0 %v2073
      %v2207 = vpop.f32.mrb[0].mxu0
      %v2208 = vadd.f32 0.0, %v2207
      %v2209 = vpop.f32.mrb[0].mxu0
      %2210 = vmatprep.mubr.f32.mxu0 0.0
      %2211 = vmatmul.mubr.f32.gmra.mrb[0].mxu0 %v2074
      %v2212 = vpop.f32.mrb[0].mxu0
      %v2213 = vadd.f32 0.0, %v2212
      %v2214 = vpop.f32.mrb[0].mxu0
      %2215 = vmatprep.mubr.f32.mxu0 0.0
      %2216 = vmatmul.mubr.f32.gmra.mrb[0].mxu0 %v2075
      %v2217 = vpop.f32.mrb[0].mxu0
      %v2218 = vadd.f32 0.0, %v2217
      %v2219 = vpop.f32.mrb[0].mxu0
      %2220 = vmatprep.mubr.f32.mxu0 0.0
      %2221 = vmatmul.mubr.f32.gmra.mrb[0].mxu0 %v2076
      %v2222 = vpop.f32.mrb[0].mxu0
      %v2223 = vadd.f32 0.0, %v2222
      %v2224 = vpop.f32.mrb[0].mxu0
      %2225 = vmatprep.mubr.f32.mxu0 0.0
      %2226 = vmatmul.mubr.f32.gmra.mrb[0].mxu0 %v2077
      %v2227 = vpop.f32.mrb[0].mxu0
      %v2228 = vadd.f32 0.0, %v2227
      %v2229 = vpop.f32.mrb[0].mxu0
      %2230 = vdwg.mxu0
      %v2231 = vmul.f32 %v2193, 0.5
      %v2232 = vmul.f32 %v2198, 0.5
      %v2233 = vmul.f32 %v2203, 0.5
      %v2234 = vmul.f32 %v2208, 0.5
      %v2235 = vmul.f32 %v2213, 0.5
      %v2236 = vmul.f32 %v2218, 0.5
      %v2237 = vmul.f32 %v2223, 0.5
      %v2238 = vmul.f32 %v2228, 0.5
      %2247 = vrot.lane.b32.xlu0 %v579, 96
      %v2248 = vpop.permute.xlu0 %2247
      %2249 = vrot.lane.b32.xlu0 %v585, 96
      %v2250 = vpop.permute.xlu0 %2249
      %2251 = vrot.lane.b32.xlu0 %v591, 96
      %v2252 = vpop.permute.xlu0 %2251
      %2253 = vrot.lane.b32.xlu0 %v597, 96
      %v2254 = vpop.permute.xlu0 %2253
      %2255 = vrot.lane.b32.xlu0 %v603, 96
      %v2256 = vpop.permute.xlu0 %2255
      %2257 = vrot.lane.b32.xlu0 %v609, 96
      %v2258 = vpop.permute.xlu0 %2257
      %2259 = vrot.lane.b32.xlu0 %v615, 96
      %v2260 = vpop.permute.xlu0 %2259
      %2261 = vrot.lane.b32.xlu0 %v621, 96
      %v2262 = vpop.permute.xlu0 %2261
      %v2271 = vadd.f32 %v2231, %v2248
      %v2272 = vadd.f32 %v2232, %v2250
      %v2273 = vadd.f32 %v2233, %v2252
      %v2274 = vadd.f32 %v2234, %v2254
      %v2275 = vadd.f32 %v2235, %v2256
      %v2276 = vadd.f32 %v2236, %v2258
      %v2277 = vadd.f32 %v2237, %v2260
      %v2278 = vadd.f32 %v2238, %v2262
      %v2279 = vld [vmem:[%s4] sm:$0xff]
      %v2280 = vld [vmem:[%s4 + $0x8] sm:$0xff]
      %v2281 = vld [vmem:[%s4 + $0x10] sm:$0xff]
      %v2282 = vld [vmem:[%s4 + $0x18] sm:$0xff]
      %2283 = vrot.lane.b32.xlu0 %v579, 64
      %v2284 = vpop.permute.xlu0 %2283
      %2285 = vrot.lane.b32.xlu0 %v585, 64
      %v2286 = vpop.permute.xlu0 %2285
      %2287 = vrot.lane.b32.xlu0 %v591, 64
      %v2288 = vpop.permute.xlu0 %2287
      %2289 = vrot.lane.b32.xlu0 %v597, 64
      %v2290 = vpop.permute.xlu0 %2289
      %2291 = vrot.lane.b32.xlu0 %v603, 64
      %v2292 = vpop.permute.xlu0 %2291
      %2293 = vrot.lane.b32.xlu0 %v609, 64
      %v2294 = vpop.permute.xlu0 %2293
      %2295 = vrot.lane.b32.xlu0 %v615, 64
      %v2296 = vpop.permute.xlu0 %2295
      %2297 = vrot.lane.b32.xlu0 %v621, 64
      %v2298 = vpop.permute.xlu0 %2297
      %v2308 = vsel %vm372, %v2030, 0
      %v2311 = vsel %vm372, %v2031, 0
      %v2314 = vsel %vm372, %v2032, 0
      %v2317 = vsel %vm372, %v2033, 0
      %v2320 = vsel %vm372, %v2034, 0
      %v2323 = vsel %vm372, %v2035, 0
      %v2326 = vsel %vm372, %v2036, 0
      %v2329 = vsel %vm372, %v2037, 0
      %v2332 = vsel %vm372, %v2271, 0
      %v2335 = vsel %vm372, %v2272, 0
      %v2338 = vsel %vm372, %v2273, 0
      %v2341 = vsel %vm372, %v2274, 0
      %v2344 = vsel %vm372, %v2275, 0
      %v2347 = vsel %vm372, %v2276, 0
      %v2350 = vsel %vm372, %v2277, 0
      %v2353 = vsel %vm372, %v2278, 0
      %2355 = vmatprep.subr.mxu0 0.0
      %2356 = vmatpush1.msra.mxu0 %v2279
      %2357 = vmatprep.subr.mxu0 0.0
      %2358 = vmatpush1.msra.mxu0 %v2280
      %2359 = vmatprep.subr.mxu0 0.0
      %2360 = vmatpush1.msra.mxu0 %v2281
      %2361 = vmatprep.subr.mxu0 0.0
      %2362 = vmatpush1.msra.mxu0 %v2282
      %2363 = vmatprep.subr.mxu0 0.0
      %2364 = vmatpush1.msra.mxu0 0.0
      %2365 = vmatprep.subr.mxu0 0.0
      %2366 = vmatpush1.msra.mxu0 0.0
      %2367 = vmatprep.subr.mxu0 0.0
      %2368 = vmatpush1.msra.mxu0 0.0
      %2369 = vmatprep.subr.mxu0 0.0
      %2370 = vmatpush1.msra.mxu0 0.0
      %2371 = vmatprep.subr.mxu0 0.0
      %2372 = vmatpush1.msra.mxu0 0.0
      %2373 = vmatprep.subr.mxu0 0.0
      %2374 = vmatpush1.msra.mxu0 0.0
      %2375 = vmatprep.subr.mxu0 0.0
      %2376 = vmatpush1.msra.mxu0 0.0
      %2377 = vmatprep.subr.mxu0 0.0
      %2378 = vmatpush1.msra.mxu0 0.0
      %2379 = vmatprep.subr.mxu0 0.0
      %2380 = vmatpush1.msra.mxu0 0.0
      %2381 = vmatprep.subr.mxu0 0.0
      %2382 = vmatpush1.msra.mxu0 0.0
      %2383 = vmatprep.subr.mxu0 0.0
      %2384 = vmatpush1.msra.mxu0 0.0
      %2385 = vmatprep.subr.mxu0 0.0
      %2386 = vmatpush1.msra.mxu0 0.0
      %2387 = vmatprep.subr.mxu0 0.0
      %2388 = vmatpush1.msra.mxu0 0.0
      %2389 = vmatprep.subr.mxu0 0.0
      %2390 = vmatpush1.msra.mxu0 0.0
      %2391 = vmatprep.subr.mxu0 0.0
      %2392 = vmatpush1.msra.mxu0 0.0
      %2393 = vmatprep.subr.mxu0 0.0
      %2394 = vmatpush1.msra.mxu0 0.0
      %2395 = vmatprep.subr.mxu0 0.0
      %2396 = vmatpush1.msra.mxu0 0.0
      %2397 = vmatprep.subr.mxu0 0.0
      %2398 = vmatpush1.msra.mxu0 0.0
      %2399 = vmatprep.subr.mxu0 0.0
      %2400 = vmatpush1.msra.mxu0 0.0
      %2401 = vmatprep.subr.mxu0 0.0
      %2402 = vmatpush1.msra.mxu0 0.0
      %2403 = vmatprep.subr.mxu0 0.0
      %2404 = vmatpush1.msra.mxu0 0.0
      %2405 = vmatprep.subr.mxu0 0.0
      %2406 = vmatpush1.msra.mxu0 0.0
      %2407 = vmatprep.subr.mxu0 0.0
      %2408 = vmatpush1.msra.mxu0 0.0
      %2409 = vmatprep.subr.mxu0 0.0
      %2410 = vmatpush1.msra.mxu0 0.0
      %2411 = vmatprep.subr.mxu0 0.0
      %2412 = vmatpush1.msra.mxu0 0.0
      %2413 = vmatprep.subr.mxu0 0.0
      %2414 = vmatpush1.msra.mxu0 0.0
      %2415 = vmatprep.subr.mxu0 0.0
      %2416 = vmatpush1.msra.mxu0 0.0
      %2417 = vmatprep.subr.mxu0 0.0
      %2418 = vmatpush1.msra.mxu0 0.0
      %2419 = vmatprep.mubr.f32.mxu0 0.0
      %2420 = vmatmul.mubr.f32.gmra.mrb[0].mxu0 %v2308
      %v2421 = vpop.f32.mrb[0].mxu0
      %v2422 = vadd.f32 %v2284, %v2421
      %v2423 = vpop.f32.mrb[0].mxu0
      %2424 = vmatprep.mubr.f32.mxu0 0.0
      %2425 = vmatmul.mubr.f32.gmra.mrb[0].mxu0 %v2311
      %v2426 = vpop.f32.mrb[0].mxu0
      %v2427 = vadd.f32 %v2286, %v2426
      %v2428 = vpop.f32.mrb[0].mxu0
      %2429 = vmatprep.mubr.f32.mxu0 0.0
      %2430 = vmatmul.mubr.f32.gmra.mrb[0].mxu0 %v2314
      %v2431 = vpop.f32.mrb[0].mxu0
      %v2432 = vadd.f32 %v2288, %v2431
      %v2433 = vpop.f32.mrb[0].mxu0
      %2434 = vmatprep.mubr.f32.mxu0 0.0
      %2435 = vmatmul.mubr.f32.gmra.mrb[0].mxu0 %v2317
      %v2436 = vpop.f32.mrb[0].mxu0
      %v2437 = vadd.f32 %v2290, %v2436
      %v2438 = vpop.f32.mrb[0].mxu0
      %2439 = vmatprep.mubr.f32.mxu0 0.0
      %2440 = vmatmul.mubr.f32.gmra.mrb[0].mxu0 %v2320
      %v2441 = vpop.f32.mrb[0].mxu0
      %v2442 = vadd.f32 %v2292, %v2441
      %v2443 = vpop.f32.mrb[0].mxu0
      %2444 = vmatprep.mubr.f32.mxu0 0.0
      %2445 = vmatmul.mubr.f32.gmra.mrb[0].mxu0 %v2323
      %v2446 = vpop.f32.mrb[0].mxu0
      %v2447 = vadd.f32 %v2294, %v2446
      %v2448 = vpop.f32.mrb[0].mxu0
      %2449 = vmatprep.mubr.f32.mxu0 0.0
      %2450 = vmatmul.mubr.f32.gmra.mrb[0].mxu0 %v2326
      %v2451 = vpop.f32.mrb[0].mxu0
      %v2452 = vadd.f32 %v2296, %v2451
      %v2453 = vpop.f32.mrb[0].mxu0
      %2454 = vmatprep.mubr.f32.mxu0 0.0
      %2455 = vmatmul.mubr.f32.gmra.mrb[0].mxu0 %v2329
      %v2456 = vpop.f32.mrb[0].mxu0
      %v2457 = vadd.f32 %v2298, %v2456
      %v2458 = vpop.f32.mrb[0].mxu0
      %2459 = vmatprep.mubr.f32.mxu0 0.0
      %2460 = vmatmul.mubr.f32.gmra.mrb[0].mxu0 %v2332
      %v2461 = vpop.f32.mrb[0].mxu0
      %v2462 = vadd.f32 %v2284, %v2461
      %v2463 = vpop.f32.mrb[0].mxu0
      %2464 = vmatprep.mubr.f32.mxu0 0.0
      %2465 = vmatmul.mubr.f32.gmra.mrb[0].mxu0 %v2335
      %v2466 = vpop.f32.mrb[0].mxu0
      %v2467 = vadd.f32 %v2286, %v2466
      %v2468 = vpop.f32.mrb[0].mxu0
      %2469 = vmatprep.mubr.f32.mxu0 0.0
      %2470 = vmatmul.mubr.f32.gmra.mrb[0].mxu0 %v2338
      %v2471 = vpop.f32.mrb[0].mxu0
      %v2472 = vadd.f32 %v2288, %v2471
      %v2473 = vpop.f32.mrb[0].mxu0
      %2474 = vmatprep.mubr.f32.mxu0 0.0
      %2475 = vmatmul.mubr.f32.gmra.mrb[0].mxu0 %v2341
      %v2476 = vpop.f32.mrb[0].mxu0
      %v2477 = vadd.f32 %v2290, %v2476
      %v2478 = vpop.f32.mrb[0].mxu0
      %2479 = vmatprep.mubr.f32.mxu0 0.0
      %2480 = vmatmul.mubr.f32.gmra.mrb[0].mxu0 %v2344
      %v2481 = vpop.f32.mrb[0].mxu0
      %v2482 = vadd.f32 %v2292, %v2481
      %v2483 = vpop.f32.mrb[0].mxu0
      %2484 = vmatprep.mubr.f32.mxu0 0.0
      %2485 = vmatmul.mubr.f32.gmra.mrb[0].mxu0 %v2347
      %v2486 = vpop.f32.mrb[0].mxu0
      %v2487 = vadd.f32 %v2294, %v2486
      %v2488 = vpop.f32.mrb[0].mxu0
      %2489 = vmatprep.mubr.f32.mxu0 0.0
      %2490 = vmatmul.mubr.f32.gmra.mrb[0].mxu0 %v2350
      %v2491 = vpop.f32.mrb[0].mxu0
      %v2492 = vadd.f32 %v2296, %v2491
      %v2493 = vpop.f32.mrb[0].mxu0
      %2494 = vmatprep.mubr.f32.mxu0 0.0
      %2495 = vmatmul.mubr.f32.gmra.mrb[0].mxu0 %v2353
      %v2496 = vpop.f32.mrb[0].mxu0
      %v2497 = vadd.f32 %v2298, %v2496
      %v2498 = vpop.f32.mrb[0].mxu0
      %2499 = vdwg.mxu0
      %v2500 = vxor.u32 %v2422, 2147483648
      %v2501 = vxor.u32 %v2427, 2147483648
      %v2502 = vxor.u32 %v2432, 2147483648
      %v2503 = vxor.u32 %v2437, 2147483648
      %v2504 = vxor.u32 %v2442, 2147483648
      %v2505 = vxor.u32 %v2447, 2147483648
      %v2506 = vxor.u32 %v2452, 2147483648
      %v2507 = vxor.u32 %v2457, 2147483648
      %v2508 = vxor.u32 %v2462, 2147483648
      %v2509 = vxor.u32 %v2467, 2147483648
      %v2510 = vxor.u32 %v2472, 2147483648
      %v2511 = vxor.u32 %v2477, 2147483648
      %v2512 = vxor.u32 %v2482, 2147483648
      %v2513 = vxor.u32 %v2487, 2147483648
      %v2514 = vxor.u32 %v2492, 2147483648
      %v2515 = vxor.u32 %v2497, 2147483648
      %v2516 = vmul.f32 %v2500, 1.442695
      %v2517 = vpow.pop %v2516
      %v2518 = vmul.f32 %v2501, 1.442695
      %v2519 = vpow.pop %v2518
      %v2520 = vmul.f32 %v2502, 1.442695
      %v2521 = vpow.pop %v2520
      %v2522 = vmul.f32 %v2503, 1.442695
      %v2523 = vpow.pop %v2522
      %v2524 = vmul.f32 %v2504, 1.442695
      %v2525 = vpow.pop %v2524
      %v2526 = vmul.f32 %v2505, 1.442695
      %v2527 = vpow.pop %v2526
      %v2528 = vmul.f32 %v2506, 1.442695
      %v2529 = vpow.pop %v2528
      %v2530 = vmul.f32 %v2507, 1.442695
      %v2531 = vpow.pop %v2530
      %v2532 = vmul.f32 %v2508, 1.442695
      %v2533 = vpow.pop %v2532
      %v2534 = vmul.f32 %v2509, 1.442695
      %v2535 = vpow.pop %v2534
      %v2536 = vmul.f32 %v2510, 1.442695
      %v2537 = vpow.pop %v2536
      %v2538 = vmul.f32 %v2511, 1.442695
      %v2539 = vpow.pop %v2538
      %v2540 = vmul.f32 %v2512, 1.442695
      %v2541 = vpow.pop %v2540
      %v2542 = vmul.f32 %v2513, 1.442695
      %v2543 = vpow.pop %v2542
      %v2544 = vmul.f32 %v2514, 1.442695
      %v2545 = vpow.pop %v2544
      %v2546 = vmul.f32 %v2515, 1.442695
      %v2547 = vpow.pop %v2546
      %v2548 = vadd.f32 %v2517, 1.0
      %v2549 = vadd.f32 %v2519, 1.0
      %v2550 = vadd.f32 %v2521, 1.0
      %v2551 = vadd.f32 %v2523, 1.0
      %v2552 = vadd.f32 %v2525, 1.0
      %v2553 = vadd.f32 %v2527, 1.0
      %v2554 = vadd.f32 %v2529, 1.0
      %v2555 = vadd.f32 %v2531, 1.0
      %v2556 = vadd.f32 %v2533, 1.0
      %v2557 = vadd.f32 %v2535, 1.0
      %v2558 = vadd.f32 %v2537, 1.0
      %v2559 = vadd.f32 %v2539, 1.0
      %v2560 = vadd.f32 %v2541, 1.0
      %v2561 = vadd.f32 %v2543, 1.0
      %v2562 = vadd.f32 %v2545, 1.0
      %v2563 = vadd.f32 %v2547, 1.0
      %v2564 = vrcp.pop %v2548
      %v2565 = vmul.f32 1.0, %v2564
      %v2566 = vrcp.pop %v2549
      %v2567 = vmul.f32 1.0, %v2566
      %v2568 = vrcp.pop %v2550
      %v2569 = vmul.f32 1.0, %v2568
      %v2570 = vrcp.pop %v2551
      %v2571 = vmul.f32 1.0, %v2570
      %v2572 = vrcp.pop %v2552
      %v2573 = vmul.f32 1.0, %v2572
      %v2574 = vrcp.pop %v2553
      %v2575 = vmul.f32 1.0, %v2574
      %v2576 = vrcp.pop %v2554
      %v2577 = vmul.f32 1.0, %v2576
      %v2578 = vrcp.pop %v2555
      %v2579 = vmul.f32 1.0, %v2578
      %v2580 = vrcp.pop %v2556
      %v2581 = vmul.f32 1.0, %v2580
      %v2582 = vrcp.pop %v2557
      %v2583 = vmul.f32 1.0, %v2582
      %v2584 = vrcp.pop %v2558
      %v2585 = vmul.f32 1.0, %v2584
      %v2586 = vrcp.pop %v2559
      %v2587 = vmul.f32 1.0, %v2586
      %v2588 = vrcp.pop %v2560
      %v2589 = vmul.f32 1.0, %v2588
      %v2590 = vrcp.pop %v2561
      %v2591 = vmul.f32 1.0, %v2590
      %v2592 = vrcp.pop %v2562
      %v2593 = vmul.f32 1.0, %v2592
      %v2594 = vrcp.pop %v2563
      %v2595 = vmul.f32 1.0, %v2594
      %v2596 = vtanh.pop %v2030
      %v2597 = vtanh.pop %v2031
      %v2598 = vtanh.pop %v2032
      %v2599 = vtanh.pop %v2033
      %v2600 = vtanh.pop %v2034
      %v2601 = vtanh.pop %v2035
      %v2602 = vtanh.pop %v2036
      %v2603 = vtanh.pop %v2037
      %v2604 = vtanh.pop %v2271
      %v2605 = vtanh.pop %v2272
      %v2606 = vtanh.pop %v2273
      %v2607 = vtanh.pop %v2274
      %v2608 = vtanh.pop %v2275
      %v2609 = vtanh.pop %v2276
      %v2610 = vtanh.pop %v2277
      %v2611 = vtanh.pop %v2278
      %v2612 = vmul.f32 %v2596, %v2565
      %v2613 = vmul.f32 %v2597, %v2567
      %v2614 = vmul.f32 %v2598, %v2569
      %v2615 = vmul.f32 %v2599, %v2571
      %v2616 = vmul.f32 %v2600, %v2573
      %v2617 = vmul.f32 %v2601, %v2575
      %v2618 = vmul.f32 %v2602, %v2577
      %v2619 = vmul.f32 %v2603, %v2579
      %v2620 = vmul.f32 %v2604, %v2581
      %v2621 = vmul.f32 %v2605, %v2583
      %v2622 = vmul.f32 %v2606, %v2585
      %v2623 = vmul.f32 %v2607, %v2587
      %v2624 = vmul.f32 %v2608, %v2589
      %v2625 = vmul.f32 %v2609, %v2591
      %v2626 = vmul.f32 %v2610, %v2593
      %v2627 = vmul.f32 %v2611, %v2595
      %v2628 = vsub.f32 1.0, %v2565
      %v2629 = vsub.f32 1.0, %v2567
      %v2630 = vsub.f32 1.0, %v2569
      %v2631 = vsub.f32 1.0, %v2571
      %v2632 = vsub.f32 1.0, %v2573
      %v2633 = vsub.f32 1.0, %v2575
      %v2634 = vsub.f32 1.0, %v2577
      %v2635 = vsub.f32 1.0, %v2579
      %v2636 = vsub.f32 1.0, %v2581
      %v2637 = vsub.f32 1.0, %v2583
      %v2638 = vsub.f32 1.0, %v2585
      %v2639 = vsub.f32 1.0, %v2587
      %v2640 = vsub.f32 1.0, %v2589
      %v2641 = vsub.f32 1.0, %v2591
      %v2642 = vsub.f32 1.0, %v2593
      %v2643 = vsub.f32 1.0, %v2595
      %v2644 = vmul.f32 %v326, %v2628
      %v2645 = vmul.f32 %v327, %v2629
      %v2646 = vmul.f32 %v328, %v2630
      %v2647 = vmul.f32 %v329, %v2631
      %v2648 = vmul.f32 %v330, %v2632
      %v2649 = vmul.f32 %v331, %v2633
      %v2650 = vmul.f32 %v332, %v2634
      %v2651 = vmul.f32 %v333, %v2635
      %v2652 = vmul.f32 %v326, %v2636
      %v2653 = vmul.f32 %v327, %v2637
      %v2654 = vmul.f32 %v328, %v2638
      %v2655 = vmul.f32 %v329, %v2639
      %v2656 = vmul.f32 %v330, %v2640
      %v2657 = vmul.f32 %v331, %v2641
      %v2658 = vmul.f32 %v332, %v2642
      %v2659 = vmul.f32 %v333, %v2643
      %v2660 = vadd.f32 %v2612, %v2644
      %v2661 = vadd.f32 %v2613, %v2645
      %v2662 = vadd.f32 %v2614, %v2646
      %v2663 = vadd.f32 %v2615, %v2647
      %v2664 = vadd.f32 %v2616, %v2648
      %v2665 = vadd.f32 %v2617, %v2649
      %v2666 = vadd.f32 %v2618, %v2650
      %v2667 = vadd.f32 %v2619, %v2651
      %v2668 = vadd.f32 %v2620, %v2652
      %v2669 = vadd.f32 %v2621, %v2653
      %v2670 = vadd.f32 %v2622, %v2654
      %v2671 = vadd.f32 %v2623, %v2655
      %v2672 = vadd.f32 %v2624, %v2656
      %v2673 = vadd.f32 %v2625, %v2657
      %v2674 = vadd.f32 %v2626, %v2658
      %v2675 = vadd.f32 %v2627, %v2659
      %v2676 = vld [vmem:[%s5] sm:$0xff]
      %v2677 = vld [vmem:[%s5 + $0x8] sm:$0xff]
      %v2678 = vld [vmem:[%s5 + $0x10] sm:$0xff]
      %v2679 = vld [vmem:[%s5 + $0x18] sm:$0xff]
      %v2680 = vld [vmem:[%s5 + $0x20] sm:$0xff]
      %v2681 = vld [vmem:[%s5 + $0x28] sm:$0xff]
      %v2682 = vld [vmem:[%s5 + $0x30] sm:$0xff]
      %v2683 = vld [vmem:[%s5 + $0x38] sm:$0xff]
      %v2684 = vld [vmem:[%s6] sm:$0x3]
      %v2686 = vlaneseq
      %v2687 = vshrl.u32 %v2686, 7
      %v2688 = vsub.s32 0, %v2687
      %v2689 = vrot.slane %v2684, %v2688
      %v2690 = vlaneseq
      %v2691 = vshrl.u32 %v2690, 7
      %v2692 = vsub.s32 1, %v2691
      %v2693 = vrot.slane %v2684, %v2692
      %v2697 = vsel %vm372, %v2660, 0
      %v2700 = vsel %vm372, %v2661, 0
      %v2703 = vsel %vm372, %v2662, 0
      %v2706 = vsel %vm372, %v2663, 0
      %v2709 = vsel %vm372, %v2664, 0
      %v2712 = vsel %vm372, %v2665, 0
      %v2715 = vsel %vm372, %v2666, 0
      %v2718 = vsel %vm372, %v2667, 0
      %v2721 = vsel %vm372, %v2668, 0
      %v2724 = vsel %vm372, %v2669, 0
      %v2727 = vsel %vm372, %v2670, 0
      %v2730 = vsel %vm372, %v2671, 0
      %v2733 = vsel %vm372, %v2672, 0
      %v2736 = vsel %vm372, %v2673, 0
      %v2739 = vsel %vm372, %v2674, 0
      %v2742 = vsel %vm372, %v2675, 0
      %2744 = vmatprep.subr.mxu0 %v2677
      %2745 = vmatpush1.msra.mxu0 %v2676
      %2746 = vmatprep.subr.mxu0 %v2679
      %2747 = vmatpush1.msra.mxu0 %v2678
      %2748 = vmatprep.subr.mxu0 %v2681
      %2749 = vmatpush1.msra.mxu0 %v2680
      %2750 = vmatprep.subr.mxu0 %v2683
      %2751 = vmatpush1.msra.mxu0 %v2682
      %2752 = vmatprep.subr.mxu0 0.0
      %2753 = vmatpush1.msra.mxu0 0.0
      %2754 = vmatprep.subr.mxu0 0.0
      %2755 = vmatpush1.msra.mxu0 0.0
      %2756 = vmatprep.subr.mxu0 0.0
      %2757 = vmatpush1.msra.mxu0 0.0
      %2758 = vmatprep.subr.mxu0 0.0
      %2759 = vmatpush1.msra.mxu0 0.0
      %2760 = vmatprep.subr.mxu0 0.0
      %2761 = vmatpush1.msra.mxu0 0.0
      %2762 = vmatprep.subr.mxu0 0.0
      %2763 = vmatpush1.msra.mxu0 0.0
      %2764 = vmatprep.subr.mxu0 0.0
      %2765 = vmatpush1.msra.mxu0 0.0
      %2766 = vmatprep.subr.mxu0 0.0
      %2767 = vmatpush1.msra.mxu0 0.0
      %2768 = vmatprep.subr.mxu0 0.0
      %2769 = vmatpush1.msra.mxu0 0.0
      %2770 = vmatprep.subr.mxu0 0.0
      %2771 = vmatpush1.msra.mxu0 0.0
      %2772 = vmatprep.subr.mxu0 0.0
      %2773 = vmatpush1.msra.mxu0 0.0
      %2774 = vmatprep.subr.mxu0 0.0
      %2775 = vmatpush1.msra.mxu0 0.0
      %2776 = vmatprep.subr.mxu0 0.0
      %2777 = vmatpush1.msra.mxu0 0.0
      %2778 = vmatprep.subr.mxu0 0.0
      %2779 = vmatpush1.msra.mxu0 0.0
      %2780 = vmatprep.subr.mxu0 0.0
      %2781 = vmatpush1.msra.mxu0 0.0
      %2782 = vmatprep.subr.mxu0 0.0
      %2783 = vmatpush1.msra.mxu0 0.0
      %2784 = vmatprep.subr.mxu0 0.0
      %2785 = vmatpush1.msra.mxu0 0.0
      %2786 = vmatprep.subr.mxu0 0.0
      %2787 = vmatpush1.msra.mxu0 0.0
      %2788 = vmatprep.subr.mxu0 0.0
      %2789 = vmatpush1.msra.mxu0 0.0
      %2790 = vmatprep.subr.mxu0 0.0
      %2791 = vmatpush1.msra.mxu0 0.0
      %2792 = vmatprep.subr.mxu0 0.0
      %2793 = vmatpush1.msra.mxu0 0.0
      %2794 = vmatprep.subr.mxu0 0.0
      %2795 = vmatpush1.msra.mxu0 0.0
      %2796 = vmatprep.subr.mxu0 0.0
      %2797 = vmatpush1.msra.mxu0 0.0
      %2798 = vmatprep.subr.mxu0 0.0
      %2799 = vmatpush1.msra.mxu0 0.0
      %2800 = vmatprep.subr.mxu0 0.0
      %2801 = vmatpush1.msra.mxu0 0.0
      %2802 = vmatprep.subr.mxu0 0.0
      %2803 = vmatpush1.msra.mxu0 0.0
      %2804 = vmatprep.subr.mxu0 0.0
      %2805 = vmatpush1.msra.mxu0 0.0
      %2806 = vmatprep.subr.mxu0 0.0
      %2807 = vmatpush1.msra.mxu0 0.0
      %2808 = vmatprep.mubr.f32.mxu0 0.0
      %2809 = vmatmul.mubr.f32.gmra.mrb[0].mxu0 %v2697
      %v2810 = vpop.f32.mrb[0].mxu0
      %v2811 = vadd.f32 %v2689, %v2810
      %v2812 = vpop.f32.mrb[0].mxu0
      %v2813 = vadd.f32 %v2693, %v2812
      %2814 = vmatprep.mubr.f32.mxu0 0.0
      %2815 = vmatmul.mubr.f32.gmra.mrb[0].mxu0 %v2700
      %v2816 = vpop.f32.mrb[0].mxu0
      %v2817 = vadd.f32 %v2689, %v2816
      %v2818 = vpop.f32.mrb[0].mxu0
      %v2819 = vadd.f32 %v2693, %v2818
      %2820 = vmatprep.mubr.f32.mxu0 0.0
      %2821 = vmatmul.mubr.f32.gmra.mrb[0].mxu0 %v2703
      %v2822 = vpop.f32.mrb[0].mxu0
      %v2823 = vadd.f32 %v2689, %v2822
      %v2824 = vpop.f32.mrb[0].mxu0
      %v2825 = vadd.f32 %v2693, %v2824
      %2826 = vmatprep.mubr.f32.mxu0 0.0
      %2827 = vmatmul.mubr.f32.gmra.mrb[0].mxu0 %v2706
      %v2828 = vpop.f32.mrb[0].mxu0
      %v2829 = vadd.f32 %v2689, %v2828
      %v2830 = vpop.f32.mrb[0].mxu0
      %v2831 = vadd.f32 %v2693, %v2830
      %2832 = vmatprep.mubr.f32.mxu0 0.0
      %2833 = vmatmul.mubr.f32.gmra.mrb[0].mxu0 %v2709
      %v2834 = vpop.f32.mrb[0].mxu0
      %v2835 = vadd.f32 %v2689, %v2834
      %v2836 = vpop.f32.mrb[0].mxu0
      %v2837 = vadd.f32 %v2693, %v2836
      %2838 = vmatprep.mubr.f32.mxu0 0.0
      %2839 = vmatmul.mubr.f32.gmra.mrb[0].mxu0 %v2712
      %v2840 = vpop.f32.mrb[0].mxu0
      %v2841 = vadd.f32 %v2689, %v2840
      %v2842 = vpop.f32.mrb[0].mxu0
      %v2843 = vadd.f32 %v2693, %v2842
      %2844 = vmatprep.mubr.f32.mxu0 0.0
      %2845 = vmatmul.mubr.f32.gmra.mrb[0].mxu0 %v2715
      %v2846 = vpop.f32.mrb[0].mxu0
      %v2847 = vadd.f32 %v2689, %v2846
      %v2848 = vpop.f32.mrb[0].mxu0
      %v2849 = vadd.f32 %v2693, %v2848
      %2850 = vmatprep.mubr.f32.mxu0 0.0
      %2851 = vmatmul.mubr.f32.gmra.mrb[0].mxu0 %v2718
      %v2852 = vpop.f32.mrb[0].mxu0
      %v2853 = vadd.f32 %v2689, %v2852
      %v2854 = vpop.f32.mrb[0].mxu0
      %v2855 = vadd.f32 %v2693, %v2854
      %2856 = vmatprep.mubr.f32.mxu0 0.0
      %2857 = vmatmul.mubr.f32.gmra.mrb[0].mxu0 %v2721
      %v2858 = vpop.f32.mrb[0].mxu0
      %v2859 = vadd.f32 %v2689, %v2858
      %v2860 = vpop.f32.mrb[0].mxu0
      %v2861 = vadd.f32 %v2693, %v2860
      %2862 = vmatprep.mubr.f32.mxu0 0.0
      %2863 = vmatmul.mubr.f32.gmra.mrb[0].mxu0 %v2724
      %v2864 = vpop.f32.mrb[0].mxu0
      %v2865 = vadd.f32 %v2689, %v2864
      %v2866 = vpop.f32.mrb[0].mxu0
      %v2867 = vadd.f32 %v2693, %v2866
      %2868 = vmatprep.mubr.f32.mxu0 0.0
      %2869 = vmatmul.mubr.f32.gmra.mrb[0].mxu0 %v2727
      %v2870 = vpop.f32.mrb[0].mxu0
      %v2871 = vadd.f32 %v2689, %v2870
      %v2872 = vpop.f32.mrb[0].mxu0
      %v2873 = vadd.f32 %v2693, %v2872
      %2874 = vmatprep.mubr.f32.mxu0 0.0
      %2875 = vmatmul.mubr.f32.gmra.mrb[0].mxu0 %v2730
      %v2876 = vpop.f32.mrb[0].mxu0
      %v2877 = vadd.f32 %v2689, %v2876
      %v2878 = vpop.f32.mrb[0].mxu0
      %v2879 = vadd.f32 %v2693, %v2878
      %2880 = vmatprep.mubr.f32.mxu0 0.0
      %2881 = vmatmul.mubr.f32.gmra.mrb[0].mxu0 %v2733
      %v2882 = vpop.f32.mrb[0].mxu0
      %v2883 = vadd.f32 %v2689, %v2882
      %v2884 = vpop.f32.mrb[0].mxu0
      %v2885 = vadd.f32 %v2693, %v2884
      %2886 = vmatprep.mubr.f32.mxu0 0.0
      %2887 = vmatmul.mubr.f32.gmra.mrb[0].mxu0 %v2736
      %v2888 = vpop.f32.mrb[0].mxu0
      %v2889 = vadd.f32 %v2689, %v2888
      %v2890 = vpop.f32.mrb[0].mxu0
      %v2891 = vadd.f32 %v2693, %v2890
      %2892 = vmatprep.mubr.f32.mxu0 0.0
      %2893 = vmatmul.mubr.f32.gmra.mrb[0].mxu0 %v2739
      %v2894 = vpop.f32.mrb[0].mxu0
      %v2895 = vadd.f32 %v2689, %v2894
      %v2896 = vpop.f32.mrb[0].mxu0
      %v2897 = vadd.f32 %v2693, %v2896
      %2898 = vmatprep.mubr.f32.mxu0 0.0
      %2899 = vmatmul.mubr.f32.gmra.mrb[0].mxu0 %v2742
      %v2900 = vpop.f32.mrb[0].mxu0
      %v2901 = vadd.f32 %v2689, %v2900
      %v2902 = vpop.f32.mrb[0].mxu0
      %v2903 = vadd.f32 %v2693, %v2902
      %2904 = vdwg.mxu0
      %v2905 = vtanh.pop %v2811
      %v2906 = vtanh.pop %v2813
      %v2907 = vtanh.pop %v2817
      %v2908 = vtanh.pop %v2819
      %v2909 = vtanh.pop %v2823
      %v2910 = vtanh.pop %v2825
      %v2911 = vtanh.pop %v2829
      %v2912 = vtanh.pop %v2831
      %v2913 = vtanh.pop %v2835
      %v2914 = vtanh.pop %v2837
      %v2915 = vtanh.pop %v2841
      %v2916 = vtanh.pop %v2843
      %v2917 = vtanh.pop %v2847
      %v2918 = vtanh.pop %v2849
      %v2919 = vtanh.pop %v2853
      %v2920 = vtanh.pop %v2855
      %v2921 = vtanh.pop %v2859
      %v2922 = vtanh.pop %v2861
      %v2923 = vtanh.pop %v2865
      %v2924 = vtanh.pop %v2867
      %v2925 = vtanh.pop %v2871
      %v2926 = vtanh.pop %v2873
      %v2927 = vtanh.pop %v2877
      %v2928 = vtanh.pop %v2879
      %v2929 = vtanh.pop %v2883
      %v2930 = vtanh.pop %v2885
      %v2931 = vtanh.pop %v2889
      %v2932 = vtanh.pop %v2891
      %v2933 = vtanh.pop %v2895
      %v2934 = vtanh.pop %v2897
      %v2935 = vtanh.pop %v2901
      %v2936 = vtanh.pop %v2903
      %v2937 = vld [vmem:[%s7] sm:$0xff]
      %v2938 = vld [vmem:[%s7 + $0x8] sm:$0xff]
      %v2939 = vld [vmem:[%s7 + $0x10] sm:$0xff]
      %v2940 = vld [vmem:[%s7 + $0x18] sm:$0xff]
      %v2941 = vld [vmem:[%s7 + $0x20] sm:$0xff]
      %v2942 = vld [vmem:[%s7 + $0x28] sm:$0xff]
      %v2943 = vld [vmem:[%s7 + $0x30] sm:$0xff]
      %v2944 = vld [vmem:[%s7 + $0x38] sm:$0xff]
      %v2945 = vld [vmem:[%s7 + $0x40] sm:$0xff]
      %v2946 = vld [vmem:[%s7 + $0x48] sm:$0xff]
      %v2947 = vld [vmem:[%s7 + $0x50] sm:$0xff]
      %v2948 = vld [vmem:[%s7 + $0x58] sm:$0xff]
      %v2949 = vld [vmem:[%s7 + $0x60] sm:$0xff]
      %v2950 = vld [vmem:[%s7 + $0x68] sm:$0xff]
      %v2951 = vld [vmem:[%s7 + $0x70] sm:$0xff]
      %v2952 = vld [vmem:[%s7 + $0x78] sm:$0xff]
      %v2953 = vld [vmem:[%s7 + $0x80] sm:$0xff]
      %v2954 = vld [vmem:[%s7 + $0x88] sm:$0xff]
      %v2955 = vld [vmem:[%s7 + $0x90] sm:$0xff]
      %v2956 = vld [vmem:[%s7 + $0x98] sm:$0xff]
      %v2957 = vld [vmem:[%s7 + $0xa0] sm:$0xff]
      %v2958 = vld [vmem:[%s7 + $0xa8] sm:$0xff]
      %v2959 = vld [vmem:[%s7 + $0xb0] sm:$0xff]
      %v2960 = vld [vmem:[%s7 + $0xb8] sm:$0xff]
      %v2961 = vld [vmem:[%s7 + $0xc0] sm:$0xff]
      %v2962 = vld [vmem:[%s7 + $0xc8] sm:$0xff]
      %v2963 = vld [vmem:[%s7 + $0xd0] sm:$0xff]
      %v2964 = vld [vmem:[%s7 + $0xd8] sm:$0xff]
      %v2965 = vld [vmem:[%s7 + $0xe0] sm:$0xff]
      %v2966 = vld [vmem:[%s7 + $0xe8] sm:$0xff]
      %v2967 = vld [vmem:[%s7 + $0xf0] sm:$0xff]
      %v2968 = vld [vmem:[%s7 + $0xf8] sm:$0xff]
      %2969 = vmatprep.subr.mxu0 0.0
      %2970 = vmatpush1.msra.mxu0 %v2937
      %2971 = vmatprep.subr.mxu0 0.0
      %2972 = vmatpush1.msra.mxu0 %v2938
      %2973 = vmatprep.subr.mxu0 0.0
      %2974 = vmatpush1.msra.mxu0 %v2939
      %2975 = vmatprep.subr.mxu0 0.0
      %2976 = vmatpush1.msra.mxu0 %v2940
      %2977 = vmatprep.subr.mxu0 0.0
      %2978 = vmatpush1.msra.mxu0 %v2941
      %2979 = vmatprep.subr.mxu0 0.0
      %2980 = vmatpush1.msra.mxu0 %v2942
      %2981 = vmatprep.subr.mxu0 0.0
      %2982 = vmatpush1.msra.mxu0 %v2943
      %2983 = vmatprep.subr.mxu0 0.0
      %2984 = vmatpush1.msra.mxu0 %v2944
      %2985 = vmatprep.subr.mxu0 0.0
      %2986 = vmatpush1.msra.mxu0 %v2945
      %2987 = vmatprep.subr.mxu0 0.0
      %2988 = vmatpush1.msra.mxu0 %v2946
      %2989 = vmatprep.subr.mxu0 0.0
      %2990 = vmatpush1.msra.mxu0 %v2947
      %2991 = vmatprep.subr.mxu0 0.0
      %2992 = vmatpush1.msra.mxu0 %v2948
      %2993 = vmatprep.subr.mxu0 0.0
      %2994 = vmatpush1.msra.mxu0 %v2949
      %2995 = vmatprep.subr.mxu0 0.0
      %2996 = vmatpush1.msra.mxu0 %v2950
      %2997 = vmatprep.subr.mxu0 0.0
      %2998 = vmatpush1.msra.mxu0 %v2951
      %2999 = vmatprep.subr.mxu0 0.0
      %3000 = vmatpush1.msra.mxu0 %v2952
      %3001 = vmatprep.subr.mxu0 0.0
      %3002 = vmatpush1.msra.mxu0 %v2953
      %3003 = vmatprep.subr.mxu0 0.0
      %3004 = vmatpush1.msra.mxu0 %v2954
      %3005 = vmatprep.subr.mxu0 0.0
      %3006 = vmatpush1.msra.mxu0 %v2955
      %3007 = vmatprep.subr.mxu0 0.0
      %3008 = vmatpush1.msra.mxu0 %v2956
      %3009 = vmatprep.subr.mxu0 0.0
      %3010 = vmatpush1.msra.mxu0 %v2957
      %3011 = vmatprep.subr.mxu0 0.0
      %3012 = vmatpush1.msra.mxu0 %v2958
      %3013 = vmatprep.subr.mxu0 0.0
      %3014 = vmatpush1.msra.mxu0 %v2959
      %3015 = vmatprep.subr.mxu0 0.0
      %3016 = vmatpush1.msra.mxu0 %v2960
      %3017 = vmatprep.subr.mxu0 0.0
      %3018 = vmatpush1.msra.mxu0 %v2961
      %3019 = vmatprep.subr.mxu0 0.0
      %3020 = vmatpush1.msra.mxu0 %v2962
      %3021 = vmatprep.subr.mxu0 0.0
      %3022 = vmatpush1.msra.mxu0 %v2963
      %3023 = vmatprep.subr.mxu0 0.0
      %3024 = vmatpush1.msra.mxu0 %v2964
      %3025 = vmatprep.subr.mxu0 0.0
      %3026 = vmatpush1.msra.mxu0 %v2965
      %3027 = vmatprep.subr.mxu0 0.0
      %3028 = vmatpush1.msra.mxu0 %v2966
      %3029 = vmatprep.subr.mxu0 0.0
      %3030 = vmatpush1.msra.mxu0 %v2967
      %3031 = vmatprep.subr.mxu0 0.0
      %3032 = vmatpush1.msra.mxu0 %v2968
      %3033 = vmatprep.mubr.f32.mxu0 %v2906
      %3034 = vmatmul.mubr.f32.gmra.mrb[0].mxu0 %v2905
      %v3035 = vpop.f32.mrb[0].mxu0
      %v3036 = vadd.f32 0.0, %v3035
      %v3037 = vpop.f32.mrb[0].mxu0
      %3038 = vmatprep.mubr.f32.mxu0 %v2908
      %3039 = vmatmul.mubr.f32.gmra.mrb[0].mxu0 %v2907
      %v3040 = vpop.f32.mrb[0].mxu0
      %v3041 = vadd.f32 0.0, %v3040
      %v3042 = vpop.f32.mrb[0].mxu0
      %3043 = vmatprep.mubr.f32.mxu0 %v2910
      %3044 = vmatmul.mubr.f32.gmra.mrb[0].mxu0 %v2909
      %v3045 = vpop.f32.mrb[0].mxu0
      %v3046 = vadd.f32 0.0, %v3045
      %v3047 = vpop.f32.mrb[0].mxu0
      %3048 = vmatprep.mubr.f32.mxu0 %v2912
      %3049 = vmatmul.mubr.f32.gmra.mrb[0].mxu0 %v2911
      %v3050 = vpop.f32.mrb[0].mxu0
      %v3051 = vadd.f32 0.0, %v3050
      %v3052 = vpop.f32.mrb[0].mxu0
      %3053 = vmatprep.mubr.f32.mxu0 %v2914
      %3054 = vmatmul.mubr.f32.gmra.mrb[0].mxu0 %v2913
      %v3055 = vpop.f32.mrb[0].mxu0
      %v3056 = vadd.f32 0.0, %v3055
      %v3057 = vpop.f32.mrb[0].mxu0
      %3058 = vmatprep.mubr.f32.mxu0 %v2916
      %3059 = vmatmul.mubr.f32.gmra.mrb[0].mxu0 %v2915
      %v3060 = vpop.f32.mrb[0].mxu0
      %v3061 = vadd.f32 0.0, %v3060
      %v3062 = vpop.f32.mrb[0].mxu0
      %3063 = vmatprep.mubr.f32.mxu0 %v2918
      %3064 = vmatmul.mubr.f32.gmra.mrb[0].mxu0 %v2917
      %v3065 = vpop.f32.mrb[0].mxu0
      %v3066 = vadd.f32 0.0, %v3065
      %v3067 = vpop.f32.mrb[0].mxu0
      %3068 = vmatprep.mubr.f32.mxu0 %v2920
      %3069 = vmatmul.mubr.f32.gmra.mrb[0].mxu0 %v2919
      %v3070 = vpop.f32.mrb[0].mxu0
      %v3071 = vadd.f32 0.0, %v3070
      %v3072 = vpop.f32.mrb[0].mxu0
      %3073 = vmatprep.mubr.f32.mxu0 %v2922
      %3074 = vmatmul.mubr.f32.gmra.mrb[0].mxu0 %v2921
      %v3075 = vpop.f32.mrb[0].mxu0
      %v3076 = vadd.f32 0.0, %v3075
      %v3077 = vpop.f32.mrb[0].mxu0
      %3078 = vmatprep.mubr.f32.mxu0 %v2924
      %3079 = vmatmul.mubr.f32.gmra.mrb[0].mxu0 %v2923
      %v3080 = vpop.f32.mrb[0].mxu0
      %v3081 = vadd.f32 0.0, %v3080
      %v3082 = vpop.f32.mrb[0].mxu0
      %3083 = vmatprep.mubr.f32.mxu0 %v2926
      %3084 = vmatmul.mubr.f32.gmra.mrb[0].mxu0 %v2925
      %v3085 = vpop.f32.mrb[0].mxu0
      %v3086 = vadd.f32 0.0, %v3085
      %v3087 = vpop.f32.mrb[0].mxu0
      %3088 = vmatprep.mubr.f32.mxu0 %v2928
      %3089 = vmatmul.mubr.f32.gmra.mrb[0].mxu0 %v2927
      %v3090 = vpop.f32.mrb[0].mxu0
      %v3091 = vadd.f32 0.0, %v3090
      %v3092 = vpop.f32.mrb[0].mxu0
      %3093 = vmatprep.mubr.f32.mxu0 %v2930
      %3094 = vmatmul.mubr.f32.gmra.mrb[0].mxu0 %v2929
      %v3095 = vpop.f32.mrb[0].mxu0
      %v3096 = vadd.f32 0.0, %v3095
      %v3097 = vpop.f32.mrb[0].mxu0
      %3098 = vmatprep.mubr.f32.mxu0 %v2932
      %3099 = vmatmul.mubr.f32.gmra.mrb[0].mxu0 %v2931
      %v3100 = vpop.f32.mrb[0].mxu0
      %v3101 = vadd.f32 0.0, %v3100
      %v3102 = vpop.f32.mrb[0].mxu0
      %3103 = vmatprep.mubr.f32.mxu0 %v2934
      %3104 = vmatmul.mubr.f32.gmra.mrb[0].mxu0 %v2933
      %v3105 = vpop.f32.mrb[0].mxu0
      %v3106 = vadd.f32 0.0, %v3105
      %v3107 = vpop.f32.mrb[0].mxu0
      %3108 = vmatprep.mubr.f32.mxu0 %v2936
      %3109 = vmatmul.mubr.f32.gmra.mrb[0].mxu0 %v2935
      %v3110 = vpop.f32.mrb[0].mxu0
      %v3111 = vadd.f32 0.0, %v3110
      %v3112 = vpop.f32.mrb[0].mxu0
      %3113 = vdwg.mxu0
      %vm3114 = vcmask 15360
      %v3115 = vsel %vm3114, %v3036, 0.0
      %v3116 = vsel %vm3114, %v3041, 0.0
      %v3117 = vadd.f32 %v3115, %v3116
      %v3118 = vsel %vm3114, %v3046, 0.0
      %v3119 = vadd.f32 %v3117, %v3118
      %v3120 = vsel %vm3114, %v3051, 0.0
      %v3121 = vadd.f32 %v3119, %v3120
      %v3122 = vsel %vm3114, %v3056, 0.0
      %v3123 = vadd.f32 %v3121, %v3122
      %v3124 = vsel %vm3114, %v3061, 0.0
      %v3125 = vadd.f32 %v3123, %v3124
      %v3126 = vsel %vm3114, %v3066, 0.0
      %v3127 = vadd.f32 %v3125, %v3126
      %v3128 = vsel %vm3114, %v3071, 0.0
      %v3129 = vadd.f32 %v3127, %v3128
      %v3130 = vrot.slane %v3129, 4
      %v3131 = vadd.f32 %v3129, %v3130
      %v3132 = vrot.slane %v3131, 2
      %v3133 = vadd.f32 %v3131, %v3132
      %v3134 = vrot.slane %v3133, 1
      %v3135 = vadd.f32 %v3133, %v3134
      %v3136 = vmul.f32 %v3135, 0.015625
      %v3137 = vsel %vm3114, %v3076, 0.0
      %v3138 = vsel %vm3114, %v3081, 0.0
      %v3139 = vadd.f32 %v3137, %v3138
      %v3140 = vsel %vm3114, %v3086, 0.0
      %v3141 = vadd.f32 %v3139, %v3140
      %v3142 = vsel %vm3114, %v3091, 0.0
      %v3143 = vadd.f32 %v3141, %v3142
      %v3144 = vsel %vm3114, %v3096, 0.0
      %v3145 = vadd.f32 %v3143, %v3144
      %v3146 = vsel %vm3114, %v3101, 0.0
      %v3147 = vadd.f32 %v3145, %v3146
      %v3148 = vsel %vm3114, %v3106, 0.0
      %v3149 = vadd.f32 %v3147, %v3148
      %v3150 = vsel %vm3114, %v3111, 0.0
      %v3151 = vadd.f32 %v3149, %v3150
      %v3152 = vrot.slane %v3151, 4
      %v3153 = vadd.f32 %v3151, %v3152
      %v3154 = vrot.slane %v3153, 2
      %v3155 = vadd.f32 %v3153, %v3154
      %v3156 = vrot.slane %v3155, 1
      %v3157 = vadd.f32 %v3155, %v3156
      %v3158 = vmul.f32 %v3157, 0.015625
      %v3159 = vmax.f32 %v3136, %v3158
      %v3160 = vsub.f32 %v3136, %v3159
      %v3161 = vmul.f32 %v3160, 1.442695
      %v3162 = vpow.pop %v3161
      %v3163 = vsub.f32 %v3158, %v3159
      %v3164 = vmul.f32 %v3163, 1.442695
      %v3165 = vpow.pop %v3164
      %v3166 = vadd.f32 %v3162, %v3165
      %v3167 = vrcp.pop %v3166
      %v3168 = vmul.f32 %v3162, %v3167
      %vm3169 = vcmask 8192
      %v3170 = vsel %vm3169, %v3168, 0.0
      %3171 = vadd.xlane.f32.xlu0 %v3170
      %v3172 = vpop.xlane.xlu0 %3171
      %v3173 = vrot.slane %v3172, 4
      %v3174 = vadd.f32 %v3172, %v3173
      %v3175 = vrot.slane %v3174, 2
      %v3176 = vadd.f32 %v3174, %v3175
      %v3177 = vrot.slane %v3176, 1
      %v3178 = vadd.f32 %v3176, %v3177
      %s3179 = vtos %v3178
      %s3180 = smul.f32 %s3179, 0.5
      %v3181 = vstv %s3180
      %v3182 = vmul.f32 %v3181, %v2660
      %v3183 = vmul.f32 %v3181, %v2661
      %v3184 = vmul.f32 %v3181, %v2662
      %v3185 = vmul.f32 %v3181, %v2663
      %v3186 = vmul.f32 %v3181, %v2664
      %v3187 = vmul.f32 %v3181, %v2665
      %v3188 = vmul.f32 %v3181, %v2666
      %v3189 = vmul.f32 %v3181, %v2667
      %v3190 = vmul.f32 %v3165, %v3167
      %v3191 = vsel %vm3169, %v3190, 0.0
      %3192 = vadd.xlane.f32.xlu0 %v3191
      %v3193 = vpop.xlane.xlu0 %3192
      %v3194 = vrot.slane %v3193, 4
      %v3195 = vadd.f32 %v3193, %v3194
      %v3196 = vrot.slane %v3195, 2
      %v3197 = vadd.f32 %v3195, %v3196
      %v3198 = vrot.slane %v3197, 1
      %v3199 = vadd.f32 %v3197, %v3198
      %s3200 = vtos %v3199
      %s3201 = smul.f32 %s3200, 0.5
      %v3202 = vstv %s3201
      %v3203 = vmul.f32 %v3202, %v2668
      %v3204 = vmul.f32 %v3202, %v2669
      %v3205 = vmul.f32 %v3202, %v2670
      %v3206 = vmul.f32 %v3202, %v2671
      %v3207 = vmul.f32 %v3202, %v2672
      %v3208 = vmul.f32 %v3202, %v2673
      %v3209 = vmul.f32 %v3202, %v2674
      %v3210 = vmul.f32 %v3202, %v2675
      %v3211 = vadd.f32 %v3182, %v3203
      %v3212 = vadd.f32 %v3183, %v3204
      %v3213 = vadd.f32 %v3184, %v3205
      %v3214 = vadd.f32 %v3185, %v3206
      %v3215 = vadd.f32 %v3186, %v3207
      %v3216 = vadd.f32 %v3187, %v3208
      %v3217 = vadd.f32 %v3188, %v3209
      %v3218 = vadd.f32 %v3189, %v3210
      %3219 = vst.msk [vmem:[%s325] sm:$0xff] %vm372, %v3211
      %3220 = vst.msk [vmem:[%s325 + $0x8] sm:$0xff] %vm372, %v3212
      %3221 = vst.msk [vmem:[%s325 + $0x10] sm:$0xff] %vm372, %v3213
      %3222 = vst.msk [vmem:[%s325 + $0x18] sm:$0xff] %vm372, %v3214
      %3223 = vst.msk [vmem:[%s325 + $0x20] sm:$0xff] %vm372, %v3215
      %3224 = vst.msk [vmem:[%s325 + $0x28] sm:$0xff] %vm372, %v3216
      %3225 = vst.msk [vmem:[%s325 + $0x30] sm:$0xff] %vm372, %v3217
      %3226 = vst.msk [vmem:[%s325 + $0x38] sm:$0xff] %vm372, %v3218
      %p3227 = scmp.lt.s32.totalorder %s19, 3
      %s3228 = scalar_select %p3227, %s19, 3
      %s3229 = smul.addr %s3228, 8
      %s3230 = smul.addr %s3229, 8
      %s3231 = scalar_lea.vmem %s8, %s3230
      // Predicated region
      $region53: #{rgt_layer.1} parent=51 // pred_check
        %p3232 = pneg %p215
      $region54: #{rgt_layer.1} parent=51 // pred_check_branch
        %3234 = sbr.rel (%p3232) target = $region56
      $region55: #{rgt_layer.1} parent=51 // pred_region
        _
      $region56: #{rgt_layer.1} parent=51 // pred_fallthru
        _
    $region52: #{rgt_layer.1} parent=5 // pred_fallthru
      _
    %p3235 = scmp.le.s32.totalorder 2, %s14
    // Predicated region
    $region57: #{rgt_layer.1} parent=5 // pred_check
      %p3236 = pneg %p3235
    $region58: #{rgt_layer.1} parent=5 // pred_check_branch
      %3238 = sbr.rel (%p3236) target = $region60
    $region59: #{rgt_layer.1} parent=5 // pred_region
      %s3239 = ssub.s32 %s14, 2
      // Predicated region
      $region61: #{rgt_layer.1} parent=59 // pred_check
        %p3240 = pneg %p221
      $region62: #{rgt_layer.1} parent=59 // pred_check_branch
        %3242 = sbr.rel (%p3240) target = $region64
      $region63: #{rgt_layer.1} parent=59 // pred_region
        %p3243 = scmp.lt.s32.totalorder %s20, 3
        %s3244 = scalar_select %p3243, %s20, 3
        %s3245 = smul.addr %s3244, 8
        %s3246 = smul.addr %s3245, 8
        %s3247 = scalar_lea.vmem %s8, %s3246
      $region64: #{rgt_layer.1} parent=59 // pred_fallthru
        _
    $region60: #{rgt_layer.1} parent=5 // pred_fallthru
      _
  $region6: #{rgt_layer.1} parent=0 // loop_footer
    %s18 = sadd.s32 1, %s14
  $region7: #{rgt_layer.1} parent=0 // loop_footer_branch
    %13 = sbr.rel target = $region3
  $region8: #{rgt_layer.1} parent=0 // loop_exit
    _

</llo_original>
